<compile_context>
chip_gen: v7x
topology: tpu7x:2x2x1
jax: 0.10.0
libtpu: 0.0.40
codegen_flags: <defaults>
</compile_context>

<pallas_src>
import functools

import jax
import jax.numpy as jnp
from jax.experimental import pallas as pl
from jax.experimental.pallas import tpu as pltpu


def _st_block_kernel(x_ref, s_ref, w1_ref, b1_ref, wc_ref, cb_ref,
                     w2_ref, b2_ref, o_ref,
                     a1_sc, pstk_sc, a2_sc, h3n_sc,
                     *, B, N, T, C_IN, KT, SC1, SC2, CO, NSUP):
  """Fused ST_block forward (gridless, fully VMEM resident).

  Layouts (2-D, feature/lane dim last):
    x_ref : (B, N, T*C_IN)          lanes ordered (t, c)
    s_ref : (N, NSUP*N)             horizontally stacked Chebyshev supports
    w1_ref: (KT*C_IN, 2*SC1)        [conv1+res2 | res1] fused TimeBlock-1 weight
    wc_ref: (SC1, NSUP*SC2)         ChebConv projection weight, k in lanes
    cb_ref: (1, B*T1*SC2)           ChebConv bias tiled over (b, t)
    w2_ref: (KT*SC2, 2*CO)          fused TimeBlock-2 weight
    o_ref : (B, N, T2*CO)           lane-dense output slab
  VMEM scratch:
    a1_sc : (B*T1*N, KT*C_IN)       TimeBlock-1 im2col, rows ordered (b, t, n)
    pstk_sc:(NSUP*N, B*T1*SC2)      projection re-laid for propagation
    a2_sc : (B*T2*N, KT*SC2)        TimeBlock-2 im2col
    h3n_sc: (N, B*T2*CO)            node-major TimeBlock-2 output (BN input)
  """
  T1 = T - KT + 1
  T2 = T1 - KT + 1

  # Hoist weight / bias loads (JAX does not CSE broadcast_in_dim).
  w1 = w1_ref[...]
  b1 = b1_ref[...]
  wch = wc_ref[...]
  cb = cb_ref[...]
  w2 = w2_ref[...]
  b2 = b2_ref[...]
  s_hcat = s_ref[...]

  def gated_relu(z, width):
    # relu((conv1 + res2) + sigmoid(res1)); sigmoid via EUP exp + approx recip.
    conv = z[:, :width]
    gate = z[:, width:]
    sig = pl.reciprocal(1.0 + jnp.exp(-gate), approx=True)
    return jnp.maximum(conv + sig, 0.0)

  # ---- TimeBlock 1: ONE batched matmul over all (b, t, n) samples ----------
  for b in range(B):
    for t in range(T1):
      r = (b * T1 + t) * N
      a1_sc[r:r + N, :] = x_ref[b, :, t * C_IN:(t + KT) * C_IN]
  z1 = jnp.dot(a1_sc[...], w1, preferred_element_type=jnp.float32) + b1
  h1 = gated_relu(z1, SC1)                               # (B*T1*N, SC1)

  # ---- ChebConv projection (commuted BEFORE propagation): ONE matmul -------
  # P[(b,t,n), (k,c')] = (H1[b,:,t,:] @ W_k)[n, c']
  p = jnp.dot(h1, wch, preferred_element_type=jnp.float32)  # (B*T1*N, NSUP*SC2)

  # Relayout rows(b,t,n)/lanes(k,c') -> rows(k,n)/lanes(b,t,c') so the
  # Chebyshev sum over k becomes part of the propagation contraction.
  # (Pure store/XLU work; this block transpose is the one layout change a
  #  single-matmul propagation fundamentally needs.)
  for bt in range(B * T1):
    blk = p[bt * N:(bt + 1) * N, :]                      # (N, NSUP*SC2)
    for k in range(NSUP):
      pstk_sc[k * N:(k + 1) * N, bt * SC2:(bt + 1) * SC2] = (
          blk[:, k * SC2:(k + 1) * SC2])

  # ---- Graph propagation + Chebyshev sum + bias: ONE matmul ----------------
  # H2[n, (b,t,c')] = sum_k (S_k @ H1_bt @ W_k)[n, c'] + bias[c']
  h2 = jnp.dot(s_hcat, pstk_sc[...],
               preferred_element_type=jnp.float32) + cb   # (N, B*T1*SC2)

  # ---- TimeBlock 2: ONE batched matmul --------------------------------------
  for b in range(B):
    for t2 in range(T2):
      r = (b * T2 + t2) * N
      c0 = (b * T1 + t2) * SC2
      a2_sc[r:r + N, :] = h2[:, c0:c0 + KT * SC2]
  z2 = jnp.dot(a2_sc[...], w2, preferred_element_type=jnp.float32) + b2
  h3 = gated_relu(z2, CO)                                 # (B*T2*N, CO)

  # ---- ReLU (no-op, h3 >= 0) + BatchNorm2d(num_nodes), batch statistics ----
  for bt in range(B * T2):
    h3n_sc[:, bt * CO:(bt + 1) * CO] = h3[bt * N:(bt + 1) * N, :]
  h = h3n_sc[...]                                         # (N, B*T2*CO)
  mean = jnp.mean(h, axis=1, keepdims=True)
  d = h - mean
  var = jnp.mean(d * d, axis=1, keepdims=True)            # two-pass, never < 0
  normed = d * jax.lax.rsqrt(var + 1e-5)
  f = T2 * CO
  for b in range(B):
    o_ref[b] = normed[:, b * f:(b + 1) * f]


def st_block_forward(x, supports, params, kt=3, cheb_k=3):
  """x: (B, N, T, C_in); supports: list of (N, N) -> (B, N, T-2*(kt-1), C_out)."""
  x = x.astype(jnp.float32)
  B, N, T, C_in = x.shape
  w1c, b1c, w1r1, b1r1, w1r2, b1r2 = params["tb1"]
  w2c, b2c, w2r1, b2r1, w2r2, b2r2 = params["tb2"]
  cheb_w, cheb_b = params["cheb_w"], params["cheb_b"]
  SC1, SC2, CO = w1c.shape[1], cheb_w.shape[1], w2c.shape[1]
  T1 = T - kt + 1
  T2 = T1 - kt + 1

  # Chebyshev support set (tiny (N,N) algebra, identical to the PyTorch loop),
  # stacked horizontally so propagation + k-sum is one matmul in the kernel.
  eye = jnp.eye(N, dtype=jnp.float32)
  support_set = []
  for s in supports:
    s = s.astype(jnp.float32)
    ks = [eye, s]
    for _ in range(2, cheb_k):
      ks.append(2.0 * (s @ ks[-1]) - ks[-2])
    support_set.extend(ks)
  n_sup = len(support_set)
  assert cheb_w.shape[0] == n_sup * SC1
  s_hcat = jnp.concatenate(support_set, axis=1)            # (N, NSUP*N)

  # Fuse each TimeBlock's three convolutions into ONE matmul:
  #   relu(conv1 + sigmoid(res1) + res2) == relu((conv1+res2) + sigmoid(res1))
  def fuse_tb(wc, bc, wr1, br1, wr2, br2):
    wf = jnp.concatenate([wc + wr2, wr1], axis=1)
    bf = jnp.concatenate([bc + br2, br1], axis=0).reshape(1, -1)
    return wf, bf

  w1f, b1f = fuse_tb(w1c, b1c, w1r1, b1r1, w1r2, b1r2)
  w2f, b2f = fuse_tb(w2c, b2c, w2r1, b2r1, w2r2, b2r2)

  # Projection weight with the support index moved into lanes, and the
  # ChebConv bias tiled over (b, t) lane blocks.
  wc_h = cheb_w.reshape(n_sup, SC1, SC2).transpose(1, 0, 2).reshape(
      SC1, n_sup * SC2)
  cb_tiled = jnp.tile(cheb_b, B * T1).reshape(1, B * T1 * SC2)

  kernel = functools.partial(
      _st_block_kernel, B=B, N=N, T=T, C_IN=C_in, KT=kt,
      SC1=SC1, SC2=SC2, CO=CO, NSUP=n_sup)

  operands = (x.reshape(B, N, T * C_in), s_hcat, w1f, b1f, wc_h, cb_tiled,
              w2f, b2f)
  flops = 2 * (B * T1 * N * (kt * C_in) * (2 * SC1)
               + B * T1 * N * SC1 * (n_sup * SC2)
               + N * (n_sup * N) * (B * T1 * SC2)
               + B * T2 * N * (kt * SC2) * (2 * CO))
  transcendentals = B * T1 * N * SC1 + B * T2 * N * CO
  bytes_accessed = sum(int(a.size) * 4 for a in operands) + B * N * T2 * CO * 4

  # TODO(synk): for large B/N/T re-tile as a gridded kernel parallel over NODE
  # tiles (dimension_semantics=("parallel",), BN stats are per-node so node
  # tiling is safe and uses both v7x TensorCores), budget scratch against the
  # 64/32 MiB v7x VMEM, and feed the MXU bf16 operands on v6e/v7x once the
  # matmuls are throughput-bound.  At these demo shapes (<1 MiB, ~1 MFLOP)
  # the single fully resident launch-latency-bound call below is optimal.
  vmem = lambda: pl.BlockSpec(memory_space=pltpu.MemorySpace.VMEM)
  out = pl.pallas_call(
      kernel,
      out_shape=jax.ShapeDtypeStruct((B, N, T2 * CO), jnp.float32),
      in_specs=[vmem() for _ in range(len(operands))],
      out_specs=vmem(),
      scratch_shapes=[
          pltpu.VMEM((B * T1 * N, kt * C_in), jnp.float32),    # im2col 1
          pltpu.VMEM((n_sup * N, B * T1 * SC2), jnp.float32),  # prop RHS
          pltpu.VMEM((B * T2 * N, kt * SC2), jnp.float32),     # im2col 2
          pltpu.VMEM((N, B * T2 * CO), jnp.float32),           # BN input
      ],
      cost_estimate=pl.CostEstimate(
          flops=flops, transcendentals=transcendentals,
          bytes_accessed=bytes_accessed),
  )(*operands)
  # (B, N, T2*CO) -> (B, N, T2, CO): free reshape, no transpose/pad/slice glue.
  return out.reshape(B, N, T2, CO)


def init_params(key, in_channels, sc1, sc2, out_channels, kt=3, cheb_k=3):
  keys = jax.random.split(key, 13)

  def conv_w(k, cin, cout):
    # (kt*cin, cout), rows ordered (k, c) k-major; see porting note at the top.
    return 0.1 * jax.random.normal(k, (kt * cin, cout), dtype=jnp.float32)

  def conv_b(k, cout):
    return 0.05 * jax.random.normal(k, (cout,), dtype=jnp.float32)

  tb1 = (conv_w(keys[0], in_channels, sc1), conv_b(keys[1], sc1),   # conv1
         conv_w(keys[2], in_channels, sc1), conv_b(keys[3], sc1),   # res1
         conv_w(keys[4], in_channels, sc1), conv_b(keys[5], sc1))   # res2
  tb2 = (conv_w(keys[6], sc2, out_channels), conv_b(keys[7], out_channels),
         conv_w(keys[8], sc2, out_channels), conv_b(keys[9], out_channels),
         conv_w(keys[10], sc2, out_channels), conv_b(keys[11], out_channels))
  # xavier-normal-ish ChebConv weights, zero bias (matches nn.init.constant_(0))
  fan_in, fan_out = 2 * cheb_k * sc1, sc2
  std = (2.0 / (fan_in + fan_out)) ** 0.5
  cheb_w = std * jax.random.normal(keys[12], (fan_in, fan_out),
                                   dtype=jnp.float32)
  cheb_b = jnp.zeros((fan_out,), dtype=jnp.float32)
  return {"tb1": tb1, "tb2": tb2, "cheb_w": cheb_w, "cheb_b": cheb_b}


if __name__ == "__main__":
  # Small shapes consistent with ST_block: X (B, N, T, C_in), 2 graph supports.
  B, N, T, C_IN = 2, 8, 12, 4
  SC1, SC2, OUT_CH = 16, 16, 16
  KT, CHEB_K = 3, 3

  key = jax.random.PRNGKey(0)
  kx, ks1, ks2, kp = jax.random.split(key, 4)

  x = jax.random.normal(kx, (B, N, T, C_IN), dtype=jnp.float32)
  supports = [
      0.3 * jax.random.normal(ks1, (N, N), dtype=jnp.float32),
      0.3 * jax.random.normal(ks2, (N, N), dtype=jnp.float32),
  ]
  params = init_params(kp, C_IN, SC1, SC2, OUT_CH, kt=KT, cheb_k=CHEB_K)

  fwd = jax.jit(functools.partial(st_block_forward, kt=KT, cheb_k=CHEB_K))
  out = fwd(x, supports, params)
  out = jax.block_until_ready(out)

  assert out.shape == (B, N, T - 2 * (KT - 1), OUT_CH), out.shape
  assert jnp.all(jnp.isfinite(out))
  print("KERNEL_OK")
</pallas_src>

<mosaic_0001>
module attributes {stable_mosaic.version = 11 : i64} {
  func.func @_st_block_kernel(%arg0: memref<2x8x48xf32, #tpu.memory_space<vmem>>, %arg1: memref<8x48xf32, #tpu.memory_space<vmem>>, %arg2: memref<12x32xf32, #tpu.memory_space<vmem>>, %arg3: memref<1x32xf32, #tpu.memory_space<vmem>>, %arg4: memref<16x96xf32, #tpu.memory_space<vmem>>, %arg5: memref<1x320xf32, #tpu.memory_space<vmem>>, %arg6: memref<48x32xf32, #tpu.memory_space<vmem>>, %arg7: memref<1x32xf32, #tpu.memory_space<vmem>>, %arg8: memref<2x8x128xf32, #tpu.memory_space<vmem>>, %arg9: memref<160x12xf32, #tpu.memory_space<vmem>>, %arg10: memref<48x320xf32, #tpu.memory_space<vmem>>, %arg11: memref<128x48xf32, #tpu.memory_space<vmem>>, %arg12: memref<8x256xf32, #tpu.memory_space<vmem>>) attributes {dimension_semantics = [], scalar_prefetch = 0 : i64, scratch_operands = 4 : i64, tpu.core_type = #tpu.core_type<tc>} {
    %c0 = arith.constant 0 : index
    %c0_0 = arith.constant 0 : index
    %0 = vector.load %arg2[%c0, %c0_0] : memref<12x32xf32, #tpu.memory_space<vmem>>, vector<12x32xf32>
    %c0_1 = arith.constant 0 : index
    %c0_2 = arith.constant 0 : index
    %1 = vector.load %arg3[%c0_1, %c0_2] : memref<1x32xf32, #tpu.memory_space<vmem>>, vector<1x32xf32>
    %c0_3 = arith.constant 0 : index
    %c0_4 = arith.constant 0 : index
    %2 = vector.load %arg4[%c0_3, %c0_4] : memref<16x96xf32, #tpu.memory_space<vmem>>, vector<16x96xf32>
    %c0_5 = arith.constant 0 : index
    %c0_6 = arith.constant 0 : index
    %3 = vector.load %arg5[%c0_5, %c0_6] : memref<1x320xf32, #tpu.memory_space<vmem>>, vector<1x320xf32>
    %c0_7 = arith.constant 0 : index
    %c0_8 = arith.constant 0 : index
    %4 = vector.load %arg6[%c0_7, %c0_8] : memref<48x32xf32, #tpu.memory_space<vmem>>, vector<48x32xf32>
    %c0_9 = arith.constant 0 : index
    %c0_10 = arith.constant 0 : index
    %5 = vector.load %arg7[%c0_9, %c0_10] : memref<1x32xf32, #tpu.memory_space<vmem>>, vector<1x32xf32>
    %c0_11 = arith.constant 0 : index
    %c0_12 = arith.constant 0 : index
    %6 = vector.load %arg1[%c0_11, %c0_12] : memref<8x48xf32, #tpu.memory_space<vmem>>, vector<8x48xf32>
    %c0_13 = arith.constant 0 : index
    %c0_14 = arith.constant 0 : index
    %c0_15 = arith.constant 0 : index
    %7 = vector.load %arg0[%c0_13, %c0_14, %c0_15] : memref<2x8x48xf32, #tpu.memory_space<vmem>>, vector<1x8x12xf32>
    %8 = vector.shape_cast %7 : vector<1x8x12xf32> to vector<8x12xf32>
    %c0_16 = arith.constant 0 : index
    %c0_17 = arith.constant 0 : index
    %9 = vector.load %arg9[%c0_16, %c0_17] : memref<160x12xf32, #tpu.memory_space<vmem>>, vector<8x12xf32>
    tpu.vector_store %arg9[%c0_16, %c0_17], %8 {strides = array<i32>} : memref<160x12xf32, #tpu.memory_space<vmem>>, vector<8x12xf32>,
    %c0_18 = arith.constant 0 : index
    %c0_19 = arith.constant 0 : index
    %c4 = arith.constant 4 : index
    %10 = vector.load %arg0[%c0_18, %c0_19, %c4] : memref<2x8x48xf32, #tpu.memory_space<vmem>>, vector<1x8x12xf32>
    %11 = vector.shape_cast %10 : vector<1x8x12xf32> to vector<8x12xf32>
    %c8 = arith.constant 8 : index
    %c0_20 = arith.constant 0 : index
    %12 = vector.load %arg9[%c8, %c0_20] : memref<160x12xf32, #tpu.memory_space<vmem>>, vector<8x12xf32>
    tpu.vector_store %arg9[%c8, %c0_20], %11 {strides = array<i32>} : memref<160x12xf32, #tpu.memory_space<vmem>>, vector<8x12xf32>,
    %c0_21 = arith.constant 0 : index
    %c0_22 = arith.constant 0 : index
    %c8_23 = arith.constant 8 : index
    %13 = vector.load %arg0[%c0_21, %c0_22, %c8_23] : memref<2x8x48xf32, #tpu.memory_space<vmem>>, vector<1x8x12xf32>
    %14 = vector.shape_cast %13 : vector<1x8x12xf32> to vector<8x12xf32>
    %c16 = arith.constant 16 : index
    %c0_24 = arith.constant 0 : index
    %15 = vector.load %arg9[%c16, %c0_24] : memref<160x12xf32, #tpu.memory_space<vmem>>, vector<8x12xf32>
    tpu.vector_store %arg9[%c16, %c0_24], %14 {strides = array<i32>} : memref<160x12xf32, #tpu.memory_space<vmem>>, vector<8x12xf32>,
    %c0_25 = arith.constant 0 : index
    %c0_26 = arith.constant 0 : index
    %c12 = arith.constant 12 : index
    %16 = vector.load %arg0[%c0_25, %c0_26, %c12] : memref<2x8x48xf32, #tpu.memory_space<vmem>>, vector<1x8x12xf32>
    %17 = vector.shape_cast %16 : vector<1x8x12xf32> to vector<8x12xf32>
    %c24 = arith.constant 24 : index
    %c0_27 = arith.constant 0 : index
    %18 = vector.load %arg9[%c24, %c0_27] : memref<160x12xf32, #tpu.memory_space<vmem>>, vector<8x12xf32>
    tpu.vector_store %arg9[%c24, %c0_27], %17 {strides = array<i32>} : memref<160x12xf32, #tpu.memory_space<vmem>>, vector<8x12xf32>,
    %c0_28 = arith.constant 0 : index
    %c0_29 = arith.constant 0 : index
    %c16_30 = arith.constant 16 : index
    %19 = vector.load %arg0[%c0_28, %c0_29, %c16_30] : memref<2x8x48xf32, #tpu.memory_space<vmem>>, vector<1x8x12xf32>
    %20 = vector.shape_cast %19 : vector<1x8x12xf32> to vector<8x12xf32>
    %c32 = arith.constant 32 : index
    %c0_31 = arith.constant 0 : index
    %21 = vector.load %arg9[%c32, %c0_31] : memref<160x12xf32, #tpu.memory_space<vmem>>, vector<8x12xf32>
    tpu.vector_store %arg9[%c32, %c0_31], %20 {strides = array<i32>} : memref<160x12xf32, #tpu.memory_space<vmem>>, vector<8x12xf32>,
    %c0_32 = arith.constant 0 : index
    %c0_33 = arith.constant 0 : index
    %c20 = arith.constant 20 : index
    %22 = vector.load %arg0[%c0_32, %c0_33, %c20] : memref<2x8x48xf32, #tpu.memory_space<vmem>>, vector<1x8x12xf32>
    %23 = vector.shape_cast %22 : vector<1x8x12xf32> to vector<8x12xf32>
    %c40 = arith.constant 40 : index
    %c0_34 = arith.constant 0 : index
    %24 = vector.load %arg9[%c40, %c0_34] : memref<160x12xf32, #tpu.memory_space<vmem>>, vector<8x12xf32>
    tpu.vector_store %arg9[%c40, %c0_34], %23 {strides = array<i32>} : memref<160x12xf32, #tpu.memory_space<vmem>>, vector<8x12xf32>,
    %c0_35 = arith.constant 0 : index
    %c0_36 = arith.constant 0 : index
    %c24_37 = arith.constant 24 : index
    %25 = vector.load %arg0[%c0_35, %c0_36, %c24_37] : memref<2x8x48xf32, #tpu.memory_space<vmem>>, vector<1x8x12xf32>
    %26 = vector.shape_cast %25 : vector<1x8x12xf32> to vector<8x12xf32>
    %c48 = arith.constant 48 : index
    %c0_38 = arith.constant 0 : index
    %27 = vector.load %arg9[%c48, %c0_38] : memref<160x12xf32, #tpu.memory_space<vmem>>, vector<8x12xf32>
    tpu.vector_store %arg9[%c48, %c0_38], %26 {strides = array<i32>} : memref<160x12xf32, #tpu.memory_space<vmem>>, vector<8x12xf32>,
    %c0_39 = arith.constant 0 : index
    %c0_40 = arith.constant 0 : index
    %c28 = arith.constant 28 : index
    %28 = vector.load %arg0[%c0_39, %c0_40, %c28] : memref<2x8x48xf32, #tpu.memory_space<vmem>>, vector<1x8x12xf32>
    %29 = vector.shape_cast %28 : vector<1x8x12xf32> to vector<8x12xf32>
    %c56 = arith.constant 56 : index
    %c0_41 = arith.constant 0 : index
    %30 = vector.load %arg9[%c56, %c0_41] : memref<160x12xf32, #tpu.memory_space<vmem>>, vector<8x12xf32>
    tpu.vector_store %arg9[%c56, %c0_41], %29 {strides = array<i32>} : memref<160x12xf32, #tpu.memory_space<vmem>>, vector<8x12xf32>,
    %c0_42 = arith.constant 0 : index
    %c0_43 = arith.constant 0 : index
    %c32_44 = arith.constant 32 : index
    %31 = vector.load %arg0[%c0_42, %c0_43, %c32_44] : memref<2x8x48xf32, #tpu.memory_space<vmem>>, vector<1x8x12xf32>
    %32 = vector.shape_cast %31 : vector<1x8x12xf32> to vector<8x12xf32>
    %c64 = arith.constant 64 : index
    %c0_45 = arith.constant 0 : index
    %33 = vector.load %arg9[%c64, %c0_45] : memref<160x12xf32, #tpu.memory_space<vmem>>, vector<8x12xf32>
    tpu.vector_store %arg9[%c64, %c0_45], %32 {strides = array<i32>} : memref<160x12xf32, #tpu.memory_space<vmem>>, vector<8x12xf32>,
    %c0_46 = arith.constant 0 : index
    %c0_47 = arith.constant 0 : index
    %c36 = arith.constant 36 : index
    %34 = vector.load %arg0[%c0_46, %c0_47, %c36] : memref<2x8x48xf32, #tpu.memory_space<vmem>>, vector<1x8x12xf32>
    %35 = vector.shape_cast %34 : vector<1x8x12xf32> to vector<8x12xf32>
    %c72 = arith.constant 72 : index
    %c0_48 = arith.constant 0 : index
    %36 = vector.load %arg9[%c72, %c0_48] : memref<160x12xf32, #tpu.memory_space<vmem>>, vector<8x12xf32>
    tpu.vector_store %arg9[%c72, %c0_48], %35 {strides = array<i32>} : memref<160x12xf32, #tpu.memory_space<vmem>>, vector<8x12xf32>,
    %c1 = arith.constant 1 : index
    %c0_49 = arith.constant 0 : index
    %c0_50 = arith.constant 0 : index
    %37 = vector.load %arg0[%c1, %c0_49, %c0_50] : memref<2x8x48xf32, #tpu.memory_space<vmem>>, vector<1x8x12xf32>
    %38 = vector.shape_cast %37 : vector<1x8x12xf32> to vector<8x12xf32>
    %c80 = arith.constant 80 : index
    %c0_51 = arith.constant 0 : index
    %39 = vector.load %arg9[%c80, %c0_51] : memref<160x12xf32, #tpu.memory_space<vmem>>, vector<8x12xf32>
    tpu.vector_store %arg9[%c80, %c0_51], %38 {strides = array<i32>} : memref<160x12xf32, #tpu.memory_space<vmem>>, vector<8x12xf32>,
    %c1_52 = arith.constant 1 : index
    %c0_53 = arith.constant 0 : index
    %c4_54 = arith.constant 4 : index
    %40 = vector.load %arg0[%c1_52, %c0_53, %c4_54] : memref<2x8x48xf32, #tpu.memory_space<vmem>>, vector<1x8x12xf32>
    %41 = vector.shape_cast %40 : vector<1x8x12xf32> to vector<8x12xf32>
    %c88 = arith.constant 88 : index
    %c0_55 = arith.constant 0 : index
    %42 = vector.load %arg9[%c88, %c0_55] : memref<160x12xf32, #tpu.memory_space<vmem>>, vector<8x12xf32>
    tpu.vector_store %arg9[%c88, %c0_55], %41 {strides = array<i32>} : memref<160x12xf32, #tpu.memory_space<vmem>>, vector<8x12xf32>,
    %c1_56 = arith.constant 1 : index
    %c0_57 = arith.constant 0 : index
    %c8_58 = arith.constant 8 : index
    %43 = vector.load %arg0[%c1_56, %c0_57, %c8_58] : memref<2x8x48xf32, #tpu.memory_space<vmem>>, vector<1x8x12xf32>
    %44 = vector.shape_cast %43 : vector<1x8x12xf32> to vector<8x12xf32>
    %c96 = arith.constant 96 : index
    %c0_59 = arith.constant 0 : index
    %45 = vector.load %arg9[%c96, %c0_59] : memref<160x12xf32, #tpu.memory_space<vmem>>, vector<8x12xf32>
    tpu.vector_store %arg9[%c96, %c0_59], %44 {strides = array<i32>} : memref<160x12xf32, #tpu.memory_space<vmem>>, vector<8x12xf32>,
    %c1_60 = arith.constant 1 : index
    %c0_61 = arith.constant 0 : index
    %c12_62 = arith.constant 12 : index
    %46 = vector.load %arg0[%c1_60, %c0_61, %c12_62] : memref<2x8x48xf32, #tpu.memory_space<vmem>>, vector<1x8x12xf32>
    %47 = vector.shape_cast %46 : vector<1x8x12xf32> to vector<8x12xf32>
    %c104 = arith.constant 104 : index
    %c0_63 = arith.constant 0 : index
    %48 = vector.load %arg9[%c104, %c0_63] : memref<160x12xf32, #tpu.memory_space<vmem>>, vector<8x12xf32>
    tpu.vector_store %arg9[%c104, %c0_63], %47 {strides = array<i32>} : memref<160x12xf32, #tpu.memory_space<vmem>>, vector<8x12xf32>,
    %c1_64 = arith.constant 1 : index
    %c0_65 = arith.constant 0 : index
    %c16_66 = arith.constant 16 : index
    %49 = vector.load %arg0[%c1_64, %c0_65, %c16_66] : memref<2x8x48xf32, #tpu.memory_space<vmem>>, vector<1x8x12xf32>
    %50 = vector.shape_cast %49 : vector<1x8x12xf32> to vector<8x12xf32>
    %c112 = arith.constant 112 : index
    %c0_67 = arith.constant 0 : index
    %51 = vector.load %arg9[%c112, %c0_67] : memref<160x12xf32, #tpu.memory_space<vmem>>, vector<8x12xf32>
    tpu.vector_store %arg9[%c112, %c0_67], %50 {strides = array<i32>} : memref<160x12xf32, #tpu.memory_space<vmem>>, vector<8x12xf32>,
    %c1_68 = arith.constant 1 : index
    %c0_69 = arith.constant 0 : index
    %c20_70 = arith.constant 20 : index
    %52 = vector.load %arg0[%c1_68, %c0_69, %c20_70] : memref<2x8x48xf32, #tpu.memory_space<vmem>>, vector<1x8x12xf32>
    %53 = vector.shape_cast %52 : vector<1x8x12xf32> to vector<8x12xf32>
    %c120 = arith.constant 120 : index
    %c0_71 = arith.constant 0 : index
    %54 = vector.load %arg9[%c120, %c0_71] : memref<160x12xf32, #tpu.memory_space<vmem>>, vector<8x12xf32>
    tpu.vector_store %arg9[%c120, %c0_71], %53 {strides = array<i32>} : memref<160x12xf32, #tpu.memory_space<vmem>>, vector<8x12xf32>,
    %c1_72 = arith.constant 1 : index
    %c0_73 = arith.constant 0 : index
    %c24_74 = arith.constant 24 : index
    %55 = vector.load %arg0[%c1_72, %c0_73, %c24_74] : memref<2x8x48xf32, #tpu.memory_space<vmem>>, vector<1x8x12xf32>
    %56 = vector.shape_cast %55 : vector<1x8x12xf32> to vector<8x12xf32>
    %c128 = arith.constant 128 : index
    %c0_75 = arith.constant 0 : index
    %57 = vector.load %arg9[%c128, %c0_75] : memref<160x12xf32, #tpu.memory_space<vmem>>, vector<8x12xf32>
    tpu.vector_store %arg9[%c128, %c0_75], %56 {strides = array<i32>} : memref<160x12xf32, #tpu.memory_space<vmem>>, vector<8x12xf32>,
    %c1_76 = arith.constant 1 : index
    %c0_77 = arith.constant 0 : index
    %c28_78 = arith.constant 28 : index
    %58 = vector.load %arg0[%c1_76, %c0_77, %c28_78] : memref<2x8x48xf32, #tpu.memory_space<vmem>>, vector<1x8x12xf32>
    %59 = vector.shape_cast %58 : vector<1x8x12xf32> to vector<8x12xf32>
    %c136 = arith.constant 136 : index
    %c0_79 = arith.constant 0 : index
    %60 = vector.load %arg9[%c136, %c0_79] : memref<160x12xf32, #tpu.memory_space<vmem>>, vector<8x12xf32>
    tpu.vector_store %arg9[%c136, %c0_79], %59 {strides = array<i32>} : memref<160x12xf32, #tpu.memory_space<vmem>>, vector<8x12xf32>,
    %c1_80 = arith.constant 1 : index
    %c0_81 = arith.constant 0 : index
    %c32_82 = arith.constant 32 : index
    %61 = vector.load %arg0[%c1_80, %c0_81, %c32_82] : memref<2x8x48xf32, #tpu.memory_space<vmem>>, vector<1x8x12xf32>
    %62 = vector.shape_cast %61 : vector<1x8x12xf32> to vector<8x12xf32>
    %c144 = arith.constant 144 : index
    %c0_83 = arith.constant 0 : index
    %63 = vector.load %arg9[%c144, %c0_83] : memref<160x12xf32, #tpu.memory_space<vmem>>, vector<8x12xf32>
    tpu.vector_store %arg9[%c144, %c0_83], %62 {strides = array<i32>} : memref<160x12xf32, #tpu.memory_space<vmem>>, vector<8x12xf32>,
    %c1_84 = arith.constant 1 : index
    %c0_85 = arith.constant 0 : index
    %c36_86 = arith.constant 36 : index
    %64 = vector.load %arg0[%c1_84, %c0_85, %c36_86] : memref<2x8x48xf32, #tpu.memory_space<vmem>>, vector<1x8x12xf32>
    %65 = vector.shape_cast %64 : vector<1x8x12xf32> to vector<8x12xf32>
    %c152 = arith.constant 152 : index
    %c0_87 = arith.constant 0 : index
    %66 = vector.load %arg9[%c152, %c0_87] : memref<160x12xf32, #tpu.memory_space<vmem>>, vector<8x12xf32>
    tpu.vector_store %arg9[%c152, %c0_87], %65 {strides = array<i32>} : memref<160x12xf32, #tpu.memory_space<vmem>>, vector<8x12xf32>,
    %c0_88 = arith.constant 0 : index
    %c0_89 = arith.constant 0 : index
    %67 = vector.load %arg9[%c0_88, %c0_89] : memref<160x12xf32, #tpu.memory_space<vmem>>, vector<160x12xf32>
    %cst = arith.constant dense<0.000000e+00> : vector<160x32xf32>
    %68 = tpu.matmul %67, %0, %cst {dimension_numbers = #tpu.dot_dimension_numbers<[1], [0], [0], [1], [0, 0, 1, 1], [], []>} : vector<160x12xf32>, vector<12x32xf32>, vector<160x32xf32> -> vector<160x32xf32>
    %69 = vector.broadcast %1 : vector<1x32xf32> to vector<160x32xf32>
    %70 = arith.addf %68, %69 : vector<160x32xf32>
    %71 = vector.extract_strided_slice %70 {offsets = [0, 0], sizes = [160, 16], strides = [1, 1]} : vector<160x32xf32> to vector<160x16xf32>
    %72 = vector.extract_strided_slice %70 {offsets = [0, 16], sizes = [160, 16], strides = [1, 1]} : vector<160x32xf32> to vector<160x16xf32>
    %cst_90 = arith.constant 0.000000e+00 : f32
    %73 = vector.broadcast %cst_90 : f32 to vector<160x16xf32>
    %74 = arith.subf %73, %72 : vector<160x16xf32>
    %75 = math.exp %74 : vector<160x16xf32>
    %cst_91 = arith.constant 1.000000e+00 : f32
    %76 = vector.broadcast %cst_91 : f32 to vector<160x16xf32>
    %77 = arith.addf %76, %75 : vector<160x16xf32>
    %78 = tpu.reciprocal %77 {approx = true} : vector<160x16xf32> -> vector<160x16xf32>
    %79 = arith.addf %71, %78 : vector<160x16xf32>
    %cst_92 = arith.constant 0.000000e+00 : f32
    %80 = vector.broadcast %cst_92 : f32 to vector<160x16xf32>
    %81 = arith.maximumf %79, %80 : vector<160x16xf32>
    %cst_93 = arith.constant dense<0.000000e+00> : vector<160x96xf32>
    %82 = tpu.matmul %81, %2, %cst_93 {dimension_numbers = #tpu.dot_dimension_numbers<[1], [0], [0], [1], [0, 0, 1, 1], [], []>} : vector<160x16xf32>, vector<16x96xf32>, vector<160x96xf32> -> vector<160x96xf32>
    %83 = vector.extract_strided_slice %82 {offsets = [0, 0], sizes = [8, 96], strides = [1, 1]} : vector<160x96xf32> to vector<8x96xf32>
    %84 = vector.extract_strided_slice %83 {offsets = [0, 0], sizes = [8, 16], strides = [1, 1]} : vector<8x96xf32> to vector<8x16xf32>
    %c0_94 = arith.constant 0 : index
    %c0_95 = arith.constant 0 : index
    %85 = vector.load %arg10[%c0_94, %c0_95] : memref<48x320xf32, #tpu.memory_space<vmem>>, vector<8x16xf32>
    tpu.vector_store %arg10[%c0_94, %c0_95], %84 {strides = array<i32>} : memref<48x320xf32, #tpu.memory_space<vmem>>, vector<8x16xf32>,
    %86 = vector.extract_strided_slice %83 {offsets = [0, 16], sizes = [8, 16], strides = [1, 1]} : vector<8x96xf32> to vector<8x16xf32>
    %c8_96 = arith.constant 8 : index
    %c0_97 = arith.constant 0 : index
    %87 = vector.load %arg10[%c8_96, %c0_97] : memref<48x320xf32, #tpu.memory_space<vmem>>, vector<8x16xf32>
    tpu.vector_store %arg10[%c8_96, %c0_97], %86 {strides = array<i32>} : memref<48x320xf32, #tpu.memory_space<vmem>>, vector<8x16xf32>,
    %88 = vector.extract_strided_slice %83 {offsets = [0, 32], sizes = [8, 16], strides = [1, 1]} : vector<8x96xf32> to vector<8x16xf32>
    %c16_98 = arith.constant 16 : index
    %c0_99 = arith.constant 0 : index
    %89 = vector.load %arg10[%c16_98, %c0_99] : memref<48x320xf32, #tpu.memory_space<vmem>>, vector<8x16xf32>
    tpu.vector_store %arg10[%c16_98, %c0_99], %88 {strides = array<i32>} : memref<48x320xf32, #tpu.memory_space<vmem>>, vector<8x16xf32>,
    %90 = vector.extract_strided_slice %83 {offsets = [0, 48], sizes = [8, 16], strides = [1, 1]} : vector<8x96xf32> to vector<8x16xf32>
    %c24_100 = arith.constant 24 : index
    %c0_101 = arith.constant 0 : index
    %91 = vector.load %arg10[%c24_100, %c0_101] : memref<48x320xf32, #tpu.memory_space<vmem>>, vector<8x16xf32>
    tpu.vector_store %arg10[%c24_100, %c0_101], %90 {strides = array<i32>} : memref<48x320xf32, #tpu.memory_space<vmem>>, vector<8x16xf32>,
    %92 = vector.extract_strided_slice %83 {offsets = [0, 64], sizes = [8, 16], strides = [1, 1]} : vector<8x96xf32> to vector<8x16xf32>
    %c32_102 = arith.constant 32 : index
    %c0_103 = arith.constant 0 : index
    %93 = vector.load %arg10[%c32_102, %c0_103] : memref<48x320xf32, #tpu.memory_space<vmem>>, vector<8x16xf32>
    tpu.vector_store %arg10[%c32_102, %c0_103], %92 {strides = array<i32>} : memref<48x320xf32, #tpu.memory_space<vmem>>, vector<8x16xf32>,
    %94 = vector.extract_strided_slice %83 {offsets = [0, 80], sizes = [8, 16], strides = [1, 1]} : vector<8x96xf32> to vector<8x16xf32>
    %c40_104 = arith.constant 40 : index
    %c0_105 = arith.constant 0 : index
    %95 = vector.load %arg10[%c40_104, %c0_105] : memref<48x320xf32, #tpu.memory_space<vmem>>, vector<8x16xf32>
    tpu.vector_store %arg10[%c40_104, %c0_105], %94 {strides = array<i32>} : memref<48x320xf32, #tpu.memory_space<vmem>>, vector<8x16xf32>,
    %96 = vector.extract_strided_slice %82 {offsets = [8, 0], sizes = [8, 96], strides = [1, 1]} : vector<160x96xf32> to vector<8x96xf32>
    %97 = vector.extract_strided_slice %96 {offsets = [0, 0], sizes = [8, 16], strides = [1, 1]} : vector<8x96xf32> to vector<8x16xf32>
    %c0_106 = arith.constant 0 : index
    %c16_107 = arith.constant 16 : index
    %98 = vector.load %arg10[%c0_106, %c16_107] : memref<48x320xf32, #tpu.memory_space<vmem>>, vector<8x16xf32>
    tpu.vector_store %arg10[%c0_106, %c16_107], %97 {strides = array<i32>} : memref<48x320xf32, #tpu.memory_space<vmem>>, vector<8x16xf32>,
    %99 = vector.extract_strided_slice %96 {offsets = [0, 16], sizes = [8, 16], strides = [1, 1]} : vector<8x96xf32> to vector<8x16xf32>
    %c8_108 = arith.constant 8 : index
    %c16_109 = arith.constant 16 : index
    %100 = vector.load %arg10[%c8_108, %c16_109] : memref<48x320xf32, #tpu.memory_space<vmem>>, vector<8x16xf32>
    tpu.vector_store %arg10[%c8_108, %c16_109], %99 {strides = array<i32>} : memref<48x320xf32, #tpu.memory_space<vmem>>, vector<8x16xf32>,
    %101 = vector.extract_strided_slice %96 {offsets = [0, 32], sizes = [8, 16], strides = [1, 1]} : vector<8x96xf32> to vector<8x16xf32>
    %c16_110 = arith.constant 16 : index
    %c16_111 = arith.constant 16 : index
    %102 = vector.load %arg10[%c16_110, %c16_111] : memref<48x320xf32, #tpu.memory_space<vmem>>, vector<8x16xf32>
    tpu.vector_store %arg10[%c16_110, %c16_111], %101 {strides = array<i32>} : memref<48x320xf32, #tpu.memory_space<vmem>>, vector<8x16xf32>,
    %103 = vector.extract_strided_slice %96 {offsets = [0, 48], sizes = [8, 16], strides = [1, 1]} : vector<8x96xf32> to vector<8x16xf32>
    %c24_112 = arith.constant 24 : index
    %c16_113 = arith.constant 16 : index
    %104 = vector.load %arg10[%c24_112, %c16_113] : memref<48x320xf32, #tpu.memory_space<vmem>>, vector<8x16xf32>
    tpu.vector_store %arg10[%c24_112, %c16_113], %103 {strides = array<i32>} : memref<48x320xf32, #tpu.memory_space<vmem>>, vector<8x16xf32>,
    %105 = vector.extract_strided_slice %96 {offsets = [0, 64], sizes = [8, 16], strides = [1, 1]} : vector<8x96xf32> to vector<8x16xf32>
    %c32_114 = arith.constant 32 : index
    %c16_115 = arith.constant 16 : index
    %106 = vector.load %arg10[%c32_114, %c16_115] : memref<48x320xf32, #tpu.memory_space<vmem>>, vector<8x16xf32>
    tpu.vector_store %arg10[%c32_114, %c16_115], %105 {strides = array<i32>} : memref<48x320xf32, #tpu.memory_space<vmem>>, vector<8x16xf32>,
    %107 = vector.extract_strided_slice %96 {offsets = [0, 80], sizes = [8, 16], strides = [1, 1]} : vector<8x96xf32> to vector<8x16xf32>
    %c40_116 = arith.constant 40 : index
    %c16_117 = arith.constant 16 : index
    %108 = vector.load %arg10[%c40_116, %c16_117] : memref<48x320xf32, #tpu.memory_space<vmem>>, vector<8x16xf32>
    tpu.vector_store %arg10[%c40_116, %c16_117], %107 {strides = array<i32>} : memref<48x320xf32, #tpu.memory_space<vmem>>, vector<8x16xf32>,
    %109 = vector.extract_strided_slice %82 {offsets = [16, 0], sizes = [8, 96], strides = [1, 1]} : vector<160x96xf32> to vector<8x96xf32>
    %110 = vector.extract_strided_slice %109 {offsets = [0, 0], sizes = [8, 16], strides = [1, 1]} : vector<8x96xf32> to vector<8x16xf32>
    %c0_118 = arith.constant 0 : index
    %c32_119 = arith.constant 32 : index
    %111 = vector.load %arg10[%c0_118, %c32_119] : memref<48x320xf32, #tpu.memory_space<vmem>>, vector<8x16xf32>
    tpu.vector_store %arg10[%c0_118, %c32_119], %110 {strides = array<i32>} : memref<48x320xf32, #tpu.memory_space<vmem>>, vector<8x16xf32>,
    %112 = vector.extract_strided_slice %109 {offsets = [0, 16], sizes = [8, 16], strides = [1, 1]} : vector<8x96xf32> to vector<8x16xf32>
    %c8_120 = arith.constant 8 : index
    %c32_121 = arith.constant 32 : index
    %113 = vector.load %arg10[%c8_120, %c32_121] : memref<48x320xf32, #tpu.memory_space<vmem>>, vector<8x16xf32>
    tpu.vector_store %arg10[%c8_120, %c32_121], %112 {strides = array<i32>} : memref<48x320xf32, #tpu.memory_space<vmem>>, vector<8x16xf32>,
    %114 = vector.extract_strided_slice %109 {offsets = [0, 32], sizes = [8, 16], strides = [1, 1]} : vector<8x96xf32> to vector<8x16xf32>
    %c16_122 = arith.constant 16 : index
    %c32_123 = arith.constant 32 : index
    %115 = vector.load %arg10[%c16_122, %c32_123] : memref<48x320xf32, #tpu.memory_space<vmem>>, vector<8x16xf32>
    tpu.vector_store %arg10[%c16_122, %c32_123], %114 {strides = array<i32>} : memref<48x320xf32, #tpu.memory_space<vmem>>, vector<8x16xf32>,
    %116 = vector.extract_strided_slice %109 {offsets = [0, 48], sizes = [8, 16], strides = [1, 1]} : vector<8x96xf32> to vector<8x16xf32>
    %c24_124 = arith.constant 24 : index
    %c32_125 = arith.constant 32 : index
    %117 = vector.load %arg10[%c24_124, %c32_125] : memref<48x320xf32, #tpu.memory_space<vmem>>, vector<8x16xf32>
    tpu.vector_store %arg10[%c24_124, %c32_125], %116 {strides = array<i32>} : memref<48x320xf32, #tpu.memory_space<vmem>>, vector<8x16xf32>,
    %118 = vector.extract_strided_slice %109 {offsets = [0, 64], sizes = [8, 16], strides = [1, 1]} : vector<8x96xf32> to vector<8x16xf32>
    %c32_126 = arith.constant 32 : index
    %c32_127 = arith.constant 32 : index
    %119 = vector.load %arg10[%c32_126, %c32_127] : memref<48x320xf32, #tpu.memory_space<vmem>>, vector<8x16xf32>
    tpu.vector_store %arg10[%c32_126, %c32_127], %118 {strides = array<i32>} : memref<48x320xf32, #tpu.memory_space<vmem>>, vector<8x16xf32>,
    %120 = vector.extract_strided_slice %109 {offsets = [0, 80], sizes = [8, 16], strides = [1, 1]} : vector<8x96xf32> to vector<8x16xf32>
    %c40_128 = arith.constant 40 : index
    %c32_129 = arith.constant 32 : index
    %121 = vector.load %arg10[%c40_128, %c32_129] : memref<48x320xf32, #tpu.memory_space<vmem>>, vector<8x16xf32>
    tpu.vector_store %arg10[%c40_128, %c32_129], %120 {strides = array<i32>} : memref<48x320xf32, #tpu.memory_space<vmem>>, vector<8x16xf32>,
    %122 = vector.extract_strided_slice %82 {offsets = [24, 0], sizes = [8, 96], strides = [1, 1]} : vector<160x96xf32> to vector<8x96xf32>
    %123 = vector.extract_strided_slice %122 {offsets = [0, 0], sizes = [8, 16], strides = [1, 1]} : vector<8x96xf32> to vector<8x16xf32>
    %c0_130 = arith.constant 0 : index
    %c48_131 = arith.constant 48 : index
    %124 = vector.load %arg10[%c0_130, %c48_131] : memref<48x320xf32, #tpu.memory_space<vmem>>, vector<8x16xf32>
    tpu.vector_store %arg10[%c0_130, %c48_131], %123 {strides = array<i32>} : memref<48x320xf32, #tpu.memory_space<vmem>>, vector<8x16xf32>,
    %125 = vector.extract_strided_slice %122 {offsets = [0, 16], sizes = [8, 16], strides = [1, 1]} : vector<8x96xf32> to vector<8x16xf32>
    %c8_132 = arith.constant 8 : index
    %c48_133 = arith.constant 48 : index
    %126 = vector.load %arg10[%c8_132, %c48_133] : memref<48x320xf32, #tpu.memory_space<vmem>>, vector<8x16xf32>
    tpu.vector_store %arg10[%c8_132, %c48_133], %125 {strides = array<i32>} : memref<48x320xf32, #tpu.memory_space<vmem>>, vector<8x16xf32>,
    %127 = vector.extract_strided_slice %122 {offsets = [0, 32], sizes = [8, 16], strides = [1, 1]} : vector<8x96xf32> to vector<8x16xf32>
    %c16_134 = arith.constant 16 : index
    %c48_135 = arith.constant 48 : index
    %128 = vector.load %arg10[%c16_134, %c48_135] : memref<48x320xf32, #tpu.memory_space<vmem>>, vector<8x16xf32>
    tpu.vector_store %arg10[%c16_134, %c48_135], %127 {strides = array<i32>} : memref<48x320xf32, #tpu.memory_space<vmem>>, vector<8x16xf32>,
    %129 = vector.extract_strided_slice %122 {offsets = [0, 48], sizes = [8, 16], strides = [1, 1]} : vector<8x96xf32> to vector<8x16xf32>
    %c24_136 = arith.constant 24 : index
    %c48_137 = arith.constant 48 : index
    %130 = vector.load %arg10[%c24_136, %c48_137] : memref<48x320xf32, #tpu.memory_space<vmem>>, vector<8x16xf32>
    tpu.vector_store %arg10[%c24_136, %c48_137], %129 {strides = array<i32>} : memref<48x320xf32, #tpu.memory_space<vmem>>, vector<8x16xf32>,
    %131 = vector.extract_strided_slice %122 {offsets = [0, 64], sizes = [8, 16], strides = [1, 1]} : vector<8x96xf32> to vector<8x16xf32>
    %c32_138 = arith.constant 32 : index
    %c48_139 = arith.constant 48 : index
    %132 = vector.load %arg10[%c32_138, %c48_139] : memref<48x320xf32, #tpu.memory_space<vmem>>, vector<8x16xf32>
    tpu.vector_store %arg10[%c32_138, %c48_139], %131 {strides = array<i32>} : memref<48x320xf32, #tpu.memory_space<vmem>>, vector<8x16xf32>,
    %133 = vector.extract_strided_slice %122 {offsets = [0, 80], sizes = [8, 16], strides = [1, 1]} : vector<8x96xf32> to vector<8x16xf32>
    %c40_140 = arith.constant 40 : index
    %c48_141 = arith.constant 48 : index
    %134 = vector.load %arg10[%c40_140, %c48_141] : memref<48x320xf32, #tpu.memory_space<vmem>>, vector<8x16xf32>
    tpu.vector_store %arg10[%c40_140, %c48_141], %133 {strides = array<i32>} : memref<48x320xf32, #tpu.memory_space<vmem>>, vector<8x16xf32>,
    %135 = vector.extract_strided_slice %82 {offsets = [32, 0], sizes = [8, 96], strides = [1, 1]} : vector<160x96xf32> to vector<8x96xf32>
    %136 = vector.extract_strided_slice %135 {offsets = [0, 0], sizes = [8, 16], strides = [1, 1]} : vector<8x96xf32> to vector<8x16xf32>
    %c0_142 = arith.constant 0 : index
    %c64_143 = arith.constant 64 : index
    %137 = vector.load %arg10[%c0_142, %c64_143] : memref<48x320xf32, #tpu.memory_space<vmem>>, vector<8x16xf32>
    tpu.vector_store %arg10[%c0_142, %c64_143], %136 {strides = array<i32>} : memref<48x320xf32, #tpu.memory_space<vmem>>, vector<8x16xf32>,
    %138 = vector.extract_strided_slice %135 {offsets = [0, 16], sizes = [8, 16], strides = [1, 1]} : vector<8x96xf32> to vector<8x16xf32>
    %c8_144 = arith.constant 8 : index
    %c64_145 = arith.constant 64 : index
    %139 = vector.load %arg10[%c8_144, %c64_145] : memref<48x320xf32, #tpu.memory_space<vmem>>, vector<8x16xf32>
    tpu.vector_store %arg10[%c8_144, %c64_145], %138 {strides = array<i32>} : memref<48x320xf32, #tpu.memory_space<vmem>>, vector<8x16xf32>,
    %140 = vector.extract_strided_slice %135 {offsets = [0, 32], sizes = [8, 16], strides = [1, 1]} : vector<8x96xf32> to vector<8x16xf32>
    %c16_146 = arith.constant 16 : index
    %c64_147 = arith.constant 64 : index
    %141 = vector.load %arg10[%c16_146, %c64_147] : memref<48x320xf32, #tpu.memory_space<vmem>>, vector<8x16xf32>
    tpu.vector_store %arg10[%c16_146, %c64_147], %140 {strides = array<i32>} : memref<48x320xf32, #tpu.memory_space<vmem>>, vector<8x16xf32>,
    %142 = vector.extract_strided_slice %135 {offsets = [0, 48], sizes = [8, 16], strides = [1, 1]} : vector<8x96xf32> to vector<8x16xf32>
    %c24_148 = arith.constant 24 : index
    %c64_149 = arith.constant 64 : index
    %143 = vector.load %arg10[%c24_148, %c64_149] : memref<48x320xf32, #tpu.memory_space<vmem>>, vector<8x16xf32>
    tpu.vector_store %arg10[%c24_148, %c64_149], %142 {strides = array<i32>} : memref<48x320xf32, #tpu.memory_space<vmem>>, vector<8x16xf32>,
    %144 = vector.extract_strided_slice %135 {offsets = [0, 64], sizes = [8, 16], strides = [1, 1]} : vector<8x96xf32> to vector<8x16xf32>
    %c32_150 = arith.constant 32 : index
    %c64_151 = arith.constant 64 : index
    %145 = vector.load %arg10[%c32_150, %c64_151] : memref<48x320xf32, #tpu.memory_space<vmem>>, vector<8x16xf32>
    tpu.vector_store %arg10[%c32_150, %c64_151], %144 {strides = array<i32>} : memref<48x320xf32, #tpu.memory_space<vmem>>, vector<8x16xf32>,
    %146 = vector.extract_strided_slice %135 {offsets = [0, 80], sizes = [8, 16], strides = [1, 1]} : vector<8x96xf32> to vector<8x16xf32>
    %c40_152 = arith.constant 40 : index
    %c64_153 = arith.constant 64 : index
    %147 = vector.load %arg10[%c40_152, %c64_153] : memref<48x320xf32, #tpu.memory_space<vmem>>, vector<8x16xf32>
    tpu.vector_store %arg10[%c40_152, %c64_153], %146 {strides = array<i32>} : memref<48x320xf32, #tpu.memory_space<vmem>>, vector<8x16xf32>,
    %148 = vector.extract_strided_slice %82 {offsets = [40, 0], sizes = [8, 96], strides = [1, 1]} : vector<160x96xf32> to vector<8x96xf32>
    %149 = vector.extract_strided_slice %148 {offsets = [0, 0], sizes = [8, 16], strides = [1, 1]} : vector<8x96xf32> to vector<8x16xf32>
    %c0_154 = arith.constant 0 : index
    %c80_155 = arith.constant 80 : index
    %150 = vector.load %arg10[%c0_154, %c80_155] : memref<48x320xf32, #tpu.memory_space<vmem>>, vector<8x16xf32>
    tpu.vector_store %arg10[%c0_154, %c80_155], %149 {strides = array<i32>} : memref<48x320xf32, #tpu.memory_space<vmem>>, vector<8x16xf32>,
    %151 = vector.extract_strided_slice %148 {offsets = [0, 16], sizes = [8, 16], strides = [1, 1]} : vector<8x96xf32> to vector<8x16xf32>
    %c8_156 = arith.constant 8 : index
    %c80_157 = arith.constant 80 : index
    %152 = vector.load %arg10[%c8_156, %c80_157] : memref<48x320xf32, #tpu.memory_space<vmem>>, vector<8x16xf32>
    tpu.vector_store %arg10[%c8_156, %c80_157], %151 {strides = array<i32>} : memref<48x320xf32, #tpu.memory_space<vmem>>, vector<8x16xf32>,
    %153 = vector.extract_strided_slice %148 {offsets = [0, 32], sizes = [8, 16], strides = [1, 1]} : vector<8x96xf32> to vector<8x16xf32>
    %c16_158 = arith.constant 16 : index
    %c80_159 = arith.constant 80 : index
    %154 = vector.load %arg10[%c16_158, %c80_159] : memref<48x320xf32, #tpu.memory_space<vmem>>, vector<8x16xf32>
    tpu.vector_store %arg10[%c16_158, %c80_159], %153 {strides = array<i32>} : memref<48x320xf32, #tpu.memory_space<vmem>>, vector<8x16xf32>,
    %155 = vector.extract_strided_slice %148 {offsets = [0, 48], sizes = [8, 16], strides = [1, 1]} : vector<8x96xf32> to vector<8x16xf32>
    %c24_160 = arith.constant 24 : index
    %c80_161 = arith.constant 80 : index
    %156 = vector.load %arg10[%c24_160, %c80_161] : memref<48x320xf32, #tpu.memory_space<vmem>>, vector<8x16xf32>
    tpu.vector_store %arg10[%c24_160, %c80_161], %155 {strides = array<i32>} : memref<48x320xf32, #tpu.memory_space<vmem>>, vector<8x16xf32>,
    %157 = vector.extract_strided_slice %148 {offsets = [0, 64], sizes = [8, 16], strides = [1, 1]} : vector<8x96xf32> to vector<8x16xf32>
    %c32_162 = arith.constant 32 : index
    %c80_163 = arith.constant 80 : index
    %158 = vector.load %arg10[%c32_162, %c80_163] : memref<48x320xf32, #tpu.memory_space<vmem>>, vector<8x16xf32>
    tpu.vector_store %arg10[%c32_162, %c80_163], %157 {strides = array<i32>} : memref<48x320xf32, #tpu.memory_space<vmem>>, vector<8x16xf32>,
    %159 = vector.extract_strided_slice %148 {offsets = [0, 80], sizes = [8, 16], strides = [1, 1]} : vector<8x96xf32> to vector<8x16xf32>
    %c40_164 = arith.constant 40 : index
    %c80_165 = arith.constant 80 : index
    %160 = vector.load %arg10[%c40_164, %c80_165] : memref<48x320xf32, #tpu.memory_space<vmem>>, vector<8x16xf32>
    tpu.vector_store %arg10[%c40_164, %c80_165], %159 {strides = array<i32>} : memref<48x320xf32, #tpu.memory_space<vmem>>, vector<8x16xf32>,
    %161 = vector.extract_strided_slice %82 {offsets = [48, 0], sizes = [8, 96], strides = [1, 1]} : vector<160x96xf32> to vector<8x96xf32>
    %162 = vector.extract_strided_slice %161 {offsets = [0, 0], sizes = [8, 16], strides = [1, 1]} : vector<8x96xf32> to vector<8x16xf32>
    %c0_166 = arith.constant 0 : index
    %c96_167 = arith.constant 96 : index
    %163 = vector.load %arg10[%c0_166, %c96_167] : memref<48x320xf32, #tpu.memory_space<vmem>>, vector<8x16xf32>
    tpu.vector_store %arg10[%c0_166, %c96_167], %162 {strides = array<i32>} : memref<48x320xf32, #tpu.memory_space<vmem>>, vector<8x16xf32>,
    %164 = vector.extract_strided_slice %161 {offsets = [0, 16], sizes = [8, 16], strides = [1, 1]} : vector<8x96xf32> to vector<8x16xf32>
    %c8_168 = arith.constant 8 : index
    %c96_169 = arith.constant 96 : index
    %165 = vector.load %arg10[%c8_168, %c96_169] : memref<48x320xf32, #tpu.memory_space<vmem>>, vector<8x16xf32>
    tpu.vector_store %arg10[%c8_168, %c96_169], %164 {strides = array<i32>} : memref<48x320xf32, #tpu.memory_space<vmem>>, vector<8x16xf32>,
    %166 = vector.extract_strided_slice %161 {offsets = [0, 32], sizes = [8, 16], strides = [1, 1]} : vector<8x96xf32> to vector<8x16xf32>
    %c16_170 = arith.constant 16 : index
    %c96_171 = arith.constant 96 : index
    %167 = vector.load %arg10[%c16_170, %c96_171] : memref<48x320xf32, #tpu.memory_space<vmem>>, vector<8x16xf32>
    tpu.vector_store %arg10[%c16_170, %c96_171], %166 {strides = array<i32>} : memref<48x320xf32, #tpu.memory_space<vmem>>, vector<8x16xf32>,
    %168 = vector.extract_strided_slice %161 {offsets = [0, 48], sizes = [8, 16], strides = [1, 1]} : vector<8x96xf32> to vector<8x16xf32>
    %c24_172 = arith.constant 24 : index
    %c96_173 = arith.constant 96 : index
    %169 = vector.load %arg10[%c24_172, %c96_173] : memref<48x320xf32, #tpu.memory_space<vmem>>, vector<8x16xf32>
    tpu.vector_store %arg10[%c24_172, %c96_173], %168 {strides = array<i32>} : memref<48x320xf32, #tpu.memory_space<vmem>>, vector<8x16xf32>,
    %170 = vector.extract_strided_slice %161 {offsets = [0, 64], sizes = [8, 16], strides = [1, 1]} : vector<8x96xf32> to vector<8x16xf32>
    %c32_174 = arith.constant 32 : index
    %c96_175 = arith.constant 96 : index
    %171 = vector.load %arg10[%c32_174, %c96_175] : memref<48x320xf32, #tpu.memory_space<vmem>>, vector<8x16xf32>
    tpu.vector_store %arg10[%c32_174, %c96_175], %170 {strides = array<i32>} : memref<48x320xf32, #tpu.memory_space<vmem>>, vector<8x16xf32>,
    %172 = vector.extract_strided_slice %161 {offsets = [0, 80], sizes = [8, 16], strides = [1, 1]} : vector<8x96xf32> to vector<8x16xf32>
    %c40_176 = arith.constant 40 : index
    %c96_177 = arith.constant 96 : index
    %173 = vector.load %arg10[%c40_176, %c96_177] : memref<48x320xf32, #tpu.memory_space<vmem>>, vector<8x16xf32>
    tpu.vector_store %arg10[%c40_176, %c96_177], %172 {strides = array<i32>} : memref<48x320xf32, #tpu.memory_space<vmem>>, vector<8x16xf32>,
    %174 = vector.extract_strided_slice %82 {offsets = [56, 0], sizes = [8, 96], strides = [1, 1]} : vector<160x96xf32> to vector<8x96xf32>
    %175 = vector.extract_strided_slice %174 {offsets = [0, 0], sizes = [8, 16], strides = [1, 1]} : vector<8x96xf32> to vector<8x16xf32>
    %c0_178 = arith.constant 0 : index
    %c112_179 = arith.constant 112 : index
    %176 = vector.load %arg10[%c0_178, %c112_179] : memref<48x320xf32, #tpu.memory_space<vmem>>, vector<8x16xf32>
    tpu.vector_store %arg10[%c0_178, %c112_179], %175 {strides = array<i32>} : memref<48x320xf32, #tpu.memory_space<vmem>>, vector<8x16xf32>,
    %177 = vector.extract_strided_slice %174 {offsets = [0, 16], sizes = [8, 16], strides = [1, 1]} : vector<8x96xf32> to vector<8x16xf32>
    %c8_180 = arith.constant 8 : index
    %c112_181 = arith.constant 112 : index
    %178 = vector.load %arg10[%c8_180, %c112_181] : memref<48x320xf32, #tpu.memory_space<vmem>>, vector<8x16xf32>
    tpu.vector_store %arg10[%c8_180, %c112_181], %177 {strides = array<i32>} : memref<48x320xf32, #tpu.memory_space<vmem>>, vector<8x16xf32>,
    %179 = vector.extract_strided_slice %174 {offsets = [0, 32], sizes = [8, 16], strides = [1, 1]} : vector<8x96xf32> to vector<8x16xf32>
    %c16_182 = arith.constant 16 : index
    %c112_183 = arith.constant 112 : index
    %180 = vector.load %arg10[%c16_182, %c112_183] : memref<48x320xf32, #tpu.memory_space<vmem>>, vector<8x16xf32>
    tpu.vector_store %arg10[%c16_182, %c112_183], %179 {strides = array<i32>} : memref<48x320xf32, #tpu.memory_space<vmem>>, vector<8x16xf32>,
    %181 = vector.extract_strided_slice %174 {offsets = [0, 48], sizes = [8, 16], strides = [1, 1]} : vector<8x96xf32> to vector<8x16xf32>
    %c24_184 = arith.constant 24 : index
    %c112_185 = arith.constant 112 : index
    %182 = vector.load %arg10[%c24_184, %c112_185] : memref<48x320xf32, #tpu.memory_space<vmem>>, vector<8x16xf32>
    tpu.vector_store %arg10[%c24_184, %c112_185], %181 {strides = array<i32>} : memref<48x320xf32, #tpu.memory_space<vmem>>, vector<8x16xf32>,
    %183 = vector.extract_strided_slice %174 {offsets = [0, 64], sizes = [8, 16], strides = [1, 1]} : vector<8x96xf32> to vector<8x16xf32>
    %c32_186 = arith.constant 32 : index
    %c112_187 = arith.constant 112 : index
    %184 = vector.load %arg10[%c32_186, %c112_187] : memref<48x320xf32, #tpu.memory_space<vmem>>, vector<8x16xf32>
    tpu.vector_store %arg10[%c32_186, %c112_187], %183 {strides = array<i32>} : memref<48x320xf32, #tpu.memory_space<vmem>>, vector<8x16xf32>,
    %185 = vector.extract_strided_slice %174 {offsets = [0, 80], sizes = [8, 16], strides = [1, 1]} : vector<8x96xf32> to vector<8x16xf32>
    %c40_188 = arith.constant 40 : index
    %c112_189 = arith.constant 112 : index
    %186 = vector.load %arg10[%c40_188, %c112_189] : memref<48x320xf32, #tpu.memory_space<vmem>>, vector<8x16xf32>
    tpu.vector_store %arg10[%c40_188, %c112_189], %185 {strides = array<i32>} : memref<48x320xf32, #tpu.memory_space<vmem>>, vector<8x16xf32>,
    %187 = vector.extract_strided_slice %82 {offsets = [64, 0], sizes = [8, 96], strides = [1, 1]} : vector<160x96xf32> to vector<8x96xf32>
    %188 = vector.extract_strided_slice %187 {offsets = [0, 0], sizes = [8, 16], strides = [1, 1]} : vector<8x96xf32> to vector<8x16xf32>
    %c0_190 = arith.constant 0 : index
    %c128_191 = arith.constant 128 : index
    %189 = vector.load %arg10[%c0_190, %c128_191] : memref<48x320xf32, #tpu.memory_space<vmem>>, vector<8x16xf32>
    tpu.vector_store %arg10[%c0_190, %c128_191], %188 {strides = array<i32>} : memref<48x320xf32, #tpu.memory_space<vmem>>, vector<8x16xf32>,
    %190 = vector.extract_strided_slice %187 {offsets = [0, 16], sizes = [8, 16], strides = [1, 1]} : vector<8x96xf32> to vector<8x16xf32>
    %c8_192 = arith.constant 8 : index
    %c128_193 = arith.constant 128 : index
    %191 = vector.load %arg10[%c8_192, %c128_193] : memref<48x320xf32, #tpu.memory_space<vmem>>, vector<8x16xf32>
    tpu.vector_store %arg10[%c8_192, %c128_193], %190 {strides = array<i32>} : memref<48x320xf32, #tpu.memory_space<vmem>>, vector<8x16xf32>,
    %192 = vector.extract_strided_slice %187 {offsets = [0, 32], sizes = [8, 16], strides = [1, 1]} : vector<8x96xf32> to vector<8x16xf32>
    %c16_194 = arith.constant 16 : index
    %c128_195 = arith.constant 128 : index
    %193 = vector.load %arg10[%c16_194, %c128_195] : memref<48x320xf32, #tpu.memory_space<vmem>>, vector<8x16xf32>
    tpu.vector_store %arg10[%c16_194, %c128_195], %192 {strides = array<i32>} : memref<48x320xf32, #tpu.memory_space<vmem>>, vector<8x16xf32>,
    %194 = vector.extract_strided_slice %187 {offsets = [0, 48], sizes = [8, 16], strides = [1, 1]} : vector<8x96xf32> to vector<8x16xf32>
    %c24_196 = arith.constant 24 : index
    %c128_197 = arith.constant 128 : index
    %195 = vector.load %arg10[%c24_196, %c128_197] : memref<48x320xf32, #tpu.memory_space<vmem>>, vector<8x16xf32>
    tpu.vector_store %arg10[%c24_196, %c128_197], %194 {strides = array<i32>} : memref<48x320xf32, #tpu.memory_space<vmem>>, vector<8x16xf32>,
    %196 = vector.extract_strided_slice %187 {offsets = [0, 64], sizes = [8, 16], strides = [1, 1]} : vector<8x96xf32> to vector<8x16xf32>
    %c32_198 = arith.constant 32 : index
    %c128_199 = arith.constant 128 : index
    %197 = vector.load %arg10[%c32_198, %c128_199] : memref<48x320xf32, #tpu.memory_space<vmem>>, vector<8x16xf32>
    tpu.vector_store %arg10[%c32_198, %c128_199], %196 {strides = array<i32>} : memref<48x320xf32, #tpu.memory_space<vmem>>, vector<8x16xf32>,
    %198 = vector.extract_strided_slice %187 {offsets = [0, 80], sizes = [8, 16], strides = [1, 1]} : vector<8x96xf32> to vector<8x16xf32>
    %c40_200 = arith.constant 40 : index
    %c128_201 = arith.constant 128 : index
    %199 = vector.load %arg10[%c40_200, %c128_201] : memref<48x320xf32, #tpu.memory_space<vmem>>, vector<8x16xf32>
    tpu.vector_store %arg10[%c40_200, %c128_201], %198 {strides = array<i32>} : memref<48x320xf32, #tpu.memory_space<vmem>>, vector<8x16xf32>,
    %200 = vector.extract_strided_slice %82 {offsets = [72, 0], sizes = [8, 96], strides = [1, 1]} : vector<160x96xf32> to vector<8x96xf32>
    %201 = vector.extract_strided_slice %200 {offsets = [0, 0], sizes = [8, 16], strides = [1, 1]} : vector<8x96xf32> to vector<8x16xf32>
    %c0_202 = arith.constant 0 : index
    %c144_203 = arith.constant 144 : index
    %202 = vector.load %arg10[%c0_202, %c144_203] : memref<48x320xf32, #tpu.memory_space<vmem>>, vector<8x16xf32>
    tpu.vector_store %arg10[%c0_202, %c144_203], %201 {strides = array<i32>} : memref<48x320xf32, #tpu.memory_space<vmem>>, vector<8x16xf32>,
    %203 = vector.extract_strided_slice %200 {offsets = [0, 16], sizes = [8, 16], strides = [1, 1]} : vector<8x96xf32> to vector<8x16xf32>
    %c8_204 = arith.constant 8 : index
    %c144_205 = arith.constant 144 : index
    %204 = vector.load %arg10[%c8_204, %c144_205] : memref<48x320xf32, #tpu.memory_space<vmem>>, vector<8x16xf32>
    tpu.vector_store %arg10[%c8_204, %c144_205], %203 {strides = array<i32>} : memref<48x320xf32, #tpu.memory_space<vmem>>, vector<8x16xf32>,
    %205 = vector.extract_strided_slice %200 {offsets = [0, 32], sizes = [8, 16], strides = [1, 1]} : vector<8x96xf32> to vector<8x16xf32>
    %c16_206 = arith.constant 16 : index
    %c144_207 = arith.constant 144 : index
    %206 = vector.load %arg10[%c16_206, %c144_207] : memref<48x320xf32, #tpu.memory_space<vmem>>, vector<8x16xf32>
    tpu.vector_store %arg10[%c16_206, %c144_207], %205 {strides = array<i32>} : memref<48x320xf32, #tpu.memory_space<vmem>>, vector<8x16xf32>,
    %207 = vector.extract_strided_slice %200 {offsets = [0, 48], sizes = [8, 16], strides = [1, 1]} : vector<8x96xf32> to vector<8x16xf32>
    %c24_208 = arith.constant 24 : index
    %c144_209 = arith.constant 144 : index
    %208 = vector.load %arg10[%c24_208, %c144_209] : memref<48x320xf32, #tpu.memory_space<vmem>>, vector<8x16xf32>
    tpu.vector_store %arg10[%c24_208, %c144_209], %207 {strides = array<i32>} : memref<48x320xf32, #tpu.memory_space<vmem>>, vector<8x16xf32>,
    %209 = vector.extract_strided_slice %200 {offsets = [0, 64], sizes = [8, 16], strides = [1, 1]} : vector<8x96xf32> to vector<8x16xf32>
    %c32_210 = arith.constant 32 : index
    %c144_211 = arith.constant 144 : index
    %210 = vector.load %arg10[%c32_210, %c144_211] : memref<48x320xf32, #tpu.memory_space<vmem>>, vector<8x16xf32>
    tpu.vector_store %arg10[%c32_210, %c144_211], %209 {strides = array<i32>} : memref<48x320xf32, #tpu.memory_space<vmem>>, vector<8x16xf32>,
    %211 = vector.extract_strided_slice %200 {offsets = [0, 80], sizes = [8, 16], strides = [1, 1]} : vector<8x96xf32> to vector<8x16xf32>
    %c40_212 = arith.constant 40 : index
    %c144_213 = arith.constant 144 : index
    %212 = vector.load %arg10[%c40_212, %c144_213] : memref<48x320xf32, #tpu.memory_space<vmem>>, vector<8x16xf32>
    tpu.vector_store %arg10[%c40_212, %c144_213], %211 {strides = array<i32>} : memref<48x320xf32, #tpu.memory_space<vmem>>, vector<8x16xf32>,
    %213 = vector.extract_strided_slice %82 {offsets = [80, 0], sizes = [8, 96], strides = [1, 1]} : vector<160x96xf32> to vector<8x96xf32>
    %214 = vector.extract_strided_slice %213 {offsets = [0, 0], sizes = [8, 16], strides = [1, 1]} : vector<8x96xf32> to vector<8x16xf32>
    %c0_214 = arith.constant 0 : index
    %c160 = arith.constant 160 : index
    %215 = vector.load %arg10[%c0_214, %c160] : memref<48x320xf32, #tpu.memory_space<vmem>>, vector<8x16xf32>
    tpu.vector_store %arg10[%c0_214, %c160], %214 {strides = array<i32>} : memref<48x320xf32, #tpu.memory_space<vmem>>, vector<8x16xf32>,
    %216 = vector.extract_strided_slice %213 {offsets = [0, 16], sizes = [8, 16], strides = [1, 1]} : vector<8x96xf32> to vector<8x16xf32>
    %c8_215 = arith.constant 8 : index
    %c160_216 = arith.constant 160 : index
    %217 = vector.load %arg10[%c8_215, %c160_216] : memref<48x320xf32, #tpu.memory_space<vmem>>, vector<8x16xf32>
    tpu.vector_store %arg10[%c8_215, %c160_216], %216 {strides = array<i32>} : memref<48x320xf32, #tpu.memory_space<vmem>>, vector<8x16xf32>,
    %218 = vector.extract_strided_slice %213 {offsets = [0, 32], sizes = [8, 16], strides = [1, 1]} : vector<8x96xf32> to vector<8x16xf32>
    %c16_217 = arith.constant 16 : index
    %c160_218 = arith.constant 160 : index
    %219 = vector.load %arg10[%c16_217, %c160_218] : memref<48x320xf32, #tpu.memory_space<vmem>>, vector<8x16xf32>
    tpu.vector_store %arg10[%c16_217, %c160_218], %218 {strides = array<i32>} : memref<48x320xf32, #tpu.memory_space<vmem>>, vector<8x16xf32>,
    %220 = vector.extract_strided_slice %213 {offsets = [0, 48], sizes = [8, 16], strides = [1, 1]} : vector<8x96xf32> to vector<8x16xf32>
    %c24_219 = arith.constant 24 : index
    %c160_220 = arith.constant 160 : index
    %221 = vector.load %arg10[%c24_219, %c160_220] : memref<48x320xf32, #tpu.memory_space<vmem>>, vector<8x16xf32>
    tpu.vector_store %arg10[%c24_219, %c160_220], %220 {strides = array<i32>} : memref<48x320xf32, #tpu.memory_space<vmem>>, vector<8x16xf32>,
    %222 = vector.extract_strided_slice %213 {offsets = [0, 64], sizes = [8, 16], strides = [1, 1]} : vector<8x96xf32> to vector<8x16xf32>
    %c32_221 = arith.constant 32 : index
    %c160_222 = arith.constant 160 : index
    %223 = vector.load %arg10[%c32_221, %c160_222] : memref<48x320xf32, #tpu.memory_space<vmem>>, vector<8x16xf32>
    tpu.vector_store %arg10[%c32_221, %c160_222], %222 {strides = array<i32>} : memref<48x320xf32, #tpu.memory_space<vmem>>, vector<8x16xf32>,
    %224 = vector.extract_strided_slice %213 {offsets = [0, 80], sizes = [8, 16], strides = [1, 1]} : vector<8x96xf32> to vector<8x16xf32>
    %c40_223 = arith.constant 40 : index
    %c160_224 = arith.constant 160 : index
    %225 = vector.load %arg10[%c40_223, %c160_224] : memref<48x320xf32, #tpu.memory_space<vmem>>, vector<8x16xf32>
    tpu.vector_store %arg10[%c40_223, %c160_224], %224 {strides = array<i32>} : memref<48x320xf32, #tpu.memory_space<vmem>>, vector<8x16xf32>,
    %226 = vector.extract_strided_slice %82 {offsets = [88, 0], sizes = [8, 96], strides = [1, 1]} : vector<160x96xf32> to vector<8x96xf32>
    %227 = vector.extract_strided_slice %226 {offsets = [0, 0], sizes = [8, 16], strides = [1, 1]} : vector<8x96xf32> to vector<8x16xf32>
    %c0_225 = arith.constant 0 : index
    %c176 = arith.constant 176 : index
    %228 = vector.load %arg10[%c0_225, %c176] : memref<48x320xf32, #tpu.memory_space<vmem>>, vector<8x16xf32>
    tpu.vector_store %arg10[%c0_225, %c176], %227 {strides = array<i32>} : memref<48x320xf32, #tpu.memory_space<vmem>>, vector<8x16xf32>,
    %229 = vector.extract_strided_slice %226 {offsets = [0, 16], sizes = [8, 16], strides = [1, 1]} : vector<8x96xf32> to vector<8x16xf32>
    %c8_226 = arith.constant 8 : index
    %c176_227 = arith.constant 176 : index
    %230 = vector.load %arg10[%c8_226, %c176_227] : memref<48x320xf32, #tpu.memory_space<vmem>>, vector<8x16xf32>
    tpu.vector_store %arg10[%c8_226, %c176_227], %229 {strides = array<i32>} : memref<48x320xf32, #tpu.memory_space<vmem>>, vector<8x16xf32>,
    %231 = vector.extract_strided_slice %226 {offsets = [0, 32], sizes = [8, 16], strides = [1, 1]} : vector<8x96xf32> to vector<8x16xf32>
    %c16_228 = arith.constant 16 : index
    %c176_229 = arith.constant 176 : index
    %232 = vector.load %arg10[%c16_228, %c176_229] : memref<48x320xf32, #tpu.memory_space<vmem>>, vector<8x16xf32>
    tpu.vector_store %arg10[%c16_228, %c176_229], %231 {strides = array<i32>} : memref<48x320xf32, #tpu.memory_space<vmem>>, vector<8x16xf32>,
    %233 = vector.extract_strided_slice %226 {offsets = [0, 48], sizes = [8, 16], strides = [1, 1]} : vector<8x96xf32> to vector<8x16xf32>
    %c24_230 = arith.constant 24 : index
    %c176_231 = arith.constant 176 : index
    %234 = vector.load %arg10[%c24_230, %c176_231] : memref<48x320xf32, #tpu.memory_space<vmem>>, vector<8x16xf32>
    tpu.vector_store %arg10[%c24_230, %c176_231], %233 {strides = array<i32>} : memref<48x320xf32, #tpu.memory_space<vmem>>, vector<8x16xf32>,
    %235 = vector.extract_strided_slice %226 {offsets = [0, 64], sizes = [8, 16], strides = [1, 1]} : vector<8x96xf32> to vector<8x16xf32>
    %c32_232 = arith.constant 32 : index
    %c176_233 = arith.constant 176 : index
    %236 = vector.load %arg10[%c32_232, %c176_233] : memref<48x320xf32, #tpu.memory_space<vmem>>, vector<8x16xf32>
    tpu.vector_store %arg10[%c32_232, %c176_233], %235 {strides = array<i32>} : memref<48x320xf32, #tpu.memory_space<vmem>>, vector<8x16xf32>,
    %237 = vector.extract_strided_slice %226 {offsets = [0, 80], sizes = [8, 16], strides = [1, 1]} : vector<8x96xf32> to vector<8x16xf32>
    %c40_234 = arith.constant 40 : index
    %c176_235 = arith.constant 176 : index
    %238 = vector.load %arg10[%c40_234, %c176_235] : memref<48x320xf32, #tpu.memory_space<vmem>>, vector<8x16xf32>
    tpu.vector_store %arg10[%c40_234, %c176_235], %237 {strides = array<i32>} : memref<48x320xf32, #tpu.memory_space<vmem>>, vector<8x16xf32>,
    %239 = vector.extract_strided_slice %82 {offsets = [96, 0], sizes = [8, 96], strides = [1, 1]} : vector<160x96xf32> to vector<8x96xf32>
    %240 = vector.extract_strided_slice %239 {offsets = [0, 0], sizes = [8, 16], strides = [1, 1]} : vector<8x96xf32> to vector<8x16xf32>
    %c0_236 = arith.constant 0 : index
    %c192 = arith.constant 192 : index
    %241 = vector.load %arg10[%c0_236, %c192] : memref<48x320xf32, #tpu.memory_space<vmem>>, vector<8x16xf32>
    tpu.vector_store %arg10[%c0_236, %c192], %240 {strides = array<i32>} : memref<48x320xf32, #tpu.memory_space<vmem>>, vector<8x16xf32>,
    %242 = vector.extract_strided_slice %239 {offsets = [0, 16], sizes = [8, 16], strides = [1, 1]} : vector<8x96xf32> to vector<8x16xf32>
    %c8_237 = arith.constant 8 : index
    %c192_238 = arith.constant 192 : index
    %243 = vector.load %arg10[%c8_237, %c192_238] : memref<48x320xf32, #tpu.memory_space<vmem>>, vector<8x16xf32>
    tpu.vector_store %arg10[%c8_237, %c192_238], %242 {strides = array<i32>} : memref<48x320xf32, #tpu.memory_space<vmem>>, vector<8x16xf32>,
    %244 = vector.extract_strided_slice %239 {offsets = [0, 32], sizes = [8, 16], strides = [1, 1]} : vector<8x96xf32> to vector<8x16xf32>
    %c16_239 = arith.constant 16 : index
    %c192_240 = arith.constant 192 : index
    %245 = vector.load %arg10[%c16_239, %c192_240] : memref<48x320xf32, #tpu.memory_space<vmem>>, vector<8x16xf32>
    tpu.vector_store %arg10[%c16_239, %c192_240], %244 {strides = array<i32>} : memref<48x320xf32, #tpu.memory_space<vmem>>, vector<8x16xf32>,
    %246 = vector.extract_strided_slice %239 {offsets = [0, 48], sizes = [8, 16], strides = [1, 1]} : vector<8x96xf32> to vector<8x16xf32>
    %c24_241 = arith.constant 24 : index
    %c192_242 = arith.constant 192 : index
    %247 = vector.load %arg10[%c24_241, %c192_242] : memref<48x320xf32, #tpu.memory_space<vmem>>, vector<8x16xf32>
    tpu.vector_store %arg10[%c24_241, %c192_242], %246 {strides = array<i32>} : memref<48x320xf32, #tpu.memory_space<vmem>>, vector<8x16xf32>,
    %248 = vector.extract_strided_slice %239 {offsets = [0, 64], sizes = [8, 16], strides = [1, 1]} : vector<8x96xf32> to vector<8x16xf32>
    %c32_243 = arith.constant 32 : index
    %c192_244 = arith.constant 192 : index
    %249 = vector.load %arg10[%c32_243, %c192_244] : memref<48x320xf32, #tpu.memory_space<vmem>>, vector<8x16xf32>
    tpu.vector_store %arg10[%c32_243, %c192_244], %248 {strides = array<i32>} : memref<48x320xf32, #tpu.memory_space<vmem>>, vector<8x16xf32>,
    %250 = vector.extract_strided_slice %239 {offsets = [0, 80], sizes = [8, 16], strides = [1, 1]} : vector<8x96xf32> to vector<8x16xf32>
    %c40_245 = arith.constant 40 : index
    %c192_246 = arith.constant 192 : index
    %251 = vector.load %arg10[%c40_245, %c192_246] : memref<48x320xf32, #tpu.memory_space<vmem>>, vector<8x16xf32>
    tpu.vector_store %arg10[%c40_245, %c192_246], %250 {strides = array<i32>} : memref<48x320xf32, #tpu.memory_space<vmem>>, vector<8x16xf32>,
    %252 = vector.extract_strided_slice %82 {offsets = [104, 0], sizes = [8, 96], strides = [1, 1]} : vector<160x96xf32> to vector<8x96xf32>
    %253 = vector.extract_strided_slice %252 {offsets = [0, 0], sizes = [8, 16], strides = [1, 1]} : vector<8x96xf32> to vector<8x16xf32>
    %c0_247 = arith.constant 0 : index
    %c208 = arith.constant 208 : index
    %254 = vector.load %arg10[%c0_247, %c208] : memref<48x320xf32, #tpu.memory_space<vmem>>, vector<8x16xf32>
    tpu.vector_store %arg10[%c0_247, %c208], %253 {strides = array<i32>} : memref<48x320xf32, #tpu.memory_space<vmem>>, vector<8x16xf32>,
    %255 = vector.extract_strided_slice %252 {offsets = [0, 16], sizes = [8, 16], strides = [1, 1]} : vector<8x96xf32> to vector<8x16xf32>
    %c8_248 = arith.constant 8 : index
    %c208_249 = arith.constant 208 : index
    %256 = vector.load %arg10[%c8_248, %c208_249] : memref<48x320xf32, #tpu.memory_space<vmem>>, vector<8x16xf32>
    tpu.vector_store %arg10[%c8_248, %c208_249], %255 {strides = array<i32>} : memref<48x320xf32, #tpu.memory_space<vmem>>, vector<8x16xf32>,
    %257 = vector.extract_strided_slice %252 {offsets = [0, 32], sizes = [8, 16], strides = [1, 1]} : vector<8x96xf32> to vector<8x16xf32>
    %c16_250 = arith.constant 16 : index
    %c208_251 = arith.constant 208 : index
    %258 = vector.load %arg10[%c16_250, %c208_251] : memref<48x320xf32, #tpu.memory_space<vmem>>, vector<8x16xf32>
    tpu.vector_store %arg10[%c16_250, %c208_251], %257 {strides = array<i32>} : memref<48x320xf32, #tpu.memory_space<vmem>>, vector<8x16xf32>,
    %259 = vector.extract_strided_slice %252 {offsets = [0, 48], sizes = [8, 16], strides = [1, 1]} : vector<8x96xf32> to vector<8x16xf32>
    %c24_252 = arith.constant 24 : index
    %c208_253 = arith.constant 208 : index
    %260 = vector.load %arg10[%c24_252, %c208_253] : memref<48x320xf32, #tpu.memory_space<vmem>>, vector<8x16xf32>
    tpu.vector_store %arg10[%c24_252, %c208_253], %259 {strides = array<i32>} : memref<48x320xf32, #tpu.memory_space<vmem>>, vector<8x16xf32>,
    %261 = vector.extract_strided_slice %252 {offsets = [0, 64], sizes = [8, 16], strides = [1, 1]} : vector<8x96xf32> to vector<8x16xf32>
    %c32_254 = arith.constant 32 : index
    %c208_255 = arith.constant 208 : index
    %262 = vector.load %arg10[%c32_254, %c208_255] : memref<48x320xf32, #tpu.memory_space<vmem>>, vector<8x16xf32>
    tpu.vector_store %arg10[%c32_254, %c208_255], %261 {strides = array<i32>} : memref<48x320xf32, #tpu.memory_space<vmem>>, vector<8x16xf32>,
    %263 = vector.extract_strided_slice %252 {offsets = [0, 80], sizes = [8, 16], strides = [1, 1]} : vector<8x96xf32> to vector<8x16xf32>
    %c40_256 = arith.constant 40 : index
    %c208_257 = arith.constant 208 : index
    %264 = vector.load %arg10[%c40_256, %c208_257] : memref<48x320xf32, #tpu.memory_space<vmem>>, vector<8x16xf32>
    tpu.vector_store %arg10[%c40_256, %c208_257], %263 {strides = array<i32>} : memref<48x320xf32, #tpu.memory_space<vmem>>, vector<8x16xf32>,
    %265 = vector.extract_strided_slice %82 {offsets = [112, 0], sizes = [8, 96], strides = [1, 1]} : vector<160x96xf32> to vector<8x96xf32>
    %266 = vector.extract_strided_slice %265 {offsets = [0, 0], sizes = [8, 16], strides = [1, 1]} : vector<8x96xf32> to vector<8x16xf32>
    %c0_258 = arith.constant 0 : index
    %c224 = arith.constant 224 : index
    %267 = vector.load %arg10[%c0_258, %c224] : memref<48x320xf32, #tpu.memory_space<vmem>>, vector<8x16xf32>
    tpu.vector_store %arg10[%c0_258, %c224], %266 {strides = array<i32>} : memref<48x320xf32, #tpu.memory_space<vmem>>, vector<8x16xf32>,
    %268 = vector.extract_strided_slice %265 {offsets = [0, 16], sizes = [8, 16], strides = [1, 1]} : vector<8x96xf32> to vector<8x16xf32>
    %c8_259 = arith.constant 8 : index
    %c224_260 = arith.constant 224 : index
    %269 = vector.load %arg10[%c8_259, %c224_260] : memref<48x320xf32, #tpu.memory_space<vmem>>, vector<8x16xf32>
    tpu.vector_store %arg10[%c8_259, %c224_260], %268 {strides = array<i32>} : memref<48x320xf32, #tpu.memory_space<vmem>>, vector<8x16xf32>,
    %270 = vector.extract_strided_slice %265 {offsets = [0, 32], sizes = [8, 16], strides = [1, 1]} : vector<8x96xf32> to vector<8x16xf32>
    %c16_261 = arith.constant 16 : index
    %c224_262 = arith.constant 224 : index
    %271 = vector.load %arg10[%c16_261, %c224_262] : memref<48x320xf32, #tpu.memory_space<vmem>>, vector<8x16xf32>
    tpu.vector_store %arg10[%c16_261, %c224_262], %270 {strides = array<i32>} : memref<48x320xf32, #tpu.memory_space<vmem>>, vector<8x16xf32>,
    %272 = vector.extract_strided_slice %265 {offsets = [0, 48], sizes = [8, 16], strides = [1, 1]} : vector<8x96xf32> to vector<8x16xf32>
    %c24_263 = arith.constant 24 : index
    %c224_264 = arith.constant 224 : index
    %273 = vector.load %arg10[%c24_263, %c224_264] : memref<48x320xf32, #tpu.memory_space<vmem>>, vector<8x16xf32>
    tpu.vector_store %arg10[%c24_263, %c224_264], %272 {strides = array<i32>} : memref<48x320xf32, #tpu.memory_space<vmem>>, vector<8x16xf32>,
    %274 = vector.extract_strided_slice %265 {offsets = [0, 64], sizes = [8, 16], strides = [1, 1]} : vector<8x96xf32> to vector<8x16xf32>
    %c32_265 = arith.constant 32 : index
    %c224_266 = arith.constant 224 : index
    %275 = vector.load %arg10[%c32_265, %c224_266] : memref<48x320xf32, #tpu.memory_space<vmem>>, vector<8x16xf32>
    tpu.vector_store %arg10[%c32_265, %c224_266], %274 {strides = array<i32>} : memref<48x320xf32, #tpu.memory_space<vmem>>, vector<8x16xf32>,
    %276 = vector.extract_strided_slice %265 {offsets = [0, 80], sizes = [8, 16], strides = [1, 1]} : vector<8x96xf32> to vector<8x16xf32>
    %c40_267 = arith.constant 40 : index
    %c224_268 = arith.constant 224 : index
    %277 = vector.load %arg10[%c40_267, %c224_268] : memref<48x320xf32, #tpu.memory_space<vmem>>, vector<8x16xf32>
    tpu.vector_store %arg10[%c40_267, %c224_268], %276 {strides = array<i32>} : memref<48x320xf32, #tpu.memory_space<vmem>>, vector<8x16xf32>,
    %278 = vector.extract_strided_slice %82 {offsets = [120, 0], sizes = [8, 96], strides = [1, 1]} : vector<160x96xf32> to vector<8x96xf32>
    %279 = vector.extract_strided_slice %278 {offsets = [0, 0], sizes = [8, 16], strides = [1, 1]} : vector<8x96xf32> to vector<8x16xf32>
    %c0_269 = arith.constant 0 : index
    %c240 = arith.constant 240 : index
    %280 = vector.load %arg10[%c0_269, %c240] : memref<48x320xf32, #tpu.memory_space<vmem>>, vector<8x16xf32>
    tpu.vector_store %arg10[%c0_269, %c240], %279 {strides = array<i32>} : memref<48x320xf32, #tpu.memory_space<vmem>>, vector<8x16xf32>,
    %281 = vector.extract_strided_slice %278 {offsets = [0, 16], sizes = [8, 16], strides = [1, 1]} : vector<8x96xf32> to vector<8x16xf32>
    %c8_270 = arith.constant 8 : index
    %c240_271 = arith.constant 240 : index
    %282 = vector.load %arg10[%c8_270, %c240_271] : memref<48x320xf32, #tpu.memory_space<vmem>>, vector<8x16xf32>
    tpu.vector_store %arg10[%c8_270, %c240_271], %281 {strides = array<i32>} : memref<48x320xf32, #tpu.memory_space<vmem>>, vector<8x16xf32>,
    %283 = vector.extract_strided_slice %278 {offsets = [0, 32], sizes = [8, 16], strides = [1, 1]} : vector<8x96xf32> to vector<8x16xf32>
    %c16_272 = arith.constant 16 : index
    %c240_273 = arith.constant 240 : index
    %284 = vector.load %arg10[%c16_272, %c240_273] : memref<48x320xf32, #tpu.memory_space<vmem>>, vector<8x16xf32>
    tpu.vector_store %arg10[%c16_272, %c240_273], %283 {strides = array<i32>} : memref<48x320xf32, #tpu.memory_space<vmem>>, vector<8x16xf32>,
    %285 = vector.extract_strided_slice %278 {offsets = [0, 48], sizes = [8, 16], strides = [1, 1]} : vector<8x96xf32> to vector<8x16xf32>
    %c24_274 = arith.constant 24 : index
    %c240_275 = arith.constant 240 : index
    %286 = vector.load %arg10[%c24_274, %c240_275] : memref<48x320xf32, #tpu.memory_space<vmem>>, vector<8x16xf32>
    tpu.vector_store %arg10[%c24_274, %c240_275], %285 {strides = array<i32>} : memref<48x320xf32, #tpu.memory_space<vmem>>, vector<8x16xf32>,
    %287 = vector.extract_strided_slice %278 {offsets = [0, 64], sizes = [8, 16], strides = [1, 1]} : vector<8x96xf32> to vector<8x16xf32>
    %c32_276 = arith.constant 32 : index
    %c240_277 = arith.constant 240 : index
    %288 = vector.load %arg10[%c32_276, %c240_277] : memref<48x320xf32, #tpu.memory_space<vmem>>, vector<8x16xf32>
    tpu.vector_store %arg10[%c32_276, %c240_277], %287 {strides = array<i32>} : memref<48x320xf32, #tpu.memory_space<vmem>>, vector<8x16xf32>,
    %289 = vector.extract_strided_slice %278 {offsets = [0, 80], sizes = [8, 16], strides = [1, 1]} : vector<8x96xf32> to vector<8x16xf32>
    %c40_278 = arith.constant 40 : index
    %c240_279 = arith.constant 240 : index
    %290 = vector.load %arg10[%c40_278, %c240_279] : memref<48x320xf32, #tpu.memory_space<vmem>>, vector<8x16xf32>
    tpu.vector_store %arg10[%c40_278, %c240_279], %289 {strides = array<i32>} : memref<48x320xf32, #tpu.memory_space<vmem>>, vector<8x16xf32>,
    %291 = vector.extract_strided_slice %82 {offsets = [128, 0], sizes = [8, 96], strides = [1, 1]} : vector<160x96xf32> to vector<8x96xf32>
    %292 = vector.extract_strided_slice %291 {offsets = [0, 0], sizes = [8, 16], strides = [1, 1]} : vector<8x96xf32> to vector<8x16xf32>
    %c0_280 = arith.constant 0 : index
    %c256 = arith.constant 256 : index
    %293 = vector.load %arg10[%c0_280, %c256] : memref<48x320xf32, #tpu.memory_space<vmem>>, vector<8x16xf32>
    tpu.vector_store %arg10[%c0_280, %c256], %292 {strides = array<i32>} : memref<48x320xf32, #tpu.memory_space<vmem>>, vector<8x16xf32>,
    %294 = vector.extract_strided_slice %291 {offsets = [0, 16], sizes = [8, 16], strides = [1, 1]} : vector<8x96xf32> to vector<8x16xf32>
    %c8_281 = arith.constant 8 : index
    %c256_282 = arith.constant 256 : index
    %295 = vector.load %arg10[%c8_281, %c256_282] : memref<48x320xf32, #tpu.memory_space<vmem>>, vector<8x16xf32>
    tpu.vector_store %arg10[%c8_281, %c256_282], %294 {strides = array<i32>} : memref<48x320xf32, #tpu.memory_space<vmem>>, vector<8x16xf32>,
    %296 = vector.extract_strided_slice %291 {offsets = [0, 32], sizes = [8, 16], strides = [1, 1]} : vector<8x96xf32> to vector<8x16xf32>
    %c16_283 = arith.constant 16 : index
    %c256_284 = arith.constant 256 : index
    %297 = vector.load %arg10[%c16_283, %c256_284] : memref<48x320xf32, #tpu.memory_space<vmem>>, vector<8x16xf32>
    tpu.vector_store %arg10[%c16_283, %c256_284], %296 {strides = array<i32>} : memref<48x320xf32, #tpu.memory_space<vmem>>, vector<8x16xf32>,
    %298 = vector.extract_strided_slice %291 {offsets = [0, 48], sizes = [8, 16], strides = [1, 1]} : vector<8x96xf32> to vector<8x16xf32>
    %c24_285 = arith.constant 24 : index
    %c256_286 = arith.constant 256 : index
    %299 = vector.load %arg10[%c24_285, %c256_286] : memref<48x320xf32, #tpu.memory_space<vmem>>, vector<8x16xf32>
    tpu.vector_store %arg10[%c24_285, %c256_286], %298 {strides = array<i32>} : memref<48x320xf32, #tpu.memory_space<vmem>>, vector<8x16xf32>,
    %300 = vector.extract_strided_slice %291 {offsets = [0, 64], sizes = [8, 16], strides = [1, 1]} : vector<8x96xf32> to vector<8x16xf32>
    %c32_287 = arith.constant 32 : index
    %c256_288 = arith.constant 256 : index
    %301 = vector.load %arg10[%c32_287, %c256_288] : memref<48x320xf32, #tpu.memory_space<vmem>>, vector<8x16xf32>
    tpu.vector_store %arg10[%c32_287, %c256_288], %300 {strides = array<i32>} : memref<48x320xf32, #tpu.memory_space<vmem>>, vector<8x16xf32>,
    %302 = vector.extract_strided_slice %291 {offsets = [0, 80], sizes = [8, 16], strides = [1, 1]} : vector<8x96xf32> to vector<8x16xf32>
    %c40_289 = arith.constant 40 : index
    %c256_290 = arith.constant 256 : index
    %303 = vector.load %arg10[%c40_289, %c256_290] : memref<48x320xf32, #tpu.memory_space<vmem>>, vector<8x16xf32>
    tpu.vector_store %arg10[%c40_289, %c256_290], %302 {strides = array<i32>} : memref<48x320xf32, #tpu.memory_space<vmem>>, vector<8x16xf32>,
    %304 = vector.extract_strided_slice %82 {offsets = [136, 0], sizes = [8, 96], strides = [1, 1]} : vector<160x96xf32> to vector<8x96xf32>
    %305 = vector.extract_strided_slice %304 {offsets = [0, 0], sizes = [8, 16], strides = [1, 1]} : vector<8x96xf32> to vector<8x16xf32>
    %c0_291 = arith.constant 0 : index
    %c272 = arith.constant 272 : index
    %306 = vector.load %arg10[%c0_291, %c272] : memref<48x320xf32, #tpu.memory_space<vmem>>, vector<8x16xf32>
    tpu.vector_store %arg10[%c0_291, %c272], %305 {strides = array<i32>} : memref<48x320xf32, #tpu.memory_space<vmem>>, vector<8x16xf32>,
    %307 = vector.extract_strided_slice %304 {offsets = [0, 16], sizes = [8, 16], strides = [1, 1]} : vector<8x96xf32> to vector<8x16xf32>
    %c8_292 = arith.constant 8 : index
    %c272_293 = arith.constant 272 : index
    %308 = vector.load %arg10[%c8_292, %c272_293] : memref<48x320xf32, #tpu.memory_space<vmem>>, vector<8x16xf32>
    tpu.vector_store %arg10[%c8_292, %c272_293], %307 {strides = array<i32>} : memref<48x320xf32, #tpu.memory_space<vmem>>, vector<8x16xf32>,
    %309 = vector.extract_strided_slice %304 {offsets = [0, 32], sizes = [8, 16], strides = [1, 1]} : vector<8x96xf32> to vector<8x16xf32>
    %c16_294 = arith.constant 16 : index
    %c272_295 = arith.constant 272 : index
    %310 = vector.load %arg10[%c16_294, %c272_295] : memref<48x320xf32, #tpu.memory_space<vmem>>, vector<8x16xf32>
    tpu.vector_store %arg10[%c16_294, %c272_295], %309 {strides = array<i32>} : memref<48x320xf32, #tpu.memory_space<vmem>>, vector<8x16xf32>,
    %311 = vector.extract_strided_slice %304 {offsets = [0, 48], sizes = [8, 16], strides = [1, 1]} : vector<8x96xf32> to vector<8x16xf32>
    %c24_296 = arith.constant 24 : index
    %c272_297 = arith.constant 272 : index
    %312 = vector.load %arg10[%c24_296, %c272_297] : memref<48x320xf32, #tpu.memory_space<vmem>>, vector<8x16xf32>
    tpu.vector_store %arg10[%c24_296, %c272_297], %311 {strides = array<i32>} : memref<48x320xf32, #tpu.memory_space<vmem>>, vector<8x16xf32>,
    %313 = vector.extract_strided_slice %304 {offsets = [0, 64], sizes = [8, 16], strides = [1, 1]} : vector<8x96xf32> to vector<8x16xf32>
    %c32_298 = arith.constant 32 : index
    %c272_299 = arith.constant 272 : index
    %314 = vector.load %arg10[%c32_298, %c272_299] : memref<48x320xf32, #tpu.memory_space<vmem>>, vector<8x16xf32>
    tpu.vector_store %arg10[%c32_298, %c272_299], %313 {strides = array<i32>} : memref<48x320xf32, #tpu.memory_space<vmem>>, vector<8x16xf32>,
    %315 = vector.extract_strided_slice %304 {offsets = [0, 80], sizes = [8, 16], strides = [1, 1]} : vector<8x96xf32> to vector<8x16xf32>
    %c40_300 = arith.constant 40 : index
    %c272_301 = arith.constant 272 : index
    %316 = vector.load %arg10[%c40_300, %c272_301] : memref<48x320xf32, #tpu.memory_space<vmem>>, vector<8x16xf32>
    tpu.vector_store %arg10[%c40_300, %c272_301], %315 {strides = array<i32>} : memref<48x320xf32, #tpu.memory_space<vmem>>, vector<8x16xf32>,
    %317 = vector.extract_strided_slice %82 {offsets = [144, 0], sizes = [8, 96], strides = [1, 1]} : vector<160x96xf32> to vector<8x96xf32>
    %318 = vector.extract_strided_slice %317 {offsets = [0, 0], sizes = [8, 16], strides = [1, 1]} : vector<8x96xf32> to vector<8x16xf32>
    %c0_302 = arith.constant 0 : index
    %c288 = arith.constant 288 : index
    %319 = vector.load %arg10[%c0_302, %c288] : memref<48x320xf32, #tpu.memory_space<vmem>>, vector<8x16xf32>
    tpu.vector_store %arg10[%c0_302, %c288], %318 {strides = array<i32>} : memref<48x320xf32, #tpu.memory_space<vmem>>, vector<8x16xf32>,
    %320 = vector.extract_strided_slice %317 {offsets = [0, 16], sizes = [8, 16], strides = [1, 1]} : vector<8x96xf32> to vector<8x16xf32>
    %c8_303 = arith.constant 8 : index
    %c288_304 = arith.constant 288 : index
    %321 = vector.load %arg10[%c8_303, %c288_304] : memref<48x320xf32, #tpu.memory_space<vmem>>, vector<8x16xf32>
    tpu.vector_store %arg10[%c8_303, %c288_304], %320 {strides = array<i32>} : memref<48x320xf32, #tpu.memory_space<vmem>>, vector<8x16xf32>,
    %322 = vector.extract_strided_slice %317 {offsets = [0, 32], sizes = [8, 16], strides = [1, 1]} : vector<8x96xf32> to vector<8x16xf32>
    %c16_305 = arith.constant 16 : index
    %c288_306 = arith.constant 288 : index
    %323 = vector.load %arg10[%c16_305, %c288_306] : memref<48x320xf32, #tpu.memory_space<vmem>>, vector<8x16xf32>
    tpu.vector_store %arg10[%c16_305, %c288_306], %322 {strides = array<i32>} : memref<48x320xf32, #tpu.memory_space<vmem>>, vector<8x16xf32>,
    %324 = vector.extract_strided_slice %317 {offsets = [0, 48], sizes = [8, 16], strides = [1, 1]} : vector<8x96xf32> to vector<8x16xf32>
    %c24_307 = arith.constant 24 : index
    %c288_308 = arith.constant 288 : index
    %325 = vector.load %arg10[%c24_307, %c288_308] : memref<48x320xf32, #tpu.memory_space<vmem>>, vector<8x16xf32>
    tpu.vector_store %arg10[%c24_307, %c288_308], %324 {strides = array<i32>} : memref<48x320xf32, #tpu.memory_space<vmem>>, vector<8x16xf32>,
    %326 = vector.extract_strided_slice %317 {offsets = [0, 64], sizes = [8, 16], strides = [1, 1]} : vector<8x96xf32> to vector<8x16xf32>
    %c32_309 = arith.constant 32 : index
    %c288_310 = arith.constant 288 : index
    %327 = vector.load %arg10[%c32_309, %c288_310] : memref<48x320xf32, #tpu.memory_space<vmem>>, vector<8x16xf32>
    tpu.vector_store %arg10[%c32_309, %c288_310], %326 {strides = array<i32>} : memref<48x320xf32, #tpu.memory_space<vmem>>, vector<8x16xf32>,
    %328 = vector.extract_strided_slice %317 {offsets = [0, 80], sizes = [8, 16], strides = [1, 1]} : vector<8x96xf32> to vector<8x16xf32>
    %c40_311 = arith.constant 40 : index
    %c288_312 = arith.constant 288 : index
    %329 = vector.load %arg10[%c40_311, %c288_312] : memref<48x320xf32, #tpu.memory_space<vmem>>, vector<8x16xf32>
    tpu.vector_store %arg10[%c40_311, %c288_312], %328 {strides = array<i32>} : memref<48x320xf32, #tpu.memory_space<vmem>>, vector<8x16xf32>,
    %330 = vector.extract_strided_slice %82 {offsets = [152, 0], sizes = [8, 96], strides = [1, 1]} : vector<160x96xf32> to vector<8x96xf32>
    %331 = vector.extract_strided_slice %330 {offsets = [0, 0], sizes = [8, 16], strides = [1, 1]} : vector<8x96xf32> to vector<8x16xf32>
    %c0_313 = arith.constant 0 : index
    %c304 = arith.constant 304 : index
    %332 = vector.load %arg10[%c0_313, %c304] : memref<48x320xf32, #tpu.memory_space<vmem>>, vector<8x16xf32>
    tpu.vector_store %arg10[%c0_313, %c304], %331 {strides = array<i32>} : memref<48x320xf32, #tpu.memory_space<vmem>>, vector<8x16xf32>,
    %333 = vector.extract_strided_slice %330 {offsets = [0, 16], sizes = [8, 16], strides = [1, 1]} : vector<8x96xf32> to vector<8x16xf32>
    %c8_314 = arith.constant 8 : index
    %c304_315 = arith.constant 304 : index
    %334 = vector.load %arg10[%c8_314, %c304_315] : memref<48x320xf32, #tpu.memory_space<vmem>>, vector<8x16xf32>
    tpu.vector_store %arg10[%c8_314, %c304_315], %333 {strides = array<i32>} : memref<48x320xf32, #tpu.memory_space<vmem>>, vector<8x16xf32>,
    %335 = vector.extract_strided_slice %330 {offsets = [0, 32], sizes = [8, 16], strides = [1, 1]} : vector<8x96xf32> to vector<8x16xf32>
    %c16_316 = arith.constant 16 : index
    %c304_317 = arith.constant 304 : index
    %336 = vector.load %arg10[%c16_316, %c304_317] : memref<48x320xf32, #tpu.memory_space<vmem>>, vector<8x16xf32>
    tpu.vector_store %arg10[%c16_316, %c304_317], %335 {strides = array<i32>} : memref<48x320xf32, #tpu.memory_space<vmem>>, vector<8x16xf32>,
    %337 = vector.extract_strided_slice %330 {offsets = [0, 48], sizes = [8, 16], strides = [1, 1]} : vector<8x96xf32> to vector<8x16xf32>
    %c24_318 = arith.constant 24 : index
    %c304_319 = arith.constant 304 : index
    %338 = vector.load %arg10[%c24_318, %c304_319] : memref<48x320xf32, #tpu.memory_space<vmem>>, vector<8x16xf32>
    tpu.vector_store %arg10[%c24_318, %c304_319], %337 {strides = array<i32>} : memref<48x320xf32, #tpu.memory_space<vmem>>, vector<8x16xf32>,
    %339 = vector.extract_strided_slice %330 {offsets = [0, 64], sizes = [8, 16], strides = [1, 1]} : vector<8x96xf32> to vector<8x16xf32>
    %c32_320 = arith.constant 32 : index
    %c304_321 = arith.constant 304 : index
    %340 = vector.load %arg10[%c32_320, %c304_321] : memref<48x320xf32, #tpu.memory_space<vmem>>, vector<8x16xf32>
    tpu.vector_store %arg10[%c32_320, %c304_321], %339 {strides = array<i32>} : memref<48x320xf32, #tpu.memory_space<vmem>>, vector<8x16xf32>,
    %341 = vector.extract_strided_slice %330 {offsets = [0, 80], sizes = [8, 16], strides = [1, 1]} : vector<8x96xf32> to vector<8x16xf32>
    %c40_322 = arith.constant 40 : index
    %c304_323 = arith.constant 304 : index
    %342 = vector.load %arg10[%c40_322, %c304_323] : memref<48x320xf32, #tpu.memory_space<vmem>>, vector<8x16xf32>
    tpu.vector_store %arg10[%c40_322, %c304_323], %341 {strides = array<i32>} : memref<48x320xf32, #tpu.memory_space<vmem>>, vector<8x16xf32>,
    %c0_324 = arith.constant 0 : index
    %c0_325 = arith.constant 0 : index
    %343 = vector.load %arg10[%c0_324, %c0_325] : memref<48x320xf32, #tpu.memory_space<vmem>>, vector<48x320xf32>
    %cst_326 = arith.constant dense<0.000000e+00> : vector<8x320xf32>
    %344 = tpu.matmul %6, %343, %cst_326 {dimension_numbers = #tpu.dot_dimension_numbers<[1], [0], [0], [1], [0, 0, 1, 1], [], []>} : vector<8x48xf32>, vector<48x320xf32>, vector<8x320xf32> -> vector<8x320xf32>
    %345 = vector.broadcast %3 : vector<1x320xf32> to vector<8x320xf32>
    %346 = arith.addf %344, %345 : vector<8x320xf32>
    %347 = vector.extract_strided_slice %346 {offsets = [0, 0], sizes = [8, 48], strides = [1, 1]} : vector<8x320xf32> to vector<8x48xf32>
    %c0_327 = arith.constant 0 : index
    %c0_328 = arith.constant 0 : index
    %348 = vector.load %arg11[%c0_327, %c0_328] : memref<128x48xf32, #tpu.memory_space<vmem>>, vector<8x48xf32>
    tpu.vector_store %arg11[%c0_327, %c0_328], %347 {strides = array<i32>} : memref<128x48xf32, #tpu.memory_space<vmem>>, vector<8x48xf32>,
    %349 = vector.extract_strided_slice %346 {offsets = [0, 16], sizes = [8, 48], strides = [1, 1]} : vector<8x320xf32> to vector<8x48xf32>
    %c8_329 = arith.constant 8 : index
    %c0_330 = arith.constant 0 : index
    %350 = vector.load %arg11[%c8_329, %c0_330] : memref<128x48xf32, #tpu.memory_space<vmem>>, vector<8x48xf32>
    tpu.vector_store %arg11[%c8_329, %c0_330], %349 {strides = array<i32>} : memref<128x48xf32, #tpu.memory_space<vmem>>, vector<8x48xf32>,
    %351 = vector.extract_strided_slice %346 {offsets = [0, 32], sizes = [8, 48], strides = [1, 1]} : vector<8x320xf32> to vector<8x48xf32>
    %c16_331 = arith.constant 16 : index
    %c0_332 = arith.constant 0 : index
    %352 = vector.load %arg11[%c16_331, %c0_332] : memref<128x48xf32, #tpu.memory_space<vmem>>, vector<8x48xf32>
    tpu.vector_store %arg11[%c16_331, %c0_332], %351 {strides = array<i32>} : memref<128x48xf32, #tpu.memory_space<vmem>>, vector<8x48xf32>,
    %353 = vector.extract_strided_slice %346 {offsets = [0, 48], sizes = [8, 48], strides = [1, 1]} : vector<8x320xf32> to vector<8x48xf32>
    %c24_333 = arith.constant 24 : index
    %c0_334 = arith.constant 0 : index
    %354 = vector.load %arg11[%c24_333, %c0_334] : memref<128x48xf32, #tpu.memory_space<vmem>>, vector<8x48xf32>
    tpu.vector_store %arg11[%c24_333, %c0_334], %353 {strides = array<i32>} : memref<128x48xf32, #tpu.memory_space<vmem>>, vector<8x48xf32>,
    %355 = vector.extract_strided_slice %346 {offsets = [0, 64], sizes = [8, 48], strides = [1, 1]} : vector<8x320xf32> to vector<8x48xf32>
    %c32_335 = arith.constant 32 : index
    %c0_336 = arith.constant 0 : index
    %356 = vector.load %arg11[%c32_335, %c0_336] : memref<128x48xf32, #tpu.memory_space<vmem>>, vector<8x48xf32>
    tpu.vector_store %arg11[%c32_335, %c0_336], %355 {strides = array<i32>} : memref<128x48xf32, #tpu.memory_space<vmem>>, vector<8x48xf32>,
    %357 = vector.extract_strided_slice %346 {offsets = [0, 80], sizes = [8, 48], strides = [1, 1]} : vector<8x320xf32> to vector<8x48xf32>
    %c40_337 = arith.constant 40 : index
    %c0_338 = arith.constant 0 : index
    %358 = vector.load %arg11[%c40_337, %c0_338] : memref<128x48xf32, #tpu.memory_space<vmem>>, vector<8x48xf32>
    tpu.vector_store %arg11[%c40_337, %c0_338], %357 {strides = array<i32>} : memref<128x48xf32, #tpu.memory_space<vmem>>, vector<8x48xf32>,
    %359 = vector.extract_strided_slice %346 {offsets = [0, 96], sizes = [8, 48], strides = [1, 1]} : vector<8x320xf32> to vector<8x48xf32>
    %c48_339 = arith.constant 48 : index
    %c0_340 = arith.constant 0 : index
    %360 = vector.load %arg11[%c48_339, %c0_340] : memref<128x48xf32, #tpu.memory_space<vmem>>, vector<8x48xf32>
    tpu.vector_store %arg11[%c48_339, %c0_340], %359 {strides = array<i32>} : memref<128x48xf32, #tpu.memory_space<vmem>>, vector<8x48xf32>,
    %361 = vector.extract_strided_slice %346 {offsets = [0, 112], sizes = [8, 48], strides = [1, 1]} : vector<8x320xf32> to vector<8x48xf32>
    %c56_341 = arith.constant 56 : index
    %c0_342 = arith.constant 0 : index
    %362 = vector.load %arg11[%c56_341, %c0_342] : memref<128x48xf32, #tpu.memory_space<vmem>>, vector<8x48xf32>
    tpu.vector_store %arg11[%c56_341, %c0_342], %361 {strides = array<i32>} : memref<128x48xf32, #tpu.memory_space<vmem>>, vector<8x48xf32>,
    %363 = vector.extract_strided_slice %346 {offsets = [0, 160], sizes = [8, 48], strides = [1, 1]} : vector<8x320xf32> to vector<8x48xf32>
    %c64_343 = arith.constant 64 : index
    %c0_344 = arith.constant 0 : index
    %364 = vector.load %arg11[%c64_343, %c0_344] : memref<128x48xf32, #tpu.memory_space<vmem>>, vector<8x48xf32>
    tpu.vector_store %arg11[%c64_343, %c0_344], %363 {strides = array<i32>} : memref<128x48xf32, #tpu.memory_space<vmem>>, vector<8x48xf32>,
    %365 = vector.extract_strided_slice %346 {offsets = [0, 176], sizes = [8, 48], strides = [1, 1]} : vector<8x320xf32> to vector<8x48xf32>
    %c72_345 = arith.constant 72 : index
    %c0_346 = arith.constant 0 : index
    %366 = vector.load %arg11[%c72_345, %c0_346] : memref<128x48xf32, #tpu.memory_space<vmem>>, vector<8x48xf32>
    tpu.vector_store %arg11[%c72_345, %c0_346], %365 {strides = array<i32>} : memref<128x48xf32, #tpu.memory_space<vmem>>, vector<8x48xf32>,
    %367 = vector.extract_strided_slice %346 {offsets = [0, 192], sizes = [8, 48], strides = [1, 1]} : vector<8x320xf32> to vector<8x48xf32>
    %c80_347 = arith.constant 80 : index
    %c0_348 = arith.constant 0 : index
    %368 = vector.load %arg11[%c80_347, %c0_348] : memref<128x48xf32, #tpu.memory_space<vmem>>, vector<8x48xf32>
    tpu.vector_store %arg11[%c80_347, %c0_348], %367 {strides = array<i32>} : memref<128x48xf32, #tpu.memory_space<vmem>>, vector<8x48xf32>,
    %369 = vector.extract_strided_slice %346 {offsets = [0, 208], sizes = [8, 48], strides = [1, 1]} : vector<8x320xf32> to vector<8x48xf32>
    %c88_349 = arith.constant 88 : index
    %c0_350 = arith.constant 0 : index
    %370 = vector.load %arg11[%c88_349, %c0_350] : memref<128x48xf32, #tpu.memory_space<vmem>>, vector<8x48xf32>
    tpu.vector_store %arg11[%c88_349, %c0_350], %369 {strides = array<i32>} : memref<128x48xf32, #tpu.memory_space<vmem>>, vector<8x48xf32>,
    %371 = vector.extract_strided_slice %346 {offsets = [0, 224], sizes = [8, 48], strides = [1, 1]} : vector<8x320xf32> to vector<8x48xf32>
    %c96_351 = arith.constant 96 : index
    %c0_352 = arith.constant 0 : index
    %372 = vector.load %arg11[%c96_351, %c0_352] : memref<128x48xf32, #tpu.memory_space<vmem>>, vector<8x48xf32>
    tpu.vector_store %arg11[%c96_351, %c0_352], %371 {strides = array<i32>} : memref<128x48xf32, #tpu.memory_space<vmem>>, vector<8x48xf32>,
    %373 = vector.extract_strided_slice %346 {offsets = [0, 240], sizes = [8, 48], strides = [1, 1]} : vector<8x320xf32> to vector<8x48xf32>
    %c104_353 = arith.constant 104 : index
    %c0_354 = arith.constant 0 : index
    %374 = vector.load %arg11[%c104_353, %c0_354] : memref<128x48xf32, #tpu.memory_space<vmem>>, vector<8x48xf32>
    tpu.vector_store %arg11[%c104_353, %c0_354], %373 {strides = array<i32>} : memref<128x48xf32, #tpu.memory_space<vmem>>, vector<8x48xf32>,
    %375 = vector.extract_strided_slice %346 {offsets = [0, 256], sizes = [8, 48], strides = [1, 1]} : vector<8x320xf32> to vector<8x48xf32>
    %c112_355 = arith.constant 112 : index
    %c0_356 = arith.constant 0 : index
    %376 = vector.load %arg11[%c112_355, %c0_356] : memref<128x48xf32, #tpu.memory_space<vmem>>, vector<8x48xf32>
    tpu.vector_store %arg11[%c112_355, %c0_356], %375 {strides = array<i32>} : memref<128x48xf32, #tpu.memory_space<vmem>>, vector<8x48xf32>,
    %377 = vector.extract_strided_slice %346 {offsets = [0, 272], sizes = [8, 48], strides = [1, 1]} : vector<8x320xf32> to vector<8x48xf32>
    %c120_357 = arith.constant 120 : index
    %c0_358 = arith.constant 0 : index
    %378 = vector.load %arg11[%c120_357, %c0_358] : memref<128x48xf32, #tpu.memory_space<vmem>>, vector<8x48xf32>
    tpu.vector_store %arg11[%c120_357, %c0_358], %377 {strides = array<i32>} : memref<128x48xf32, #tpu.memory_space<vmem>>, vector<8x48xf32>,
    %c0_359 = arith.constant 0 : index
    %c0_360 = arith.constant 0 : index
    %379 = vector.load %arg11[%c0_359, %c0_360] : memref<128x48xf32, #tpu.memory_space<vmem>>, vector<128x48xf32>
    %cst_361 = arith.constant dense<0.000000e+00> : vector<128x32xf32>
    %380 = tpu.matmul %379, %4, %cst_361 {dimension_numbers = #tpu.dot_dimension_numbers<[1], [0], [0], [1], [0, 0, 1, 1], [], []>} : vector<128x48xf32>, vector<48x32xf32>, vector<128x32xf32> -> vector<128x32xf32>
    %381 = vector.broadcast %5 : vector<1x32xf32> to vector<128x32xf32>
    %382 = arith.addf %380, %381 : vector<128x32xf32>
    %383 = vector.extract_strided_slice %382 {offsets = [0, 0], sizes = [128, 16], strides = [1, 1]} : vector<128x32xf32> to vector<128x16xf32>
    %384 = vector.extract_strided_slice %382 {offsets = [0, 16], sizes = [128, 16], strides = [1, 1]} : vector<128x32xf32> to vector<128x16xf32>
    %cst_362 = arith.constant 0.000000e+00 : f32
    %385 = vector.broadcast %cst_362 : f32 to vector<128x16xf32>
    %386 = arith.subf %385, %384 : vector<128x16xf32>
    %387 = math.exp %386 : vector<128x16xf32>
    %cst_363 = arith.constant 1.000000e+00 : f32
    %388 = vector.broadcast %cst_363 : f32 to vector<128x16xf32>
    %389 = arith.addf %388, %387 : vector<128x16xf32>
    %390 = tpu.reciprocal %389 {approx = true} : vector<128x16xf32> -> vector<128x16xf32>
    %391 = arith.addf %383, %390 : vector<128x16xf32>
    %cst_364 = arith.constant 0.000000e+00 : f32
    %392 = vector.broadcast %cst_364 : f32 to vector<128x16xf32>
    %393 = arith.maximumf %391, %392 : vector<128x16xf32>
    %394 = vector.extract_strided_slice %393 {offsets = [0, 0], sizes = [8, 16], strides = [1, 1]} : vector<128x16xf32> to vector<8x16xf32>
    %c0_365 = arith.constant 0 : index
    %c0_366 = arith.constant 0 : index
    %395 = vector.load %arg12[%c0_365, %c0_366] : memref<8x256xf32, #tpu.memory_space<vmem>>, vector<8x16xf32>
    tpu.vector_store %arg12[%c0_365, %c0_366], %394 {strides = array<i32>} : memref<8x256xf32, #tpu.memory_space<vmem>>, vector<8x16xf32>,
    %396 = vector.extract_strided_slice %393 {offsets = [8, 0], sizes = [8, 16], strides = [1, 1]} : vector<128x16xf32> to vector<8x16xf32>
    %c0_367 = arith.constant 0 : index
    %c16_368 = arith.constant 16 : index
    %397 = vector.load %arg12[%c0_367, %c16_368] : memref<8x256xf32, #tpu.memory_space<vmem>>, vector<8x16xf32>
    tpu.vector_store %arg12[%c0_367, %c16_368], %396 {strides = array<i32>} : memref<8x256xf32, #tpu.memory_space<vmem>>, vector<8x16xf32>,
    %398 = vector.extract_strided_slice %393 {offsets = [16, 0], sizes = [8, 16], strides = [1, 1]} : vector<128x16xf32> to vector<8x16xf32>
    %c0_369 = arith.constant 0 : index
    %c32_370 = arith.constant 32 : index
    %399 = vector.load %arg12[%c0_369, %c32_370] : memref<8x256xf32, #tpu.memory_space<vmem>>, vector<8x16xf32>
    tpu.vector_store %arg12[%c0_369, %c32_370], %398 {strides = array<i32>} : memref<8x256xf32, #tpu.memory_space<vmem>>, vector<8x16xf32>,
    %400 = vector.extract_strided_slice %393 {offsets = [24, 0], sizes = [8, 16], strides = [1, 1]} : vector<128x16xf32> to vector<8x16xf32>
    %c0_371 = arith.constant 0 : index
    %c48_372 = arith.constant 48 : index
    %401 = vector.load %arg12[%c0_371, %c48_372] : memref<8x256xf32, #tpu.memory_space<vmem>>, vector<8x16xf32>
    tpu.vector_store %arg12[%c0_371, %c48_372], %400 {strides = array<i32>} : memref<8x256xf32, #tpu.memory_space<vmem>>, vector<8x16xf32>,
    %402 = vector.extract_strided_slice %393 {offsets = [32, 0], sizes = [8, 16], strides = [1, 1]} : vector<128x16xf32> to vector<8x16xf32>
    %c0_373 = arith.constant 0 : index
    %c64_374 = arith.constant 64 : index
    %403 = vector.load %arg12[%c0_373, %c64_374] : memref<8x256xf32, #tpu.memory_space<vmem>>, vector<8x16xf32>
    tpu.vector_store %arg12[%c0_373, %c64_374], %402 {strides = array<i32>} : memref<8x256xf32, #tpu.memory_space<vmem>>, vector<8x16xf32>,
    %404 = vector.extract_strided_slice %393 {offsets = [40, 0], sizes = [8, 16], strides = [1, 1]} : vector<128x16xf32> to vector<8x16xf32>
    %c0_375 = arith.constant 0 : index
    %c80_376 = arith.constant 80 : index
    %405 = vector.load %arg12[%c0_375, %c80_376] : memref<8x256xf32, #tpu.memory_space<vmem>>, vector<8x16xf32>
    tpu.vector_store %arg12[%c0_375, %c80_376], %404 {strides = array<i32>} : memref<8x256xf32, #tpu.memory_space<vmem>>, vector<8x16xf32>,
    %406 = vector.extract_strided_slice %393 {offsets = [48, 0], sizes = [8, 16], strides = [1, 1]} : vector<128x16xf32> to vector<8x16xf32>
    %c0_377 = arith.constant 0 : index
    %c96_378 = arith.constant 96 : index
    %407 = vector.load %arg12[%c0_377, %c96_378] : memref<8x256xf32, #tpu.memory_space<vmem>>, vector<8x16xf32>
    tpu.vector_store %arg12[%c0_377, %c96_378], %406 {strides = array<i32>} : memref<8x256xf32, #tpu.memory_space<vmem>>, vector<8x16xf32>,
    %408 = vector.extract_strided_slice %393 {offsets = [56, 0], sizes = [8, 16], strides = [1, 1]} : vector<128x16xf32> to vector<8x16xf32>
    %c0_379 = arith.constant 0 : index
    %c112_380 = arith.constant 112 : index
    %409 = vector.load %arg12[%c0_379, %c112_380] : memref<8x256xf32, #tpu.memory_space<vmem>>, vector<8x16xf32>
    tpu.vector_store %arg12[%c0_379, %c112_380], %408 {strides = array<i32>} : memref<8x256xf32, #tpu.memory_space<vmem>>, vector<8x16xf32>,
    %410 = vector.extract_strided_slice %393 {offsets = [64, 0], sizes = [8, 16], strides = [1, 1]} : vector<128x16xf32> to vector<8x16xf32>
    %c0_381 = arith.constant 0 : index
    %c128_382 = arith.constant 128 : index
    %411 = vector.load %arg12[%c0_381, %c128_382] : memref<8x256xf32, #tpu.memory_space<vmem>>, vector<8x16xf32>
    tpu.vector_store %arg12[%c0_381, %c128_382], %410 {strides = array<i32>} : memref<8x256xf32, #tpu.memory_space<vmem>>, vector<8x16xf32>,
    %412 = vector.extract_strided_slice %393 {offsets = [72, 0], sizes = [8, 16], strides = [1, 1]} : vector<128x16xf32> to vector<8x16xf32>
    %c0_383 = arith.constant 0 : index
    %c144_384 = arith.constant 144 : index
    %413 = vector.load %arg12[%c0_383, %c144_384] : memref<8x256xf32, #tpu.memory_space<vmem>>, vector<8x16xf32>
    tpu.vector_store %arg12[%c0_383, %c144_384], %412 {strides = array<i32>} : memref<8x256xf32, #tpu.memory_space<vmem>>, vector<8x16xf32>,
    %414 = vector.extract_strided_slice %393 {offsets = [80, 0], sizes = [8, 16], strides = [1, 1]} : vector<128x16xf32> to vector<8x16xf32>
    %c0_385 = arith.constant 0 : index
    %c160_386 = arith.constant 160 : index
    %415 = vector.load %arg12[%c0_385, %c160_386] : memref<8x256xf32, #tpu.memory_space<vmem>>, vector<8x16xf32>
    tpu.vector_store %arg12[%c0_385, %c160_386], %414 {strides = array<i32>} : memref<8x256xf32, #tpu.memory_space<vmem>>, vector<8x16xf32>,
    %416 = vector.extract_strided_slice %393 {offsets = [88, 0], sizes = [8, 16], strides = [1, 1]} : vector<128x16xf32> to vector<8x16xf32>
    %c0_387 = arith.constant 0 : index
    %c176_388 = arith.constant 176 : index
    %417 = vector.load %arg12[%c0_387, %c176_388] : memref<8x256xf32, #tpu.memory_space<vmem>>, vector<8x16xf32>
    tpu.vector_store %arg12[%c0_387, %c176_388], %416 {strides = array<i32>} : memref<8x256xf32, #tpu.memory_space<vmem>>, vector<8x16xf32>,
    %418 = vector.extract_strided_slice %393 {offsets = [96, 0], sizes = [8, 16], strides = [1, 1]} : vector<128x16xf32> to vector<8x16xf32>
    %c0_389 = arith.constant 0 : index
    %c192_390 = arith.constant 192 : index
    %419 = vector.load %arg12[%c0_389, %c192_390] : memref<8x256xf32, #tpu.memory_space<vmem>>, vector<8x16xf32>
    tpu.vector_store %arg12[%c0_389, %c192_390], %418 {strides = array<i32>} : memref<8x256xf32, #tpu.memory_space<vmem>>, vector<8x16xf32>,
    %420 = vector.extract_strided_slice %393 {offsets = [104, 0], sizes = [8, 16], strides = [1, 1]} : vector<128x16xf32> to vector<8x16xf32>
    %c0_391 = arith.constant 0 : index
    %c208_392 = arith.constant 208 : index
    %421 = vector.load %arg12[%c0_391, %c208_392] : memref<8x256xf32, #tpu.memory_space<vmem>>, vector<8x16xf32>
    tpu.vector_store %arg12[%c0_391, %c208_392], %420 {strides = array<i32>} : memref<8x256xf32, #tpu.memory_space<vmem>>, vector<8x16xf32>,
    %422 = vector.extract_strided_slice %393 {offsets = [112, 0], sizes = [8, 16], strides = [1, 1]} : vector<128x16xf32> to vector<8x16xf32>
    %c0_393 = arith.constant 0 : index
    %c224_394 = arith.constant 224 : index
    %423 = vector.load %arg12[%c0_393, %c224_394] : memref<8x256xf32, #tpu.memory_space<vmem>>, vector<8x16xf32>
    tpu.vector_store %arg12[%c0_393, %c224_394], %422 {strides = array<i32>} : memref<8x256xf32, #tpu.memory_space<vmem>>, vector<8x16xf32>,
    %424 = vector.extract_strided_slice %393 {offsets = [120, 0], sizes = [8, 16], strides = [1, 1]} : vector<128x16xf32> to vector<8x16xf32>
    %c0_395 = arith.constant 0 : index
    %c240_396 = arith.constant 240 : index
    %425 = vector.load %arg12[%c0_395, %c240_396] : memref<8x256xf32, #tpu.memory_space<vmem>>, vector<8x16xf32>
    tpu.vector_store %arg12[%c0_395, %c240_396], %424 {strides = array<i32>} : memref<8x256xf32, #tpu.memory_space<vmem>>, vector<8x16xf32>,
    %c0_397 = arith.constant 0 : index
    %c0_398 = arith.constant 0 : index
    %426 = vector.load %arg12[%c0_397, %c0_398] : memref<8x256xf32, #tpu.memory_space<vmem>>, vector<8x256xf32>
    %cst_399 = arith.constant dense<0.000000e+00> : vector<8xf32>
    %427 = vector.multi_reduction <add>, %426, %cst_399 [1] : vector<8x256xf32> to vector<8xf32>
    %428 = vector.shape_cast %427 : vector<8xf32> to vector<8x1xf32>
    %cst_400 = arith.constant 2.560000e+02 : f32
    %429 = vector.broadcast %cst_400 : f32 to vector<8x1xf32>
    %430 = arith.divf %428, %429 : vector<8x1xf32>
    %431 = vector.broadcast %430 : vector<8x1xf32> to vector<8x256xf32>
    %432 = arith.subf %426, %431 : vector<8x256xf32>
    %433 = arith.mulf %432, %432 : vector<8x256xf32>
    %cst_401 = arith.constant dense<0.000000e+00> : vector<8xf32>
    %434 = vector.multi_reduction <add>, %433, %cst_401 [1] : vector<8x256xf32> to vector<8xf32>
    %435 = vector.shape_cast %434 : vector<8xf32> to vector<8x1xf32>
    %cst_402 = arith.constant 2.560000e+02 : f32
    %436 = vector.broadcast %cst_402 : f32 to vector<8x1xf32>
    %437 = arith.divf %435, %436 : vector<8x1xf32>
    %cst_403 = arith.constant 9.99999974E-6 : f32
    %438 = vector.broadcast %cst_403 : f32 to vector<8x1xf32>
    %439 = arith.addf %437, %438 : vector<8x1xf32>
    %440 = math.rsqrt %439 : vector<8x1xf32>
    %441 = vector.broadcast %440 : vector<8x1xf32> to vector<8x256xf32>
    %442 = arith.mulf %432, %441 : vector<8x256xf32>
    %443 = vector.extract_strided_slice %442 {offsets = [0, 0], sizes = [8, 128], strides = [1, 1]} : vector<8x256xf32> to vector<8x128xf32>
    %c0_404 = arith.constant 0 : index
    %c0_405 = arith.constant 0 : index
    %c0_406 = arith.constant 0 : index
    %444 = vector.load %arg8[%c0_404, %c0_405, %c0_406] : memref<2x8x128xf32, #tpu.memory_space<vmem>>, vector<1x8x128xf32>
    %445 = vector.shape_cast %444 : vector<1x8x128xf32> to vector<8x128xf32>
    %446 = vector.shape_cast %443 : vector<8x128xf32> to vector<1x8x128xf32>
    tpu.vector_store %arg8[%c0_404, %c0_405, %c0_406], %446 {strides = array<i32>} : memref<2x8x128xf32, #tpu.memory_space<vmem>>, vector<1x8x128xf32>,
    %447 = vector.extract_strided_slice %442 {offsets = [0, 128], sizes = [8, 128], strides = [1, 1]} : vector<8x256xf32> to vector<8x128xf32>
    %c1_407 = arith.constant 1 : index
    %c0_408 = arith.constant 0 : index
    %c0_409 = arith.constant 0 : index
    %448 = vector.load %arg8[%c1_407, %c0_408, %c0_409] : memref<2x8x128xf32, #tpu.memory_space<vmem>>, vector<1x8x128xf32>
    %449 = vector.shape_cast %448 : vector<1x8x128xf32> to vector<8x128xf32>
    %450 = vector.shape_cast %447 : vector<8x128xf32> to vector<1x8x128xf32>
    tpu.vector_store %arg8[%c1_407, %c0_408, %c0_409], %450 {strides = array<i32>} : memref<2x8x128xf32, #tpu.memory_space<vmem>>, vector<1x8x128xf32>,
    return
  }
}

</mosaic_0001>

<llo_original>
// kernel: tile.8
$region0: #{tile.8}
  #allocation0 [shape = 's32[1]{0}', space=sflag, size = 0x4, scoped, tag = 'scoped memory for tile.8']
  %s0 = inlined_call_operand.vmem [shape: f32[16], index: 0, kind: input, shape index: {}]
  %s1 = inlined_call_operand.vmem [shape: f32[20,16], index: 1, kind: output, shape index: {}]
  // Predicated region
  $region2: #{tile.8} parent=0 // pred_check
    _
  $region3: #{tile.8} parent=0 // pred_check_branch
    %3 = sbr.rel (0) target = $region5
  $region4: #{tile.8} parent=0 // pred_region
    _
  $region5: #{tile.8} parent=0 // pred_fallthru
    _
  %v4 = vld [vmem:[%s0] ss:$0 sm:$0xff]
  %5 = vst [vmem:[%s1] sm:$0xff] %v4
  %s6 = scalar_lea.vmem %s1, 8
  %7 = vst [vmem:[%s6] sm:$0xff] %v4
  %s8 = scalar_lea.vmem %s1, 16
  %9 = vst [vmem:[%s8] sm:$0xff] %v4

// kernel: tile.9
$region0: #{tile.9}
  %s0 = inlined_call_operand.vmem [shape: f32[20,16], index: 0, kind: input, shape index: {}]
  %s1 = inlined_call_operand.vmem [shape: f32[1,320], index: 1, kind: output, shape index: {}]
  $region1: #{tile.9} parent=0
    #allocation0 [shape = 'u8[12288]{0}', space=vmem, size = 0x3000, scoped, tag = 'scoped mem for output reshape']
    %v2 = vld [vmem:[%s0] ss:$8 sm:$0x7]
    %vm3 = vcmask 130048
    %4 = vst.msk [vmem:[#allocation0] ss:$8 sm:$0x7] %vm3, %v2
    %s5 = scalar_lea.vmem %s0, 7
    %s6 = smov 3
    %v7 = vld [vmem:[%s5] ss:$8 sm:%s6]
    %8 = vrot.lane.b32.xlu0 %v7, 112
    %v9 = vpop.permute.xlu0 %8
    %vm10 = vcmask 1048448
    %11 = vst.msk [vmem:[#allocation0] ss:$8 sm:$0x3] %vm10, %v9
    %s12 = scalar_lea.vmem %s0, 6
    %s13 = smov 3
    %v14 = vld [vmem:[%s12] ss:$8 sm:%s13]
    %15 = vrot.lane.b32.xlu0 %v14, 96
    %v16 = vpop.permute.xlu0 %15
    %vm17 = vcmask 917248
    %18 = vst.msk [vmem:[#allocation0] ss:$8 sm:$0x3] %vm17, %v16
    %s19 = scalar_lea.vmem %s0, 5
    %s20 = smov 3
    %v21 = vld [vmem:[%s19] ss:$8 sm:%s20]
    %22 = vrot.lane.b32.xlu0 %v21, 80
    %v23 = vpop.permute.xlu0 %22
    %vm24 = vcmask 786048
    %25 = vst.msk [vmem:[#allocation0] ss:$8 sm:$0x3] %vm24, %v23
    %s26 = scalar_lea.vmem %s0, 4
    %s27 = smov 3
    %v28 = vld [vmem:[%s26] ss:$8 sm:%s27]
    %29 = vrot.lane.b32.xlu0 %v28, 64
    %v30 = vpop.permute.xlu0 %29
    %vm31 = vcmask 654848
    %32 = vst.msk [vmem:[#allocation0] ss:$8 sm:$0x3] %vm31, %v30
    %s33 = scalar_lea.vmem %s0, 3
    %v34 = vld [vmem:[%s33] ss:$8 sm:$0x7]
    %35 = vrot.lane.b32.xlu0 %v34, 48
    %v36 = vpop.permute.xlu0 %35
    %vm37 = vcmask 523648
    %38 = vst.msk [vmem:[#allocation0] ss:$8 sm:$0x7] %vm37, %v36
    %s39 = scalar_lea.vmem %s0, 2
    %v40 = vld [vmem:[%s39] ss:$8 sm:$0x7]
    %41 = vrot.lane.b32.xlu0 %v40, 32
    %v42 = vpop.permute.xlu0 %41
    %vm43 = vcmask 392448
    %44 = vst.msk [vmem:[#allocation0] ss:$8 sm:$0x7] %vm43, %v42
    %s45 = scalar_lea.vmem %s0, 1
    %v46 = vld [vmem:[%s45] ss:$8 sm:$0x7]
    %47 = vrot.lane.b32.xlu0 %v46, 16
    %v48 = vpop.permute.xlu0 %47
    %vm49 = vcmask 261248
    %50 = vst.msk [vmem:[#allocation0] ss:$8 sm:$0x7] %vm49, %v48
    %s52 = sshllo.u32 0, 1
    %v54 = vld [vmem:[#allocation0] sm:%s52]
    %s55 = sshllo.u32 0, 1
    %56 = vst [vmem:[%s1] sm:%s55] %v54
    %s57 = scalar_lea.vmem [#allocation0], 8
    %v58 = vld [vmem:[%s57] sm:%s52]
    %s59 = sshllo.u32 0, 1
    %s60 = scalar_lea.vmem %s1, 1
    %61 = vst [vmem:[%s60] sm:%s59] %v58
    %s62 = scalar_lea.vmem [#allocation0], 16
    %v63 = vld [vmem:[%s62] sm:%s52]
    %s64 = sshllo.u32 0, 1
    %s65 = smul.addr 1, 2
    %s66 = scalar_lea.vmem %s1, %s65
    %67 = vst [vmem:[%s66] sm:%s64] %v63

// kernel: st_block_forward.1
$region0: #{st_block_forward.1}
  #allocation0 [shape = 'u32[]', space=smem, size = 0x4, offset = 0x4, fixed_abs, tag = 'smem constant byte address 0x4 - core index']
  #allocation1 [shape = 'u32[144,128]{1,0:T(1,128)}', space=vmem, size = 0x12000, scoped, tag = 'internal scratch']
  #allocation2 [shape = 'f32[160,12]{1,0:T(8,128)}', space=vmem, size = 0x14000, scoped, tag = 'scratch operand']
  #allocation3 [shape = 'f32[48,320]{1,0:T(8,128)}', space=vmem, size = 0x12000, scoped, tag = 'scratch operand']
  #allocation4 [shape = 'f32[128,48]{1,0:T(8,128)}', space=vmem, size = 0x10000, scoped, tag = 'scratch operand']
  #allocation5 [shape = 'f32[8,256]{1,0:T(8,128)}', space=vmem, size = 0x2000, scoped, tag = 'scratch operand']
  %s0 = inlined_call_operand.vmem [shape: f32[2,8,48], index: 0, kind: input, shape index: {}]
  %s1 = inlined_call_operand.vmem [shape: f32[8,48], index: 1, kind: input, shape index: {}]
  %s2 = inlined_call_operand.vmem [shape: f32[12,32], index: 2, kind: input, shape index: {}]
  %s3 = inlined_call_operand.vmem [shape: f32[1,32], index: 3, kind: input, shape index: {}]
  %s4 = inlined_call_operand.vmem [shape: f32[16,96], index: 4, kind: input, shape index: {}]
  %s5 = inlined_call_operand.vmem [shape: f32[1,320], index: 5, kind: input, shape index: {}]
  %s6 = inlined_call_operand.vmem [shape: f32[48,32], index: 6, kind: input, shape index: {}]
  %s7 = inlined_call_operand.vmem [shape: f32[1,32], index: 7, kind: input, shape index: {}]
  %s8 = inlined_call_operand.vmem [shape: f32[2,8,128], index: 8, kind: output, shape index: {}]
  %s9 = sld [smem:[#allocation0]]
  $region42: #{st_block_forward.1} parent=0
    _
  %s11 = ssub.s32 1, %s9
  %s12 = scalar_select 0, %s11, %s9
  // Predicated region
  $region2: #{st_block_forward.1} parent=0 // pred_check
    _
  $region3: #{st_block_forward.1} parent=0 // pred_check_branch
    %14 = sbr.rel (0) target = $region5
  $region4: #{st_block_forward.1} parent=0 // pred_region
    _
  $region5: #{st_block_forward.1} parent=0 // pred_fallthru
    _
  // Predicated region
  $region6: #{st_block_forward.1} parent=0 // pred_check
    _
  $region7: #{st_block_forward.1} parent=0 // pred_check_branch
    %16 = sbr.rel (0) target = $region9
  $region8: #{st_block_forward.1} parent=0 // pred_region
    _
  $region9: #{st_block_forward.1} parent=0 // pred_fallthru
    _
  // Predicated region
  $region10: #{st_block_forward.1} parent=0 // pred_check
    _
  $region11: #{st_block_forward.1} parent=0 // pred_check_branch
    %18 = sbr.rel (0) target = $region13
  $region12: #{st_block_forward.1} parent=0 // pred_region
    _
  $region13: #{st_block_forward.1} parent=0 // pred_fallthru
    _
  // Predicated region
  $region14: #{st_block_forward.1} parent=0 // pred_check
    _
  $region15: #{st_block_forward.1} parent=0 // pred_check_branch
    %20 = sbr.rel (0) target = $region17
  $region16: #{st_block_forward.1} parent=0 // pred_region
    _
  $region17: #{st_block_forward.1} parent=0 // pred_fallthru
    _
  // Predicated region
  $region18: #{st_block_forward.1} parent=0 // pred_check
    _
  $region19: #{st_block_forward.1} parent=0 // pred_check_branch
    %22 = sbr.rel (0) target = $region21
  $region20: #{st_block_forward.1} parent=0 // pred_region
    _
  $region21: #{st_block_forward.1} parent=0 // pred_fallthru
    _
  // Predicated region
  $region22: #{st_block_forward.1} parent=0 // pred_check
    _
  $region23: #{st_block_forward.1} parent=0 // pred_check_branch
    %24 = sbr.rel (0) target = $region25
  $region24: #{st_block_forward.1} parent=0 // pred_region
    _
  $region25: #{st_block_forward.1} parent=0 // pred_fallthru
    _
  // Predicated region
  $region26: #{st_block_forward.1} parent=0 // pred_check
    _
  $region27: #{st_block_forward.1} parent=0 // pred_check_branch
    %26 = sbr.rel (0) target = $region29
  $region28: #{st_block_forward.1} parent=0 // pred_region
    _
  $region29: #{st_block_forward.1} parent=0 // pred_fallthru
    _
  // Predicated region
  $region30: #{st_block_forward.1} parent=0 // pred_check
    _
  $region31: #{st_block_forward.1} parent=0 // pred_check_branch
    %28 = sbr.rel (0) target = $region33
  $region32: #{st_block_forward.1} parent=0 // pred_region
    _
  $region33: #{st_block_forward.1} parent=0 // pred_fallthru
    _
  %v29 = vld [vmem:[%s2] sm:$0xff]
  %v30 = vld [vmem:[%s2 + $0x8] sm:$0xf]
  %v31 = vld [vmem:[%s3] sm:$0x1]
  %v32 = vld [vmem:[%s4] sm:$0xff]
  %v33 = vld [vmem:[%s4 + $0x8] sm:$0xff]
  %v34 = vld [vmem:[%s5] sm:$0x7]
  %v35 = vld [vmem:[%s6] sm:$0xff]
  %v36 = vld [vmem:[%s6 + $0x8] sm:$0xff]
  %v37 = vld [vmem:[%s6 + $0x10] sm:$0xff]
  %v38 = vld [vmem:[%s6 + $0x18] sm:$0xff]
  %v39 = vld [vmem:[%s6 + $0x20] sm:$0xff]
  %v40 = vld [vmem:[%s6 + $0x28] sm:$0xff]
  %v41 = vld [vmem:[%s7] sm:$0x1]
  %v42 = vld [vmem:[%s1] sm:$0xff]
  %v43 = vld [vmem:[%s0] sm:$0xff]
  %vm44 = vcmask 97280
  %45 = vst.msk [vmem:[#allocation2] sm:$0xff] %vm44, %v43
  %v46 = vld [vmem:[%s0] sm:$0xff]
  %48 = vrot.lane.b32.xlu0 %v46, 124
  %v49 = vpop.permute.xlu0 %48
  %51 = vst.msk [vmem:[#allocation2 + $0x8] sm:$0xff] %vm44, %v49
  %v52 = vld [vmem:[%s0] sm:$0xff]
  %54 = vrot.lane.b32.xlu0 %v52, 120
  %v55 = vpop.permute.xlu0 %54
  %57 = vst.msk [vmem:[#allocation2 + $0x10] sm:$0xff] %vm44, %v55
  %v58 = vld [vmem:[%s0] sm:$0xff]
  %60 = vrot.lane.b32.xlu0 %v58, 116
  %v61 = vpop.permute.xlu0 %60
  %63 = vst.msk [vmem:[#allocation2 + $0x18] sm:$0xff] %vm44, %v61
  %v64 = vld [vmem:[%s0] sm:$0xff]
  %66 = vrot.lane.b32.xlu0 %v64, 112
  %v67 = vpop.permute.xlu0 %66
  %69 = vst.msk [vmem:[#allocation2 + $0x20] sm:$0xff] %vm44, %v67
  %v70 = vld [vmem:[%s0] sm:$0xff]
  %72 = vrot.lane.b32.xlu0 %v70, 108
  %v73 = vpop.permute.xlu0 %72
  %75 = vst.msk [vmem:[#allocation2 + $0x28] sm:$0xff] %vm44, %v73
  %v76 = vld [vmem:[%s0] sm:$0xff]
  %78 = vrot.lane.b32.xlu0 %v76, 104
  %v79 = vpop.permute.xlu0 %78
  %81 = vst.msk [vmem:[#allocation2 + $0x30] sm:$0xff] %vm44, %v79
  %v82 = vld [vmem:[%s0] sm:$0xff]
  %84 = vrot.lane.b32.xlu0 %v82, 100
  %v85 = vpop.permute.xlu0 %84
  %87 = vst.msk [vmem:[#allocation2 + $0x38] sm:$0xff] %vm44, %v85
  %v88 = vld [vmem:[%s0] sm:$0xff]
  %90 = vrot.lane.b32.xlu0 %v88, 96
  %v91 = vpop.permute.xlu0 %90
  %93 = vst.msk [vmem:[#allocation2 + $0x40] sm:$0xff] %vm44, %v91
  %v94 = vld [vmem:[%s0] sm:$0xff]
  %96 = vrot.lane.b32.xlu0 %v94, 92
  %v97 = vpop.permute.xlu0 %96
  %99 = vst.msk [vmem:[#allocation2 + $0x48] sm:$0xff] %vm44, %v97
  %s100 = scalar_lea.vmem %s0, 8
  %v101 = vld [vmem:[%s100] sm:$0xff]
  %102 = vst.msk [vmem:[#allocation2 + $0x50] sm:$0xff] %vm44, %v101
  %v103 = vld [vmem:[%s100] sm:$0xff]
  %105 = vrot.lane.b32.xlu0 %v103, 124
  %v106 = vpop.permute.xlu0 %105
  %108 = vst.msk [vmem:[#allocation2 + $0x58] sm:$0xff] %vm44, %v106
  %v109 = vld [vmem:[%s100] sm:$0xff]
  %111 = vrot.lane.b32.xlu0 %v109, 120
  %v112 = vpop.permute.xlu0 %111
  %114 = vst.msk [vmem:[#allocation2 + $0x60] sm:$0xff] %vm44, %v112
  %v115 = vld [vmem:[%s100] sm:$0xff]
  %117 = vrot.lane.b32.xlu0 %v115, 116
  %v118 = vpop.permute.xlu0 %117
  %120 = vst.msk [vmem:[#allocation2 + $0x68] sm:$0xff] %vm44, %v118
  %v121 = vld [vmem:[%s100] sm:$0xff]
  %123 = vrot.lane.b32.xlu0 %v121, 112
  %v124 = vpop.permute.xlu0 %123
  %126 = vst.msk [vmem:[#allocation2 + $0x70] sm:$0xff] %vm44, %v124
  %v127 = vld [vmem:[%s100] sm:$0xff]
  %129 = vrot.lane.b32.xlu0 %v127, 108
  %v130 = vpop.permute.xlu0 %129
  %132 = vst.msk [vmem:[#allocation2 + $0x78] sm:$0xff] %vm44, %v130
  %v133 = vld [vmem:[%s100] sm:$0xff]
  %135 = vrot.lane.b32.xlu0 %v133, 104
  %v136 = vpop.permute.xlu0 %135
  %138 = vst.msk [vmem:[#allocation2 + $0x80] sm:$0xff] %vm44, %v136
  %v139 = vld [vmem:[%s100] sm:$0xff]
  %141 = vrot.lane.b32.xlu0 %v139, 100
  %v142 = vpop.permute.xlu0 %141
  %144 = vst.msk [vmem:[#allocation2 + $0x88] sm:$0xff] %vm44, %v142
  %v145 = vld [vmem:[%s100] sm:$0xff]
  %147 = vrot.lane.b32.xlu0 %v145, 96
  %v148 = vpop.permute.xlu0 %147
  %150 = vst.msk [vmem:[#allocation2 + $0x90] sm:$0xff] %vm44, %v148
  %v151 = vld [vmem:[%s100] sm:$0xff]
  %153 = vrot.lane.b32.xlu0 %v151, 92
  %v154 = vpop.permute.xlu0 %153
  %156 = vst.msk [vmem:[#allocation2 + $0x98] sm:$0xff] %vm44, %v154
  %v157 = vld [vmem:[#allocation2] sm:$0xff]
  %v158 = vld [vmem:[#allocation2 + $0x8] sm:$0xff]
  %v159 = vld [vmem:[#allocation2 + $0x10] sm:$0xff]
  %v160 = vld [vmem:[#allocation2 + $0x18] sm:$0xff]
  %v161 = vld [vmem:[#allocation2 + $0x20] sm:$0xff]
  %v162 = vld [vmem:[#allocation2 + $0x28] sm:$0xff]
  %v163 = vld [vmem:[#allocation2 + $0x30] sm:$0xff]
  %v164 = vld [vmem:[#allocation2 + $0x38] sm:$0xff]
  %v165 = vld [vmem:[#allocation2 + $0x40] sm:$0xff]
  %v166 = vld [vmem:[#allocation2 + $0x48] sm:$0xff]
  %v167 = vld [vmem:[#allocation2 + $0x50] sm:$0xff]
  %v168 = vld [vmem:[#allocation2 + $0x58] sm:$0xff]
  %v169 = vld [vmem:[#allocation2 + $0x60] sm:$0xff]
  %v170 = vld [vmem:[#allocation2 + $0x68] sm:$0xff]
  %v171 = vld [vmem:[#allocation2 + $0x70] sm:$0xff]
  %v172 = vld [vmem:[#allocation2 + $0x78] sm:$0xff]
  %v173 = vld [vmem:[#allocation2 + $0x80] sm:$0xff]
  %v174 = vld [vmem:[#allocation2 + $0x88] sm:$0xff]
  %v175 = vld [vmem:[#allocation2 + $0x90] sm:$0xff]
  %v176 = vld [vmem:[#allocation2 + $0x98] sm:$0xff]
  %v178 = vlaneseq
  %v179 = vshrl.u32 %v178, 7
  %v180 = vsub.s32 0, %v179
  %v181 = vrot.slane %v31, %v180
  %v184 = vsel %vm44, %v157, 0
  %v187 = vsel %vm44, %v158, 0
  %v190 = vsel %vm44, %v159, 0
  %v193 = vsel %vm44, %v160, 0
  %v196 = vsel %vm44, %v161, 0
  %v199 = vsel %vm44, %v162, 0
  %v202 = vsel %vm44, %v163, 0
  %v205 = vsel %vm44, %v164, 0
  %v208 = vsel %vm44, %v165, 0
  %v211 = vsel %vm44, %v166, 0
  %v214 = vsel %vm44, %v167, 0
  %v217 = vsel %vm44, %v168, 0
  %v220 = vsel %vm44, %v169, 0
  %v223 = vsel %vm44, %v170, 0
  %v226 = vsel %vm44, %v171, 0
  %v229 = vsel %vm44, %v172, 0
  %v232 = vsel %vm44, %v173, 0
  %v235 = vsel %vm44, %v174, 0
  %v238 = vsel %vm44, %v175, 0
  %v241 = vsel %vm44, %v176, 0
  %vm243 = vcmask 1043456
  %v245 = vsel %vm243, %v30, 0
  %247 = vmatprep.subr.mxu0 0.0
  %248 = vmatpush1.msra.mxu0 %v29
  %249 = vmatprep.subr.mxu0 0.0
  %250 = vmatpush1.msra.mxu0 %v245
  %251 = vmatprep.subr.mxu0 0.0
  %252 = vmatpush1.msra.mxu0 0.0
  %253 = vmatprep.subr.mxu0 0.0
  %254 = vmatpush1.msra.mxu0 0.0
  %255 = vmatprep.subr.mxu0 0.0
  %256 = vmatpush1.msra.mxu0 0.0
  %257 = vmatprep.subr.mxu0 0.0
  %258 = vmatpush1.msra.mxu0 0.0
  %259 = vmatprep.subr.mxu0 0.0
  %260 = vmatpush1.msra.mxu0 0.0
  %261 = vmatprep.subr.mxu0 0.0
  %262 = vmatpush1.msra.mxu0 0.0
  %263 = vmatprep.subr.mxu0 0.0
  %264 = vmatpush1.msra.mxu0 0.0
  %265 = vmatprep.subr.mxu0 0.0
  %266 = vmatpush1.msra.mxu0 0.0
  %267 = vmatprep.subr.mxu0 0.0
  %268 = vmatpush1.msra.mxu0 0.0
  %269 = vmatprep.subr.mxu0 0.0
  %270 = vmatpush1.msra.mxu0 0.0
  %271 = vmatprep.subr.mxu0 0.0
  %272 = vmatpush1.msra.mxu0 0.0
  %273 = vmatprep.subr.mxu0 0.0
  %274 = vmatpush1.msra.mxu0 0.0
  %275 = vmatprep.subr.mxu0 0.0
  %276 = vmatpush1.msra.mxu0 0.0
  %277 = vmatprep.subr.mxu0 0.0
  %278 = vmatpush1.msra.mxu0 0.0
  %279 = vmatprep.subr.mxu0 0.0
  %280 = vmatpush1.msra.mxu0 0.0
  %281 = vmatprep.subr.mxu0 0.0
  %282 = vmatpush1.msra.mxu0 0.0
  %283 = vmatprep.subr.mxu0 0.0
  %284 = vmatpush1.msra.mxu0 0.0
  %285 = vmatprep.subr.mxu0 0.0
  %286 = vmatpush1.msra.mxu0 0.0
  %287 = vmatprep.subr.mxu0 0.0
  %288 = vmatpush1.msra.mxu0 0.0
  %289 = vmatprep.subr.mxu0 0.0
  %290 = vmatpush1.msra.mxu0 0.0
  %291 = vmatprep.subr.mxu0 0.0
  %292 = vmatpush1.msra.mxu0 0.0
  %293 = vmatprep.subr.mxu0 0.0
  %294 = vmatpush1.msra.mxu0 0.0
  %295 = vmatprep.subr.mxu0 0.0
  %296 = vmatpush1.msra.mxu0 0.0
  %297 = vmatprep.subr.mxu0 0.0
  %298 = vmatpush1.msra.mxu0 0.0
  %299 = vmatprep.subr.mxu0 0.0
  %300 = vmatpush1.msra.mxu0 0.0
  %301 = vmatprep.subr.mxu0 0.0
  %302 = vmatpush1.msra.mxu0 0.0
  %303 = vmatprep.subr.mxu0 0.0
  %304 = vmatpush1.msra.mxu0 0.0
  %305 = vmatprep.subr.mxu0 0.0
  %306 = vmatpush1.msra.mxu0 0.0
  %307 = vmatprep.subr.mxu0 0.0
  %308 = vmatpush1.msra.mxu0 0.0
  %309 = vmatprep.subr.mxu0 0.0
  %310 = vmatpush1.msra.mxu0 0.0
  %311 = vmatprep.mubr.f32.mxu0 0.0
  %312 = vmatmul.mubr.f32.gmra.mrb[0].mxu0 %v184
  %v313 = vpop.f32.mrb[0].mxu0
  %v314 = vadd.f32 %v181, %v313
  %v315 = vpop.f32.mrb[0].mxu0
  %316 = vmatprep.mubr.f32.mxu0 0.0
  %317 = vmatmul.mubr.f32.gmra.mrb[0].mxu0 %v187
  %v318 = vpop.f32.mrb[0].mxu0
  %v319 = vadd.f32 %v181, %v318
  %v320 = vpop.f32.mrb[0].mxu0
  %321 = vmatprep.mubr.f32.mxu0 0.0
  %322 = vmatmul.mubr.f32.gmra.mrb[0].mxu0 %v190
  %v323 = vpop.f32.mrb[0].mxu0
  %v324 = vadd.f32 %v181, %v323
  %v325 = vpop.f32.mrb[0].mxu0
  %326 = vmatprep.mubr.f32.mxu0 0.0
  %327 = vmatmul.mubr.f32.gmra.mrb[0].mxu0 %v193
  %v328 = vpop.f32.mrb[0].mxu0
  %v329 = vadd.f32 %v181, %v328
  %v330 = vpop.f32.mrb[0].mxu0
  %331 = vmatprep.mubr.f32.mxu0 0.0
  %332 = vmatmul.mubr.f32.gmra.mrb[0].mxu0 %v196
  %v333 = vpop.f32.mrb[0].mxu0
  %v334 = vadd.f32 %v181, %v333
  %v335 = vpop.f32.mrb[0].mxu0
  %336 = vmatprep.mubr.f32.mxu0 0.0
  %337 = vmatmul.mubr.f32.gmra.mrb[0].mxu0 %v199
  %v338 = vpop.f32.mrb[0].mxu0
  %v339 = vadd.f32 %v181, %v338
  %v340 = vpop.f32.mrb[0].mxu0
  %341 = vmatprep.mubr.f32.mxu0 0.0
  %342 = vmatmul.mubr.f32.gmra.mrb[0].mxu0 %v202
  %v343 = vpop.f32.mrb[0].mxu0
  %v344 = vadd.f32 %v181, %v343
  %v345 = vpop.f32.mrb[0].mxu0
  %346 = vmatprep.mubr.f32.mxu0 0.0
  %347 = vmatmul.mubr.f32.gmra.mrb[0].mxu0 %v205
  %v348 = vpop.f32.mrb[0].mxu0
  %v349 = vadd.f32 %v181, %v348
  %v350 = vpop.f32.mrb[0].mxu0
  %351 = vmatprep.mubr.f32.mxu0 0.0
  %352 = vmatmul.mubr.f32.gmra.mrb[0].mxu0 %v208
  %v353 = vpop.f32.mrb[0].mxu0
  %v354 = vadd.f32 %v181, %v353
  %v355 = vpop.f32.mrb[0].mxu0
  %356 = vmatprep.mubr.f32.mxu0 0.0
  %357 = vmatmul.mubr.f32.gmra.mrb[0].mxu0 %v211
  %v358 = vpop.f32.mrb[0].mxu0
  %v359 = vadd.f32 %v181, %v358
  %v360 = vpop.f32.mrb[0].mxu0
  %361 = vmatprep.mubr.f32.mxu0 0.0
  %362 = vmatmul.mubr.f32.gmra.mrb[0].mxu0 %v214
  %v363 = vpop.f32.mrb[0].mxu0
  %v364 = vadd.f32 %v181, %v363
  %v365 = vpop.f32.mrb[0].mxu0
  %366 = vmatprep.mubr.f32.mxu0 0.0
  %367 = vmatmul.mubr.f32.gmra.mrb[0].mxu0 %v217
  %v368 = vpop.f32.mrb[0].mxu0
  %v369 = vadd.f32 %v181, %v368
  %v370 = vpop.f32.mrb[0].mxu0
  %371 = vmatprep.mubr.f32.mxu0 0.0
  %372 = vmatmul.mubr.f32.gmra.mrb[0].mxu0 %v220
  %v373 = vpop.f32.mrb[0].mxu0
  %v374 = vadd.f32 %v181, %v373
  %v375 = vpop.f32.mrb[0].mxu0
  %376 = vmatprep.mubr.f32.mxu0 0.0
  %377 = vmatmul.mubr.f32.gmra.mrb[0].mxu0 %v223
  %v378 = vpop.f32.mrb[0].mxu0
  %v379 = vadd.f32 %v181, %v378
  %v380 = vpop.f32.mrb[0].mxu0
  %381 = vmatprep.mubr.f32.mxu0 0.0
  %382 = vmatmul.mubr.f32.gmra.mrb[0].mxu0 %v226
  %v383 = vpop.f32.mrb[0].mxu0
  %v384 = vadd.f32 %v181, %v383
  %v385 = vpop.f32.mrb[0].mxu0
  %386 = vmatprep.mubr.f32.mxu0 0.0
  %387 = vmatmul.mubr.f32.gmra.mrb[0].mxu0 %v229
  %v388 = vpop.f32.mrb[0].mxu0
  %v389 = vadd.f32 %v181, %v388
  %v390 = vpop.f32.mrb[0].mxu0
  %391 = vmatprep.mubr.f32.mxu0 0.0
  %392 = vmatmul.mubr.f32.gmra.mrb[0].mxu0 %v232
  %v393 = vpop.f32.mrb[0].mxu0
  %v394 = vadd.f32 %v181, %v393
  %v395 = vpop.f32.mrb[0].mxu0
  %396 = vmatprep.mubr.f32.mxu0 0.0
  %397 = vmatmul.mubr.f32.gmra.mrb[0].mxu0 %v235
  %v398 = vpop.f32.mrb[0].mxu0
  %v399 = vadd.f32 %v181, %v398
  %v400 = vpop.f32.mrb[0].mxu0
  %401 = vmatprep.mubr.f32.mxu0 0.0
  %402 = vmatmul.mubr.f32.gmra.mrb[0].mxu0 %v238
  %v403 = vpop.f32.mrb[0].mxu0
  %v404 = vadd.f32 %v181, %v403
  %v405 = vpop.f32.mrb[0].mxu0
  %406 = vmatprep.mubr.f32.mxu0 0.0
  %407 = vmatmul.mubr.f32.gmra.mrb[0].mxu0 %v241
  %v408 = vpop.f32.mrb[0].mxu0
  %v409 = vadd.f32 %v181, %v408
  %v410 = vpop.f32.mrb[0].mxu0
  %411 = vdwg.mxu0
  %v412 = vsub.f32 0.0, %v314
  %v413 = vsub.f32 0.0, %v319
  %v414 = vsub.f32 0.0, %v324
  %v415 = vsub.f32 0.0, %v329
  %v416 = vsub.f32 0.0, %v334
  %v417 = vsub.f32 0.0, %v339
  %v418 = vsub.f32 0.0, %v344
  %v419 = vsub.f32 0.0, %v349
  %v420 = vsub.f32 0.0, %v354
  %v421 = vsub.f32 0.0, %v359
  %v422 = vsub.f32 0.0, %v364
  %v423 = vsub.f32 0.0, %v369
  %v424 = vsub.f32 0.0, %v374
  %v425 = vsub.f32 0.0, %v379
  %v426 = vsub.f32 0.0, %v384
  %v427 = vsub.f32 0.0, %v389
  %v428 = vsub.f32 0.0, %v394
  %v429 = vsub.f32 0.0, %v399
  %v430 = vsub.f32 0.0, %v404
  %v431 = vsub.f32 0.0, %v409
  %v432 = vmul.f32 %v412, 1.442695
  %v433 = vpow.pop %v432
  %v434 = vmul.f32 %v413, 1.442695
  %v435 = vpow.pop %v434
  %v436 = vmul.f32 %v414, 1.442695
  %v437 = vpow.pop %v436
  %v438 = vmul.f32 %v415, 1.442695
  %v439 = vpow.pop %v438
  %v440 = vmul.f32 %v416, 1.442695
  %v441 = vpow.pop %v440
  %v442 = vmul.f32 %v417, 1.442695
  %v443 = vpow.pop %v442
  %v444 = vmul.f32 %v418, 1.442695
  %v445 = vpow.pop %v444
  %v446 = vmul.f32 %v419, 1.442695
  %v447 = vpow.pop %v446
  %v448 = vmul.f32 %v420, 1.442695
  %v449 = vpow.pop %v448
  %v450 = vmul.f32 %v421, 1.442695
  %v451 = vpow.pop %v450
  %v452 = vmul.f32 %v422, 1.442695
  %v453 = vpow.pop %v452
  %v454 = vmul.f32 %v423, 1.442695
  %v455 = vpow.pop %v454
  %v456 = vmul.f32 %v424, 1.442695
  %v457 = vpow.pop %v456
  %v458 = vmul.f32 %v425, 1.442695
  %v459 = vpow.pop %v458
  %v460 = vmul.f32 %v426, 1.442695
  %v461 = vpow.pop %v460
  %v462 = vmul.f32 %v427, 1.442695
  %v463 = vpow.pop %v462
  %v464 = vmul.f32 %v428, 1.442695
  %v465 = vpow.pop %v464
  %v466 = vmul.f32 %v429, 1.442695
  %v467 = vpow.pop %v466
  %v468 = vmul.f32 %v430, 1.442695
  %v469 = vpow.pop %v468
  %v470 = vmul.f32 %v431, 1.442695
  %v471 = vpow.pop %v470
  %v472 = vadd.f32 %v433, 1.0
  %v473 = vadd.f32 %v435, 1.0
  %v474 = vadd.f32 %v437, 1.0
  %v475 = vadd.f32 %v439, 1.0
  %v476 = vadd.f32 %v441, 1.0
  %v477 = vadd.f32 %v443, 1.0
  %v478 = vadd.f32 %v445, 1.0
  %v479 = vadd.f32 %v447, 1.0
  %v480 = vadd.f32 %v449, 1.0
  %v481 = vadd.f32 %v451, 1.0
  %v482 = vadd.f32 %v453, 1.0
  %v483 = vadd.f32 %v455, 1.0
  %v484 = vadd.f32 %v457, 1.0
  %v485 = vadd.f32 %v459, 1.0
  %v486 = vadd.f32 %v461, 1.0
  %v487 = vadd.f32 %v463, 1.0
  %v488 = vadd.f32 %v465, 1.0
  %v489 = vadd.f32 %v467, 1.0
  %v490 = vadd.f32 %v469, 1.0
  %v491 = vadd.f32 %v471, 1.0
  %v492 = vrcp.pop %v472
  %v493 = vrcp.pop %v473
  %v494 = vrcp.pop %v474
  %v495 = vrcp.pop %v475
  %v496 = vrcp.pop %v476
  %v497 = vrcp.pop %v477
  %v498 = vrcp.pop %v478
  %v499 = vrcp.pop %v479
  %v500 = vrcp.pop %v480
  %v501 = vrcp.pop %v481
  %v502 = vrcp.pop %v482
  %v503 = vrcp.pop %v483
  %v504 = vrcp.pop %v484
  %v505 = vrcp.pop %v485
  %v506 = vrcp.pop %v486
  %v507 = vrcp.pop %v487
  %v508 = vrcp.pop %v488
  %v509 = vrcp.pop %v489
  %v510 = vrcp.pop %v490
  %v511 = vrcp.pop %v491
  %532 = vrot.lane.b32.xlu0 %v492, 112
  %v533 = vpop.permute.xlu0 %532
  %534 = vrot.lane.b32.xlu0 %v493, 112
  %v535 = vpop.permute.xlu0 %534
  %536 = vrot.lane.b32.xlu0 %v494, 112
  %v537 = vpop.permute.xlu0 %536
  %538 = vrot.lane.b32.xlu0 %v495, 112
  %v539 = vpop.permute.xlu0 %538
  %540 = vrot.lane.b32.xlu0 %v496, 112
  %v541 = vpop.permute.xlu0 %540
  %542 = vrot.lane.b32.xlu0 %v497, 112
  %v543 = vpop.permute.xlu0 %542
  %544 = vrot.lane.b32.xlu0 %v498, 112
  %v545 = vpop.permute.xlu0 %544
  %546 = vrot.lane.b32.xlu0 %v499, 112
  %v547 = vpop.permute.xlu0 %546
  %548 = vrot.lane.b32.xlu0 %v500, 112
  %v549 = vpop.permute.xlu0 %548
  %550 = vrot.lane.b32.xlu0 %v501, 112
  %v551 = vpop.permute.xlu0 %550
  %552 = vrot.lane.b32.xlu0 %v502, 112
  %v553 = vpop.permute.xlu0 %552
  %554 = vrot.lane.b32.xlu0 %v503, 112
  %v555 = vpop.permute.xlu0 %554
  %556 = vrot.lane.b32.xlu0 %v504, 112
  %v557 = vpop.permute.xlu0 %556
  %558 = vrot.lane.b32.xlu0 %v505, 112
  %v559 = vpop.permute.xlu0 %558
  %560 = vrot.lane.b32.xlu0 %v506, 112
  %v561 = vpop.permute.xlu0 %560
  %562 = vrot.lane.b32.xlu0 %v507, 112
  %v563 = vpop.permute.xlu0 %562
  %564 = vrot.lane.b32.xlu0 %v508, 112
  %v565 = vpop.permute.xlu0 %564
  %566 = vrot.lane.b32.xlu0 %v509, 112
  %v567 = vpop.permute.xlu0 %566
  %568 = vrot.lane.b32.xlu0 %v510, 112
  %v569 = vpop.permute.xlu0 %568
  %570 = vrot.lane.b32.xlu0 %v511, 112
  %v571 = vpop.permute.xlu0 %570
  %v592 = vadd.f32 %v314, %v533
  %v593 = vadd.f32 %v319, %v535
  %v594 = vadd.f32 %v324, %v537
  %v595 = vadd.f32 %v329, %v539
  %v596 = vadd.f32 %v334, %v541
  %v597 = vadd.f32 %v339, %v543
  %v598 = vadd.f32 %v344, %v545
  %v599 = vadd.f32 %v349, %v547
  %v600 = vadd.f32 %v354, %v549
  %v601 = vadd.f32 %v359, %v551
  %v602 = vadd.f32 %v364, %v553
  %v603 = vadd.f32 %v369, %v555
  %v604 = vadd.f32 %v374, %v557
  %v605 = vadd.f32 %v379, %v559
  %v606 = vadd.f32 %v384, %v561
  %v607 = vadd.f32 %v389, %v563
  %v608 = vadd.f32 %v394, %v565
  %v609 = vadd.f32 %v399, %v567
  %v610 = vadd.f32 %v404, %v569
  %v611 = vadd.f32 %v409, %v571
  %v612 = vmax.f32 %v592, 0.0
  %v613 = vmax.f32 %v593, 0.0
  %v614 = vmax.f32 %v594, 0.0
  %v615 = vmax.f32 %v595, 0.0
  %v616 = vmax.f32 %v596, 0.0
  %v617 = vmax.f32 %v597, 0.0
  %v618 = vmax.f32 %v598, 0.0
  %v619 = vmax.f32 %v599, 0.0
  %v620 = vmax.f32 %v600, 0.0
  %v621 = vmax.f32 %v601, 0.0
  %v622 = vmax.f32 %v602, 0.0
  %v623 = vmax.f32 %v603, 0.0
  %v624 = vmax.f32 %v604, 0.0
  %v625 = vmax.f32 %v605, 0.0
  %v626 = vmax.f32 %v606, 0.0
  %v627 = vmax.f32 %v607, 0.0
  %v628 = vmax.f32 %v608, 0.0
  %v629 = vmax.f32 %v609, 0.0
  %v630 = vmax.f32 %v610, 0.0
  %v631 = vmax.f32 %v611, 0.0
  %vm632 = vcmask 130048
  %v634 = vsel %vm632, %v612, 0
  %v637 = vsel %vm632, %v613, 0
  %v640 = vsel %vm632, %v614, 0
  %v643 = vsel %vm632, %v615, 0
  %v646 = vsel %vm632, %v616, 0
  %v649 = vsel %vm632, %v617, 0
  %v652 = vsel %vm632, %v618, 0
  %v655 = vsel %vm632, %v619, 0
  %v658 = vsel %vm632, %v620, 0
  %v661 = vsel %vm632, %v621, 0
  %v664 = vsel %vm632, %v622, 0
  %v667 = vsel %vm632, %v623, 0
  %v670 = vsel %vm632, %v624, 0
  %v673 = vsel %vm632, %v625, 0
  %v676 = vsel %vm632, %v626, 0
  %v679 = vsel %vm632, %v627, 0
  %v682 = vsel %vm632, %v628, 0
  %v685 = vsel %vm632, %v629, 0
  %v688 = vsel %vm632, %v630, 0
  %v691 = vsel %vm632, %v631, 0
  %693 = vmatprep.subr.mxu0 0.0
  %694 = vmatpush1.msra.mxu0 %v32
  %695 = vmatprep.subr.mxu0 0.0
  %696 = vmatpush1.msra.mxu0 %v33
  %697 = vmatprep.subr.mxu0 0.0
  %698 = vmatpush1.msra.mxu0 0.0
  %699 = vmatprep.subr.mxu0 0.0
  %700 = vmatpush1.msra.mxu0 0.0
  %701 = vmatprep.subr.mxu0 0.0
  %702 = vmatpush1.msra.mxu0 0.0
  %703 = vmatprep.subr.mxu0 0.0
  %704 = vmatpush1.msra.mxu0 0.0
  %705 = vmatprep.subr.mxu0 0.0
  %706 = vmatpush1.msra.mxu0 0.0
  %707 = vmatprep.subr.mxu0 0.0
  %708 = vmatpush1.msra.mxu0 0.0
  %709 = vmatprep.subr.mxu0 0.0
  %710 = vmatpush1.msra.mxu0 0.0
  %711 = vmatprep.subr.mxu0 0.0
  %712 = vmatpush1.msra.mxu0 0.0
  %713 = vmatprep.subr.mxu0 0.0
  %714 = vmatpush1.msra.mxu0 0.0
  %715 = vmatprep.subr.mxu0 0.0
  %716 = vmatpush1.msra.mxu0 0.0
  %717 = vmatprep.subr.mxu0 0.0
  %718 = vmatpush1.msra.mxu0 0.0
  %719 = vmatprep.subr.mxu0 0.0
  %720 = vmatpush1.msra.mxu0 0.0
  %721 = vmatprep.subr.mxu0 0.0
  %722 = vmatpush1.msra.mxu0 0.0
  %723 = vmatprep.subr.mxu0 0.0
  %724 = vmatpush1.msra.mxu0 0.0
  %725 = vmatprep.subr.mxu0 0.0
  %726 = vmatpush1.msra.mxu0 0.0
  %727 = vmatprep.subr.mxu0 0.0
  %728 = vmatpush1.msra.mxu0 0.0
  %729 = vmatprep.subr.mxu0 0.0
  %730 = vmatpush1.msra.mxu0 0.0
  %731 = vmatprep.subr.mxu0 0.0
  %732 = vmatpush1.msra.mxu0 0.0
  %733 = vmatprep.subr.mxu0 0.0
  %734 = vmatpush1.msra.mxu0 0.0
  %735 = vmatprep.subr.mxu0 0.0
  %736 = vmatpush1.msra.mxu0 0.0
  %737 = vmatprep.subr.mxu0 0.0
  %738 = vmatpush1.msra.mxu0 0.0
  %739 = vmatprep.subr.mxu0 0.0
  %740 = vmatpush1.msra.mxu0 0.0
  %741 = vmatprep.subr.mxu0 0.0
  %742 = vmatpush1.msra.mxu0 0.0
  %743 = vmatprep.subr.mxu0 0.0
  %744 = vmatpush1.msra.mxu0 0.0
  %745 = vmatprep.subr.mxu0 0.0
  %746 = vmatpush1.msra.mxu0 0.0
  %747 = vmatprep.subr.mxu0 0.0
  %748 = vmatpush1.msra.mxu0 0.0
  %749 = vmatprep.subr.mxu0 0.0
  %750 = vmatpush1.msra.mxu0 0.0
  %751 = vmatprep.subr.mxu0 0.0
  %752 = vmatpush1.msra.mxu0 0.0
  %753 = vmatprep.subr.mxu0 0.0
  %754 = vmatpush1.msra.mxu0 0.0
  %755 = vmatprep.subr.mxu0 0.0
  %756 = vmatpush1.msra.mxu0 0.0
  %757 = vmatprep.mubr.f32.mxu0 0.0
  %758 = vmatmul.mubr.f32.gmra.mrb[0].mxu0 %v634
  %v759 = vpop.f32.mrb[0].mxu0
  %v760 = vadd.f32 0.0, %v759
  %v761 = vpop.f32.mrb[0].mxu0
  %762 = vmatprep.mubr.f32.mxu0 0.0
  %763 = vmatmul.mubr.f32.gmra.mrb[0].mxu0 %v637
  %v764 = vpop.f32.mrb[0].mxu0
  %v765 = vadd.f32 0.0, %v764
  %v766 = vpop.f32.mrb[0].mxu0
  %767 = vmatprep.mubr.f32.mxu0 0.0
  %768 = vmatmul.mubr.f32.gmra.mrb[0].mxu0 %v640
  %v769 = vpop.f32.mrb[0].mxu0
  %v770 = vadd.f32 0.0, %v769
  %v771 = vpop.f32.mrb[0].mxu0
  %772 = vmatprep.mubr.f32.mxu0 0.0
  %773 = vmatmul.mubr.f32.gmra.mrb[0].mxu0 %v643
  %v774 = vpop.f32.mrb[0].mxu0
  %v775 = vadd.f32 0.0, %v774
  %v776 = vpop.f32.mrb[0].mxu0
  %777 = vmatprep.mubr.f32.mxu0 0.0
  %778 = vmatmul.mubr.f32.gmra.mrb[0].mxu0 %v646
  %v779 = vpop.f32.mrb[0].mxu0
  %v780 = vadd.f32 0.0, %v779
  %v781 = vpop.f32.mrb[0].mxu0
  %782 = vmatprep.mubr.f32.mxu0 0.0
  %783 = vmatmul.mubr.f32.gmra.mrb[0].mxu0 %v649
  %v784 = vpop.f32.mrb[0].mxu0
  %v785 = vadd.f32 0.0, %v784
  %v786 = vpop.f32.mrb[0].mxu0
  %787 = vmatprep.mubr.f32.mxu0 0.0
  %788 = vmatmul.mubr.f32.gmra.mrb[0].mxu0 %v652
  %v789 = vpop.f32.mrb[0].mxu0
  %v790 = vadd.f32 0.0, %v789
  %v791 = vpop.f32.mrb[0].mxu0
  %792 = vmatprep.mubr.f32.mxu0 0.0
  %793 = vmatmul.mubr.f32.gmra.mrb[0].mxu0 %v655
  %v794 = vpop.f32.mrb[0].mxu0
  %v795 = vadd.f32 0.0, %v794
  %v796 = vpop.f32.mrb[0].mxu0
  %797 = vmatprep.mubr.f32.mxu0 0.0
  %798 = vmatmul.mubr.f32.gmra.mrb[0].mxu0 %v658
  %v799 = vpop.f32.mrb[0].mxu0
  %v800 = vadd.f32 0.0, %v799
  %v801 = vpop.f32.mrb[0].mxu0
  %802 = vmatprep.mubr.f32.mxu0 0.0
  %803 = vmatmul.mubr.f32.gmra.mrb[0].mxu0 %v661
  %v804 = vpop.f32.mrb[0].mxu0
  %v805 = vadd.f32 0.0, %v804
  %v806 = vpop.f32.mrb[0].mxu0
  %807 = vmatprep.mubr.f32.mxu0 0.0
  %808 = vmatmul.mubr.f32.gmra.mrb[0].mxu0 %v664
  %v809 = vpop.f32.mrb[0].mxu0
  %v810 = vadd.f32 0.0, %v809
  %v811 = vpop.f32.mrb[0].mxu0
  %812 = vmatprep.mubr.f32.mxu0 0.0
  %813 = vmatmul.mubr.f32.gmra.mrb[0].mxu0 %v667
  %v814 = vpop.f32.mrb[0].mxu0
  %v815 = vadd.f32 0.0, %v814
  %v816 = vpop.f32.mrb[0].mxu0
  %817 = vmatprep.mubr.f32.mxu0 0.0
  %818 = vmatmul.mubr.f32.gmra.mrb[0].mxu0 %v670
  %v819 = vpop.f32.mrb[0].mxu0
  %v820 = vadd.f32 0.0, %v819
  %v821 = vpop.f32.mrb[0].mxu0
  %822 = vmatprep.mubr.f32.mxu0 0.0
  %823 = vmatmul.mubr.f32.gmra.mrb[0].mxu0 %v673
  %v824 = vpop.f32.mrb[0].mxu0
  %v825 = vadd.f32 0.0, %v824
  %v826 = vpop.f32.mrb[0].mxu0
  %827 = vmatprep.mubr.f32.mxu0 0.0
  %828 = vmatmul.mubr.f32.gmra.mrb[0].mxu0 %v676
  %v829 = vpop.f32.mrb[0].mxu0
  %v830 = vadd.f32 0.0, %v829
  %v831 = vpop.f32.mrb[0].mxu0
  %832 = vmatprep.mubr.f32.mxu0 0.0
  %833 = vmatmul.mubr.f32.gmra.mrb[0].mxu0 %v679
  %v834 = vpop.f32.mrb[0].mxu0
  %v835 = vadd.f32 0.0, %v834
  %v836 = vpop.f32.mrb[0].mxu0
  %837 = vmatprep.mubr.f32.mxu0 0.0
  %838 = vmatmul.mubr.f32.gmra.mrb[0].mxu0 %v682
  %v839 = vpop.f32.mrb[0].mxu0
  %v840 = vadd.f32 0.0, %v839
  %v841 = vpop.f32.mrb[0].mxu0
  %842 = vmatprep.mubr.f32.mxu0 0.0
  %843 = vmatmul.mubr.f32.gmra.mrb[0].mxu0 %v685
  %v844 = vpop.f32.mrb[0].mxu0
  %v845 = vadd.f32 0.0, %v844
  %v846 = vpop.f32.mrb[0].mxu0
  %847 = vmatprep.mubr.f32.mxu0 0.0
  %848 = vmatmul.mubr.f32.gmra.mrb[0].mxu0 %v688
  %v849 = vpop.f32.mrb[0].mxu0
  %v850 = vadd.f32 0.0, %v849
  %v851 = vpop.f32.mrb[0].mxu0
  %852 = vmatprep.mubr.f32.mxu0 0.0
  %853 = vmatmul.mubr.f32.gmra.mrb[0].mxu0 %v691
  %v854 = vpop.f32.mrb[0].mxu0
  %v855 = vadd.f32 0.0, %v854
  %v856 = vpop.f32.mrb[0].mxu0
  %857 = vdwg.mxu0
  %858 = vst.msk [vmem:[#allocation3] sm:$0xff] %vm632, %v760
  %860 = vrot.lane.b32.xlu0 %v760, 112
  %v861 = vpop.permute.xlu0 %860
  %863 = vst.msk [vmem:[#allocation3 + $0x18] sm:$0xff] %vm632, %v861
  %864 = vrot.lane.b32.xlu0 %v760, 96
  %v865 = vpop.permute.xlu0 %864
  %867 = vst.msk [vmem:[#allocation3 + $0x30] sm:$0xff] %vm632, %v865
  %868 = vrot.lane.b32.xlu0 %v760, 80
  %v869 = vpop.permute.xlu0 %868
  %871 = vst.msk [vmem:[#allocation3 + $0x48] sm:$0xff] %vm632, %v869
  %872 = vrot.lane.b32.xlu0 %v760, 64
  %v873 = vpop.permute.xlu0 %872
  %875 = vst.msk [vmem:[#allocation3 + $0x60] sm:$0xff] %vm632, %v873
  %876 = vrot.lane.b32.xlu0 %v760, 48
  %v877 = vpop.permute.xlu0 %876
  %879 = vst.msk [vmem:[#allocation3 + $0x78] sm:$0xff] %vm632, %v877
  %881 = vrot.lane.b32.xlu0 %v765, 16
  %v882 = vpop.permute.xlu0 %881
  %vm884 = vcmask 261248
  %885 = vst.msk [vmem:[#allocation3] sm:$0xff] %vm884, %v882
  %886 = vst.msk [vmem:[#allocation3 + $0x18] sm:$0xff] %vm884, %v765
  %887 = vrot.lane.b32.xlu0 %v765, 112
  %v888 = vpop.permute.xlu0 %887
  %890 = vst.msk [vmem:[#allocation3 + $0x30] sm:$0xff] %vm884, %v888
  %891 = vrot.lane.b32.xlu0 %v765, 96
  %v892 = vpop.permute.xlu0 %891
  %894 = vst.msk [vmem:[#allocation3 + $0x48] sm:$0xff] %vm884, %v892
  %895 = vrot.lane.b32.xlu0 %v765, 80
  %v896 = vpop.permute.xlu0 %895
  %898 = vst.msk [vmem:[#allocation3 + $0x60] sm:$0xff] %vm884, %v896
  %899 = vrot.lane.b32.xlu0 %v765, 64
  %v900 = vpop.permute.xlu0 %899
  %902 = vst.msk [vmem:[#allocation3 + $0x78] sm:$0xff] %vm884, %v900
  %904 = vrot.lane.b32.xlu0 %v770, 32
  %v905 = vpop.permute.xlu0 %904
  %vm907 = vcmask 392448
  %908 = vst.msk [vmem:[#allocation3] sm:$0xff] %vm907, %v905
  %909 = vrot.lane.b32.xlu0 %v770, 16
  %v910 = vpop.permute.xlu0 %909
  %912 = vst.msk [vmem:[#allocation3 + $0x18] sm:$0xff] %vm907, %v910
  %913 = vst.msk [vmem:[#allocation3 + $0x30] sm:$0xff] %vm907, %v770
  %914 = vrot.lane.b32.xlu0 %v770, 112
  %v915 = vpop.permute.xlu0 %914
  %917 = vst.msk [vmem:[#allocation3 + $0x48] sm:$0xff] %vm907, %v915
  %918 = vrot.lane.b32.xlu0 %v770, 96
  %v919 = vpop.permute.xlu0 %918
  %921 = vst.msk [vmem:[#allocation3 + $0x60] sm:$0xff] %vm907, %v919
  %922 = vrot.lane.b32.xlu0 %v770, 80
  %v923 = vpop.permute.xlu0 %922
  %925 = vst.msk [vmem:[#allocation3 + $0x78] sm:$0xff] %vm907, %v923
  %927 = vrot.lane.b32.xlu0 %v775, 48
  %v928 = vpop.permute.xlu0 %927
  %vm930 = vcmask 523648
  %931 = vst.msk [vmem:[#allocation3] sm:$0xff] %vm930, %v928
  %932 = vrot.lane.b32.xlu0 %v775, 32
  %v933 = vpop.permute.xlu0 %932
  %935 = vst.msk [vmem:[#allocation3 + $0x18] sm:$0xff] %vm930, %v933
  %936 = vrot.lane.b32.xlu0 %v775, 16
  %v937 = vpop.permute.xlu0 %936
  %939 = vst.msk [vmem:[#allocation3 + $0x30] sm:$0xff] %vm930, %v937
  %940 = vst.msk [vmem:[#allocation3 + $0x48] sm:$0xff] %vm930, %v775
  %941 = vrot.lane.b32.xlu0 %v775, 112
  %v942 = vpop.permute.xlu0 %941
  %944 = vst.msk [vmem:[#allocation3 + $0x60] sm:$0xff] %vm930, %v942
  %945 = vrot.lane.b32.xlu0 %v775, 96
  %v946 = vpop.permute.xlu0 %945
  %948 = vst.msk [vmem:[#allocation3 + $0x78] sm:$0xff] %vm930, %v946
  %950 = vrot.lane.b32.xlu0 %v780, 64
  %v951 = vpop.permute.xlu0 %950
  %vm953 = vcmask 654848
  %954 = vst.msk [vmem:[#allocation3] sm:$0xff] %vm953, %v951
  %955 = vrot.lane.b32.xlu0 %v780, 48
  %v956 = vpop.permute.xlu0 %955
  %958 = vst.msk [vmem:[#allocation3 + $0x18] sm:$0xff] %vm953, %v956
  %959 = vrot.lane.b32.xlu0 %v780, 32
  %v960 = vpop.permute.xlu0 %959
  %962 = vst.msk [vmem:[#allocation3 + $0x30] sm:$0xff] %vm953, %v960
  %963 = vrot.lane.b32.xlu0 %v780, 16
  %v964 = vpop.permute.xlu0 %963
  %966 = vst.msk [vmem:[#allocation3 + $0x48] sm:$0xff] %vm953, %v964
  %967 = vst.msk [vmem:[#allocation3 + $0x60] sm:$0xff] %vm953, %v780
  %968 = vrot.lane.b32.xlu0 %v780, 112
  %v969 = vpop.permute.xlu0 %968
  %971 = vst.msk [vmem:[#allocation3 + $0x78] sm:$0xff] %vm953, %v969
  %973 = vrot.lane.b32.xlu0 %v785, 80
  %v974 = vpop.permute.xlu0 %973
  %vm976 = vcmask 786048
  %977 = vst.msk [vmem:[#allocation3] sm:$0xff] %vm976, %v974
  %978 = vrot.lane.b32.xlu0 %v785, 64
  %v979 = vpop.permute.xlu0 %978
  %981 = vst.msk [vmem:[#allocation3 + $0x18] sm:$0xff] %vm976, %v979
  %982 = vrot.lane.b32.xlu0 %v785, 48
  %v983 = vpop.permute.xlu0 %982
  %985 = vst.msk [vmem:[#allocation3 + $0x30] sm:$0xff] %vm976, %v983
  %986 = vrot.lane.b32.xlu0 %v785, 32
  %v987 = vpop.permute.xlu0 %986
  %989 = vst.msk [vmem:[#allocation3 + $0x48] sm:$0xff] %vm976, %v987
  %990 = vrot.lane.b32.xlu0 %v785, 16
  %v991 = vpop.permute.xlu0 %990
  %993 = vst.msk [vmem:[#allocation3 + $0x60] sm:$0xff] %vm976, %v991
  %994 = vst.msk [vmem:[#allocation3 + $0x78] sm:$0xff] %vm976, %v785
  %996 = vrot.lane.b32.xlu0 %v790, 96
  %v997 = vpop.permute.xlu0 %996
  %vm999 = vcmask 917248
  %1000 = vst.msk [vmem:[#allocation3] sm:$0xff] %vm999, %v997
  %1001 = vrot.lane.b32.xlu0 %v790, 80
  %v1002 = vpop.permute.xlu0 %1001
  %1004 = vst.msk [vmem:[#allocation3 + $0x18] sm:$0xff] %vm999, %v1002
  %1005 = vrot.lane.b32.xlu0 %v790, 64
  %v1006 = vpop.permute.xlu0 %1005
  %1008 = vst.msk [vmem:[#allocation3 + $0x30] sm:$0xff] %vm999, %v1006
  %1009 = vrot.lane.b32.xlu0 %v790, 48
  %v1010 = vpop.permute.xlu0 %1009
  %1012 = vst.msk [vmem:[#allocation3 + $0x48] sm:$0xff] %vm999, %v1010
  %1013 = vrot.lane.b32.xlu0 %v790, 32
  %v1014 = vpop.permute.xlu0 %1013
  %1016 = vst.msk [vmem:[#allocation3 + $0x60] sm:$0xff] %vm999, %v1014
  %1017 = vrot.lane.b32.xlu0 %v790, 16
  %v1018 = vpop.permute.xlu0 %1017
  %1020 = vst.msk [vmem:[#allocation3 + $0x78] sm:$0xff] %vm999, %v1018
  %1022 = vrot.lane.b32.xlu0 %v795, 112
  %v1023 = vpop.permute.xlu0 %1022
  %vm1025 = vcmask 1048448
  %1026 = vst.msk [vmem:[#allocation3] sm:$0xff] %vm1025, %v1023
  %1027 = vrot.lane.b32.xlu0 %v795, 96
  %v1028 = vpop.permute.xlu0 %1027
  %1030 = vst.msk [vmem:[#allocation3 + $0x18] sm:$0xff] %vm1025, %v1028
  %1031 = vrot.lane.b32.xlu0 %v795, 80
  %v1032 = vpop.permute.xlu0 %1031
  %1034 = vst.msk [vmem:[#allocation3 + $0x30] sm:$0xff] %vm1025, %v1032
  %1035 = vrot.lane.b32.xlu0 %v795, 64
  %v1036 = vpop.permute.xlu0 %1035
  %1038 = vst.msk [vmem:[#allocation3 + $0x48] sm:$0xff] %vm1025, %v1036
  %1039 = vrot.lane.b32.xlu0 %v795, 48
  %v1040 = vpop.permute.xlu0 %1039
  %1042 = vst.msk [vmem:[#allocation3 + $0x60] sm:$0xff] %vm1025, %v1040
  %1043 = vrot.lane.b32.xlu0 %v795, 32
  %v1044 = vpop.permute.xlu0 %1043
  %1046 = vst.msk [vmem:[#allocation3 + $0x78] sm:$0xff] %vm1025, %v1044
  %1047 = vst.msk [vmem:[#allocation3 + $0x8] sm:$0xff] %vm632, %v800
  %1049 = vrot.lane.b32.xlu0 %v800, 112
  %v1050 = vpop.permute.xlu0 %1049
  %1052 = vst.msk [vmem:[#allocation3 + $0x20] sm:$0xff] %vm632, %v1050
  %1053 = vrot.lane.b32.xlu0 %v800, 96
  %v1054 = vpop.permute.xlu0 %1053
  %1056 = vst.msk [vmem:[#allocation3 + $0x38] sm:$0xff] %vm632, %v1054
  %1057 = vrot.lane.b32.xlu0 %v800, 80
  %v1058 = vpop.permute.xlu0 %1057
  %1060 = vst.msk [vmem:[#allocation3 + $0x50] sm:$0xff] %vm632, %v1058
  %1061 = vrot.lane.b32.xlu0 %v800, 64
  %v1062 = vpop.permute.xlu0 %1061
  %1064 = vst.msk [vmem:[#allocation3 + $0x68] sm:$0xff] %vm632, %v1062
  %1065 = vrot.lane.b32.xlu0 %v800, 48
  %v1066 = vpop.permute.xlu0 %1065
  %1068 = vst.msk [vmem:[#allocation3 + $0x80] sm:$0xff] %vm632, %v1066
  %1070 = vrot.lane.b32.xlu0 %v805, 16
  %v1071 = vpop.permute.xlu0 %1070
  %1073 = vst.msk [vmem:[#allocation3 + $0x8] sm:$0xff] %vm884, %v1071
  %1074 = vst.msk [vmem:[#allocation3 + $0x20] sm:$0xff] %vm884, %v805
  %1075 = vrot.lane.b32.xlu0 %v805, 112
  %v1076 = vpop.permute.xlu0 %1075
  %1078 = vst.msk [vmem:[#allocation3 + $0x38] sm:$0xff] %vm884, %v1076
  %1079 = vrot.lane.b32.xlu0 %v805, 96
  %v1080 = vpop.permute.xlu0 %1079
  %1082 = vst.msk [vmem:[#allocation3 + $0x50] sm:$0xff] %vm884, %v1080
  %1083 = vrot.lane.b32.xlu0 %v805, 80
  %v1084 = vpop.permute.xlu0 %1083
  %1086 = vst.msk [vmem:[#allocation3 + $0x68] sm:$0xff] %vm884, %v1084
  %1087 = vrot.lane.b32.xlu0 %v805, 64
  %v1088 = vpop.permute.xlu0 %1087
  %1090 = vst.msk [vmem:[#allocation3 + $0x80] sm:$0xff] %vm884, %v1088
  %1092 = vrot.lane.b32.xlu0 %v810, 32
  %v1093 = vpop.permute.xlu0 %1092
  %1095 = vst.msk [vmem:[#allocation3 + $0x8] sm:$0xff] %vm907, %v1093
  %1096 = vrot.lane.b32.xlu0 %v810, 16
  %v1097 = vpop.permute.xlu0 %1096
  %1099 = vst.msk [vmem:[#allocation3 + $0x20] sm:$0xff] %vm907, %v1097
  %1100 = vst.msk [vmem:[#allocation3 + $0x38] sm:$0xff] %vm907, %v810
  %1101 = vrot.lane.b32.xlu0 %v810, 112
  %v1102 = vpop.permute.xlu0 %1101
  %1104 = vst.msk [vmem:[#allocation3 + $0x50] sm:$0xff] %vm907, %v1102
  %1105 = vrot.lane.b32.xlu0 %v810, 96
  %v1106 = vpop.permute.xlu0 %1105
  %1108 = vst.msk [vmem:[#allocation3 + $0x68] sm:$0xff] %vm907, %v1106
  %1109 = vrot.lane.b32.xlu0 %v810, 80
  %v1110 = vpop.permute.xlu0 %1109
  %1112 = vst.msk [vmem:[#allocation3 + $0x80] sm:$0xff] %vm907, %v1110
  %1114 = vrot.lane.b32.xlu0 %v815, 48
  %v1115 = vpop.permute.xlu0 %1114
  %1117 = vst.msk [vmem:[#allocation3 + $0x8] sm:$0xff] %vm930, %v1115
  %1118 = vrot.lane.b32.xlu0 %v815, 32
  %v1119 = vpop.permute.xlu0 %1118
  %1121 = vst.msk [vmem:[#allocation3 + $0x20] sm:$0xff] %vm930, %v1119
  %1122 = vrot.lane.b32.xlu0 %v815, 16
  %v1123 = vpop.permute.xlu0 %1122
  %1125 = vst.msk [vmem:[#allocation3 + $0x38] sm:$0xff] %vm930, %v1123
  %1126 = vst.msk [vmem:[#allocation3 + $0x50] sm:$0xff] %vm930, %v815
  %1127 = vrot.lane.b32.xlu0 %v815, 112
  %v1128 = vpop.permute.xlu0 %1127
  %1130 = vst.msk [vmem:[#allocation3 + $0x68] sm:$0xff] %vm930, %v1128
  %1131 = vrot.lane.b32.xlu0 %v815, 96
  %v1132 = vpop.permute.xlu0 %1131
  %1134 = vst.msk [vmem:[#allocation3 + $0x80] sm:$0xff] %vm930, %v1132
  %1136 = vrot.lane.b32.xlu0 %v820, 64
  %v1137 = vpop.permute.xlu0 %1136
  %1139 = vst.msk [vmem:[#allocation3 + $0x8] sm:$0xff] %vm953, %v1137
  %1140 = vrot.lane.b32.xlu0 %v820, 48
  %v1141 = vpop.permute.xlu0 %1140
  %1143 = vst.msk [vmem:[#allocation3 + $0x20] sm:$0xff] %vm953, %v1141
  %1144 = vrot.lane.b32.xlu0 %v820, 32
  %v1145 = vpop.permute.xlu0 %1144
  %1147 = vst.msk [vmem:[#allocation3 + $0x38] sm:$0xff] %vm953, %v1145
  %1148 = vrot.lane.b32.xlu0 %v820, 16
  %v1149 = vpop.permute.xlu0 %1148
  %1151 = vst.msk [vmem:[#allocation3 + $0x50] sm:$0xff] %vm953, %v1149
  %1152 = vst.msk [vmem:[#allocation3 + $0x68] sm:$0xff] %vm953, %v820
  %1153 = vrot.lane.b32.xlu0 %v820, 112
  %v1154 = vpop.permute.xlu0 %1153
  %1156 = vst.msk [vmem:[#allocation3 + $0x80] sm:$0xff] %vm953, %v1154
  %1158 = vrot.lane.b32.xlu0 %v825, 80
  %v1159 = vpop.permute.xlu0 %1158
  %1161 = vst.msk [vmem:[#allocation3 + $0x8] sm:$0xff] %vm976, %v1159
  %1162 = vrot.lane.b32.xlu0 %v825, 64
  %v1163 = vpop.permute.xlu0 %1162
  %1165 = vst.msk [vmem:[#allocation3 + $0x20] sm:$0xff] %vm976, %v1163
  %1166 = vrot.lane.b32.xlu0 %v825, 48
  %v1167 = vpop.permute.xlu0 %1166
  %1169 = vst.msk [vmem:[#allocation3 + $0x38] sm:$0xff] %vm976, %v1167
  %1170 = vrot.lane.b32.xlu0 %v825, 32
  %v1171 = vpop.permute.xlu0 %1170
  %1173 = vst.msk [vmem:[#allocation3 + $0x50] sm:$0xff] %vm976, %v1171
  %1174 = vrot.lane.b32.xlu0 %v825, 16
  %v1175 = vpop.permute.xlu0 %1174
  %1177 = vst.msk [vmem:[#allocation3 + $0x68] sm:$0xff] %vm976, %v1175
  %1178 = vst.msk [vmem:[#allocation3 + $0x80] sm:$0xff] %vm976, %v825
  %1180 = vrot.lane.b32.xlu0 %v830, 96
  %v1181 = vpop.permute.xlu0 %1180
  %1183 = vst.msk [vmem:[#allocation3 + $0x8] sm:$0xff] %vm999, %v1181
  %1184 = vrot.lane.b32.xlu0 %v830, 80
  %v1185 = vpop.permute.xlu0 %1184
  %1187 = vst.msk [vmem:[#allocation3 + $0x20] sm:$0xff] %vm999, %v1185
  %1188 = vrot.lane.b32.xlu0 %v830, 64
  %v1189 = vpop.permute.xlu0 %1188
  %1191 = vst.msk [vmem:[#allocation3 + $0x38] sm:$0xff] %vm999, %v1189
  %1192 = vrot.lane.b32.xlu0 %v830, 48
  %v1193 = vpop.permute.xlu0 %1192
  %1195 = vst.msk [vmem:[#allocation3 + $0x50] sm:$0xff] %vm999, %v1193
  %1196 = vrot.lane.b32.xlu0 %v830, 32
  %v1197 = vpop.permute.xlu0 %1196
  %1199 = vst.msk [vmem:[#allocation3 + $0x68] sm:$0xff] %vm999, %v1197
  %1200 = vrot.lane.b32.xlu0 %v830, 16
  %v1201 = vpop.permute.xlu0 %1200
  %1203 = vst.msk [vmem:[#allocation3 + $0x80] sm:$0xff] %vm999, %v1201
  %1205 = vrot.lane.b32.xlu0 %v835, 112
  %v1206 = vpop.permute.xlu0 %1205
  %1208 = vst.msk [vmem:[#allocation3 + $0x8] sm:$0xff] %vm1025, %v1206
  %1209 = vrot.lane.b32.xlu0 %v835, 96
  %v1210 = vpop.permute.xlu0 %1209
  %1212 = vst.msk [vmem:[#allocation3 + $0x20] sm:$0xff] %vm1025, %v1210
  %1213 = vrot.lane.b32.xlu0 %v835, 80
  %v1214 = vpop.permute.xlu0 %1213
  %1216 = vst.msk [vmem:[#allocation3 + $0x38] sm:$0xff] %vm1025, %v1214
  %1217 = vrot.lane.b32.xlu0 %v835, 64
  %v1218 = vpop.permute.xlu0 %1217
  %1220 = vst.msk [vmem:[#allocation3 + $0x50] sm:$0xff] %vm1025, %v1218
  %1221 = vrot.lane.b32.xlu0 %v835, 48
  %v1222 = vpop.permute.xlu0 %1221
  %1224 = vst.msk [vmem:[#allocation3 + $0x68] sm:$0xff] %vm1025, %v1222
  %1225 = vrot.lane.b32.xlu0 %v835, 32
  %v1226 = vpop.permute.xlu0 %1225
  %1228 = vst.msk [vmem:[#allocation3 + $0x80] sm:$0xff] %vm1025, %v1226
  %1229 = vst.msk [vmem:[#allocation3 + $0x10] sm:$0xff] %vm632, %v840
  %1231 = vrot.lane.b32.xlu0 %v840, 112
  %v1232 = vpop.permute.xlu0 %1231
  %1234 = vst.msk [vmem:[#allocation3 + $0x28] sm:$0xff] %vm632, %v1232
  %1235 = vrot.lane.b32.xlu0 %v840, 96
  %v1236 = vpop.permute.xlu0 %1235
  %1238 = vst.msk [vmem:[#allocation3 + $0x40] sm:$0xff] %vm632, %v1236
  %1239 = vrot.lane.b32.xlu0 %v840, 80
  %v1240 = vpop.permute.xlu0 %1239
  %1242 = vst.msk [vmem:[#allocation3 + $0x58] sm:$0xff] %vm632, %v1240
  %1243 = vrot.lane.b32.xlu0 %v840, 64
  %v1244 = vpop.permute.xlu0 %1243
  %1246 = vst.msk [vmem:[#allocation3 + $0x70] sm:$0xff] %vm632, %v1244
  %1247 = vrot.lane.b32.xlu0 %v840, 48
  %v1248 = vpop.permute.xlu0 %1247
  %1250 = vst.msk [vmem:[#allocation3 + $0x88] sm:$0xff] %vm632, %v1248
  %1252 = vrot.lane.b32.xlu0 %v845, 16
  %v1253 = vpop.permute.xlu0 %1252
  %1255 = vst.msk [vmem:[#allocation3 + $0x10] sm:$0xff] %vm884, %v1253
  %1256 = vst.msk [vmem:[#allocation3 + $0x28] sm:$0xff] %vm884, %v845
  %1257 = vrot.lane.b32.xlu0 %v845, 112
  %v1258 = vpop.permute.xlu0 %1257
  %1260 = vst.msk [vmem:[#allocation3 + $0x40] sm:$0xff] %vm884, %v1258
  %1261 = vrot.lane.b32.xlu0 %v845, 96
  %v1262 = vpop.permute.xlu0 %1261
  %1264 = vst.msk [vmem:[#allocation3 + $0x58] sm:$0xff] %vm884, %v1262
  %1265 = vrot.lane.b32.xlu0 %v845, 80
  %v1266 = vpop.permute.xlu0 %1265
  %1268 = vst.msk [vmem:[#allocation3 + $0x70] sm:$0xff] %vm884, %v1266
  %1269 = vrot.lane.b32.xlu0 %v845, 64
  %v1270 = vpop.permute.xlu0 %1269
  %1272 = vst.msk [vmem:[#allocation3 + $0x88] sm:$0xff] %vm884, %v1270
  %1274 = vrot.lane.b32.xlu0 %v850, 32
  %v1275 = vpop.permute.xlu0 %1274
  %1277 = vst.msk [vmem:[#allocation3 + $0x10] sm:$0xff] %vm907, %v1275
  %1278 = vrot.lane.b32.xlu0 %v850, 16
  %v1279 = vpop.permute.xlu0 %1278
  %1281 = vst.msk [vmem:[#allocation3 + $0x28] sm:$0xff] %vm907, %v1279
  %1282 = vst.msk [vmem:[#allocation3 + $0x40] sm:$0xff] %vm907, %v850
  %1283 = vrot.lane.b32.xlu0 %v850, 112
  %v1284 = vpop.permute.xlu0 %1283
  %1286 = vst.msk [vmem:[#allocation3 + $0x58] sm:$0xff] %vm907, %v1284
  %1287 = vrot.lane.b32.xlu0 %v850, 96
  %v1288 = vpop.permute.xlu0 %1287
  %1290 = vst.msk [vmem:[#allocation3 + $0x70] sm:$0xff] %vm907, %v1288
  %1291 = vrot.lane.b32.xlu0 %v850, 80
  %v1292 = vpop.permute.xlu0 %1291
  %1294 = vst.msk [vmem:[#allocation3 + $0x88] sm:$0xff] %vm907, %v1292
  %1296 = vrot.lane.b32.xlu0 %v855, 48
  %v1297 = vpop.permute.xlu0 %1296
  %1299 = vst.msk [vmem:[#allocation3 + $0x10] sm:$0xff] %vm930, %v1297
  %1300 = vrot.lane.b32.xlu0 %v855, 32
  %v1301 = vpop.permute.xlu0 %1300
  %1303 = vst.msk [vmem:[#allocation3 + $0x28] sm:$0xff] %vm930, %v1301
  %1304 = vrot.lane.b32.xlu0 %v855, 16
  %v1305 = vpop.permute.xlu0 %1304
  %1307 = vst.msk [vmem:[#allocation3 + $0x40] sm:$0xff] %vm930, %v1305
  %1308 = vst.msk [vmem:[#allocation3 + $0x58] sm:$0xff] %vm930, %v855
  %1309 = vrot.lane.b32.xlu0 %v855, 112
  %v1310 = vpop.permute.xlu0 %1309
  %1312 = vst.msk [vmem:[#allocation3 + $0x70] sm:$0xff] %vm930, %v1310
  %1313 = vrot.lane.b32.xlu0 %v855, 96
  %v1314 = vpop.permute.xlu0 %1313
  %1316 = vst.msk [vmem:[#allocation3 + $0x88] sm:$0xff] %vm930, %v1314
  %v1317 = vld [vmem:[#allocation3] sm:$0xff]
  %v1318 = vld [vmem:[#allocation3 + $0x8] sm:$0xff]
  %v1319 = vld [vmem:[#allocation3 + $0x10] sm:$0xff]
  %v1320 = vld [vmem:[#allocation3 + $0x18] sm:$0xff]
  %v1321 = vld [vmem:[#allocation3 + $0x20] sm:$0xff]
  %v1322 = vld [vmem:[#allocation3 + $0x28] sm:$0xff]
  %v1323 = vld [vmem:[#allocation3 + $0x30] sm:$0xff]
  %v1324 = vld [vmem:[#allocation3 + $0x38] sm:$0xff]
  %v1325 = vld [vmem:[#allocation3 + $0x40] sm:$0xff]
  %v1326 = vld [vmem:[#allocation3 + $0x48] sm:$0xff]
  %v1327 = vld [vmem:[#allocation3 + $0x50] sm:$0xff]
  %v1328 = vld [vmem:[#allocation3 + $0x58] sm:$0xff]
  %v1329 = vld [vmem:[#allocation3 + $0x60] sm:$0xff]
  %v1330 = vld [vmem:[#allocation3 + $0x68] sm:$0xff]
  %v1331 = vld [vmem:[#allocation3 + $0x70] sm:$0xff]
  %v1332 = vld [vmem:[#allocation3 + $0x78] sm:$0xff]
  %v1333 = vld [vmem:[#allocation3 + $0x80] sm:$0xff]
  %v1334 = vld [vmem:[#allocation3 + $0x88] sm:$0xff]
  %v1336 = vlaneseq
  %v1337 = vshrl.u32 %v1336, 7
  %v1338 = vsub.s32 0, %v1337
  %v1339 = vrot.slane %v34, %v1338
  %v1340 = vlaneseq
  %v1341 = vshrl.u32 %v1340, 7
  %v1342 = vsub.s32 1, %v1341
  %v1343 = vrot.slane %v34, %v1342
  %v1344 = vlaneseq
  %v1345 = vshrl.u32 %v1344, 7
  %v1346 = vsub.s32 2, %v1345
  %v1347 = vrot.slane %v34, %v1346
  %vm1351 = vcmask 392192
  %v1353 = vsel %vm1351, %v42, 0
  %1355 = vmatprep.subr.mxu0 %v1318
  %1356 = vmatpush1.msra.mxu0 %v1317
  %1357 = vmatprep.subr.mxu0 %v1321
  %1358 = vmatpush1.msra.mxu0 %v1320
  %1359 = vmatprep.subr.mxu0 %v1324
  %1360 = vmatpush1.msra.mxu0 %v1323
  %1361 = vmatprep.subr.mxu0 %v1327
  %1362 = vmatpush1.msra.mxu0 %v1326
  %1363 = vmatprep.subr.mxu0 %v1330
  %1364 = vmatpush1.msra.mxu0 %v1329
  %1365 = vmatprep.subr.mxu0 %v1333
  %1366 = vmatpush1.msra.mxu0 %v1332
  %1367 = vmatprep.subr.mxu0 0.0
  %1368 = vmatpush1.msra.mxu0 0.0
  %1369 = vmatprep.subr.mxu0 0.0
  %1370 = vmatpush1.msra.mxu0 0.0
  %1371 = vmatprep.subr.mxu0 0.0
  %1372 = vmatpush1.msra.mxu0 0.0
  %1373 = vmatprep.subr.mxu0 0.0
  %1374 = vmatpush1.msra.mxu0 0.0
  %1375 = vmatprep.subr.mxu0 0.0
  %1376 = vmatpush1.msra.mxu0 0.0
  %1377 = vmatprep.subr.mxu0 0.0
  %1378 = vmatpush1.msra.mxu0 0.0
  %1379 = vmatprep.subr.mxu0 0.0
  %1380 = vmatpush1.msra.mxu0 0.0
  %1381 = vmatprep.subr.mxu0 0.0
  %1382 = vmatpush1.msra.mxu0 0.0
  %1383 = vmatprep.subr.mxu0 0.0
  %1384 = vmatpush1.msra.mxu0 0.0
  %1385 = vmatprep.subr.mxu0 0.0
  %1386 = vmatpush1.msra.mxu0 0.0
  %1387 = vmatprep.subr.mxu0 0.0
  %1388 = vmatpush1.msra.mxu0 0.0
  %1389 = vmatprep.subr.mxu0 0.0
  %1390 = vmatpush1.msra.mxu0 0.0
  %1391 = vmatprep.subr.mxu0 0.0
  %1392 = vmatpush1.msra.mxu0 0.0
  %1393 = vmatprep.subr.mxu0 0.0
  %1394 = vmatpush1.msra.mxu0 0.0
  %1395 = vmatprep.subr.mxu0 0.0
  %1396 = vmatpush1.msra.mxu0 0.0
  %1397 = vmatprep.subr.mxu0 0.0
  %1398 = vmatpush1.msra.mxu0 0.0
  %1399 = vmatprep.subr.mxu0 0.0
  %1400 = vmatpush1.msra.mxu0 0.0
  %1401 = vmatprep.subr.mxu0 0.0
  %1402 = vmatpush1.msra.mxu0 0.0
  %1403 = vmatprep.subr.mxu0 0.0
  %1404 = vmatpush1.msra.mxu0 0.0
  %1405 = vmatprep.subr.mxu0 0.0
  %1406 = vmatpush1.msra.mxu0 0.0
  %1407 = vmatprep.subr.mxu0 0.0
  %1408 = vmatpush1.msra.mxu0 0.0
  %1409 = vmatprep.subr.mxu0 0.0
  %1410 = vmatpush1.msra.mxu0 0.0
  %1411 = vmatprep.subr.mxu0 0.0
  %1412 = vmatpush1.msra.mxu0 0.0
  %1413 = vmatprep.subr.mxu0 0.0
  %1414 = vmatpush1.msra.mxu0 0.0
  %1415 = vmatprep.subr.mxu0 0.0
  %1416 = vmatpush1.msra.mxu0 0.0
  %1417 = vmatprep.subr.mxu0 0.0
  %1418 = vmatpush1.msra.mxu0 0.0
  %1419 = vmatprep.mubr.f32.mxu0 0.0
  %1420 = vmatmul.mubr.f32.gmra.mrb[0].mxu0 %v1353
  %v1421 = vpop.f32.mrb[0].mxu0
  %v1422 = vadd.f32 %v1339, %v1421
  %v1423 = vpop.f32.mrb[0].mxu0
  %v1424 = vadd.f32 %v1343, %v1423
  %1425 = vdwg.mxu0
  %1426 = vmatprep.subr.mxu0 0.0
  %1427 = vmatpush1.msra.mxu0 %v1319
  %1428 = vmatprep.subr.mxu0 0.0
  %1429 = vmatpush1.msra.mxu0 %v1322
  %1430 = vmatprep.subr.mxu0 0.0
  %1431 = vmatpush1.msra.mxu0 %v1325
  %1432 = vmatprep.subr.mxu0 0.0
  %1433 = vmatpush1.msra.mxu0 %v1328
  %1434 = vmatprep.subr.mxu0 0.0
  %1435 = vmatpush1.msra.mxu0 %v1331
  %1436 = vmatprep.subr.mxu0 0.0
  %1437 = vmatpush1.msra.mxu0 %v1334
  %1438 = vmatprep.subr.mxu0 0.0
  %1439 = vmatpush1.msra.mxu0 0.0
  %1440 = vmatprep.subr.mxu0 0.0
  %1441 = vmatpush1.msra.mxu0 0.0
  %1442 = vmatprep.subr.mxu0 0.0
  %1443 = vmatpush1.msra.mxu0 0.0
  %1444 = vmatprep.subr.mxu0 0.0
  %1445 = vmatpush1.msra.mxu0 0.0
  %1446 = vmatprep.subr.mxu0 0.0
  %1447 = vmatpush1.msra.mxu0 0.0
  %1448 = vmatprep.subr.mxu0 0.0
  %1449 = vmatpush1.msra.mxu0 0.0
  %1450 = vmatprep.subr.mxu0 0.0
  %1451 = vmatpush1.msra.mxu0 0.0
  %1452 = vmatprep.subr.mxu0 0.0
  %1453 = vmatpush1.msra.mxu0 0.0
  %1454 = vmatprep.subr.mxu0 0.0
  %1455 = vmatpush1.msra.mxu0 0.0
  %1456 = vmatprep.subr.mxu0 0.0
  %1457 = vmatpush1.msra.mxu0 0.0
  %1458 = vmatprep.subr.mxu0 0.0
  %1459 = vmatpush1.msra.mxu0 0.0
  %1460 = vmatprep.subr.mxu0 0.0
  %1461 = vmatpush1.msra.mxu0 0.0
  %1462 = vmatprep.subr.mxu0 0.0
  %1463 = vmatpush1.msra.mxu0 0.0
  %1464 = vmatprep.subr.mxu0 0.0
  %1465 = vmatpush1.msra.mxu0 0.0
  %1466 = vmatprep.subr.mxu0 0.0
  %1467 = vmatpush1.msra.mxu0 0.0
  %1468 = vmatprep.subr.mxu0 0.0
  %1469 = vmatpush1.msra.mxu0 0.0
  %1470 = vmatprep.subr.mxu0 0.0
  %1471 = vmatpush1.msra.mxu0 0.0
  %1472 = vmatprep.subr.mxu0 0.0
  %1473 = vmatpush1.msra.mxu0 0.0
  %1474 = vmatprep.subr.mxu0 0.0
  %1475 = vmatpush1.msra.mxu0 0.0
  %1476 = vmatprep.subr.mxu0 0.0
  %1477 = vmatpush1.msra.mxu0 0.0
  %1478 = vmatprep.subr.mxu0 0.0
  %1479 = vmatpush1.msra.mxu0 0.0
  %1480 = vmatprep.subr.mxu0 0.0
  %1481 = vmatpush1.msra.mxu0 0.0
  %1482 = vmatprep.subr.mxu0 0.0
  %1483 = vmatpush1.msra.mxu0 0.0
  %1484 = vmatprep.subr.mxu0 0.0
  %1485 = vmatpush1.msra.mxu0 0.0
  %1486 = vmatprep.subr.mxu0 0.0
  %1487 = vmatpush1.msra.mxu0 0.0
  %1488 = vmatprep.subr.mxu0 0.0
  %1489 = vmatpush1.msra.mxu0 0.0
  %1490 = vmatprep.mubr.f32.mxu0 0.0
  %1491 = vmatmul.mubr.f32.gmra.mrb[0].mxu0 %v1353
  %v1492 = vpop.f32.mrb[0].mxu0
  %v1493 = vadd.f32 %v1347, %v1492
  %v1494 = vpop.f32.mrb[0].mxu0
  %1495 = vdwg.mxu0
  %1496 = vst.msk [vmem:[#allocation4] sm:$0xff] %vm1351, %v1422
  %1498 = vrot.lane.b32.xlu0 %v1422, 112
  %v1499 = vpop.permute.xlu0 %1498
  %1501 = vst.msk [vmem:[#allocation4 + $0x8] sm:$0xff] %vm1351, %v1499
  %1502 = vrot.lane.b32.xlu0 %v1422, 96
  %v1503 = vpop.permute.xlu0 %1502
  %1505 = vst.msk [vmem:[#allocation4 + $0x10] sm:$0xff] %vm1351, %v1503
  %1506 = vrot.lane.b32.xlu0 %v1422, 80
  %v1507 = vpop.permute.xlu0 %1506
  %1509 = vst.msk [vmem:[#allocation4 + $0x18] sm:$0xff] %vm1351, %v1507
  %1510 = vrot.lane.b32.xlu0 %v1422, 64
  %v1511 = vpop.permute.xlu0 %1510
  %1513 = vst.msk [vmem:[#allocation4 + $0x20] sm:$0xff] %vm1351, %v1511
  %1514 = vrot.lane.b32.xlu0 %v1422, 48
  %v1515 = vpop.permute.xlu0 %1514
  %1517 = vst.msk [vmem:[#allocation4 + $0x28] sm:$0xff] %vm1351, %v1515
  %1519 = vrot.lane.b32.xlu0 %v1422, 32
  %v1520 = vpop.permute.xlu0 %1519
  %1521 = vrot.lane.b32.xlu0 %v1424, 32
  %v1522 = vpop.permute.xlu0 %1521
  %vm1523 = vcmask 261120
  %v1524 = vsel %vm1523, %v1520, %v1522
  %1526 = vst.msk [vmem:[#allocation4 + $0x30] sm:$0xff] %vm1351, %v1524
  %1527 = vrot.lane.b32.xlu0 %v1422, 16
  %v1528 = vpop.permute.xlu0 %1527
  %1529 = vrot.lane.b32.xlu0 %v1424, 16
  %v1530 = vpop.permute.xlu0 %1529
  %v1531 = vsel %vm632, %v1528, %v1530
  %1533 = vst.msk [vmem:[#allocation4 + $0x38] sm:$0xff] %vm1351, %v1531
  %1534 = vrot.lane.b32.xlu0 %v1424, 96
  %v1535 = vpop.permute.xlu0 %1534
  %1537 = vst.msk [vmem:[#allocation4 + $0x40] sm:$0xff] %vm1351, %v1535
  %1538 = vrot.lane.b32.xlu0 %v1424, 80
  %v1539 = vpop.permute.xlu0 %1538
  %1541 = vst.msk [vmem:[#allocation4 + $0x48] sm:$0xff] %vm1351, %v1539
  %1542 = vrot.lane.b32.xlu0 %v1424, 64
  %v1543 = vpop.permute.xlu0 %1542
  %1545 = vst.msk [vmem:[#allocation4 + $0x50] sm:$0xff] %vm1351, %v1543
  %1546 = vrot.lane.b32.xlu0 %v1424, 48
  %v1547 = vpop.permute.xlu0 %1546
  %1549 = vst.msk [vmem:[#allocation4 + $0x58] sm:$0xff] %vm1351, %v1547
  %1551 = vrot.lane.b32.xlu0 %v1493, 32
  %v1552 = vpop.permute.xlu0 %1551
  %v1553 = vsel %vm1523, %v1522, %v1552
  %1555 = vst.msk [vmem:[#allocation4 + $0x60] sm:$0xff] %vm1351, %v1553
  %1556 = vrot.lane.b32.xlu0 %v1493, 16
  %v1557 = vpop.permute.xlu0 %1556
  %v1558 = vsel %vm632, %v1530, %v1557
  %1560 = vst.msk [vmem:[#allocation4 + $0x68] sm:$0xff] %vm1351, %v1558
  %1561 = vst.msk [vmem:[#allocation4 + $0x70] sm:$0xff] %vm1351, %v1493
  %1562 = vrot.lane.b32.xlu0 %v1493, 112
  %v1563 = vpop.permute.xlu0 %1562
  %1565 = vst.msk [vmem:[#allocation4 + $0x78] sm:$0xff] %vm1351, %v1563
  %v1566 = vld [vmem:[#allocation4] sm:$0xff]
  %v1567 = vld [vmem:[#allocation4 + $0x8] sm:$0xff]
  %v1568 = vld [vmem:[#allocation4 + $0x10] sm:$0xff]
  %v1569 = vld [vmem:[#allocation4 + $0x18] sm:$0xff]
  %v1570 = vld [vmem:[#allocation4 + $0x20] sm:$0xff]
  %v1571 = vld [vmem:[#allocation4 + $0x28] sm:$0xff]
  %v1572 = vld [vmem:[#allocation4 + $0x30] sm:$0xff]
  %v1573 = vld [vmem:[#allocation4 + $0x38] sm:$0xff]
  %v1574 = vld [vmem:[#allocation4 + $0x40] sm:$0xff]
  %v1575 = vld [vmem:[#allocation4 + $0x48] sm:$0xff]
  %v1576 = vld [vmem:[#allocation4 + $0x50] sm:$0xff]
  %v1577 = vld [vmem:[#allocation4 + $0x58] sm:$0xff]
  %v1578 = vld [vmem:[#allocation4 + $0x60] sm:$0xff]
  %v1579 = vld [vmem:[#allocation4 + $0x68] sm:$0xff]
  %v1580 = vld [vmem:[#allocation4 + $0x70] sm:$0xff]
  %v1581 = vld [vmem:[#allocation4 + $0x78] sm:$0xff]
  %v1583 = vlaneseq
  %v1584 = vshrl.u32 %v1583, 7
  %v1585 = vsub.s32 0, %v1584
  %v1586 = vrot.slane %v41, %v1585
  %v1589 = vsel %vm1351, %v1566, 0
  %v1592 = vsel %vm1351, %v1567, 0
  %v1595 = vsel %vm1351, %v1568, 0
  %v1598 = vsel %vm1351, %v1569, 0
  %v1601 = vsel %vm1351, %v1570, 0
  %v1604 = vsel %vm1351, %v1571, 0
  %v1607 = vsel %vm1351, %v1572, 0
  %v1610 = vsel %vm1351, %v1573, 0
  %v1613 = vsel %vm1351, %v1574, 0
  %v1616 = vsel %vm1351, %v1575, 0
  %v1619 = vsel %vm1351, %v1576, 0
  %v1622 = vsel %vm1351, %v1577, 0
  %v1625 = vsel %vm1351, %v1578, 0
  %v1628 = vsel %vm1351, %v1579, 0
  %v1631 = vsel %vm1351, %v1580, 0
  %v1634 = vsel %vm1351, %v1581, 0
  %1636 = vmatprep.subr.mxu0 0.0
  %1637 = vmatpush1.msra.mxu0 %v35
  %1638 = vmatprep.subr.mxu0 0.0
  %1639 = vmatpush1.msra.mxu0 %v36
  %1640 = vmatprep.subr.mxu0 0.0
  %1641 = vmatpush1.msra.mxu0 %v37
  %1642 = vmatprep.subr.mxu0 0.0
  %1643 = vmatpush1.msra.mxu0 %v38
  %1644 = vmatprep.subr.mxu0 0.0
  %1645 = vmatpush1.msra.mxu0 %v39
  %1646 = vmatprep.subr.mxu0 0.0
  %1647 = vmatpush1.msra.mxu0 %v40
  %1648 = vmatprep.subr.mxu0 0.0
  %1649 = vmatpush1.msra.mxu0 0.0
  %1650 = vmatprep.subr.mxu0 0.0
  %1651 = vmatpush1.msra.mxu0 0.0
  %1652 = vmatprep.subr.mxu0 0.0
  %1653 = vmatpush1.msra.mxu0 0.0
  %1654 = vmatprep.subr.mxu0 0.0
  %1655 = vmatpush1.msra.mxu0 0.0
  %1656 = vmatprep.subr.mxu0 0.0
  %1657 = vmatpush1.msra.mxu0 0.0
  %1658 = vmatprep.subr.mxu0 0.0
  %1659 = vmatpush1.msra.mxu0 0.0
  %1660 = vmatprep.subr.mxu0 0.0
  %1661 = vmatpush1.msra.mxu0 0.0
  %1662 = vmatprep.subr.mxu0 0.0
  %1663 = vmatpush1.msra.mxu0 0.0
  %1664 = vmatprep.subr.mxu0 0.0
  %1665 = vmatpush1.msra.mxu0 0.0
  %1666 = vmatprep.subr.mxu0 0.0
  %1667 = vmatpush1.msra.mxu0 0.0
  %1668 = vmatprep.subr.mxu0 0.0
  %1669 = vmatpush1.msra.mxu0 0.0
  %1670 = vmatprep.subr.mxu0 0.0
  %1671 = vmatpush1.msra.mxu0 0.0
  %1672 = vmatprep.subr.mxu0 0.0
  %1673 = vmatpush1.msra.mxu0 0.0
  %1674 = vmatprep.subr.mxu0 0.0
  %1675 = vmatpush1.msra.mxu0 0.0
  %1676 = vmatprep.subr.mxu0 0.0
  %1677 = vmatpush1.msra.mxu0 0.0
  %1678 = vmatprep.subr.mxu0 0.0
  %1679 = vmatpush1.msra.mxu0 0.0
  %1680 = vmatprep.subr.mxu0 0.0
  %1681 = vmatpush1.msra.mxu0 0.0
  %1682 = vmatprep.subr.mxu0 0.0
  %1683 = vmatpush1.msra.mxu0 0.0
  %1684 = vmatprep.subr.mxu0 0.0
  %1685 = vmatpush1.msra.mxu0 0.0
  %1686 = vmatprep.subr.mxu0 0.0
  %1687 = vmatpush1.msra.mxu0 0.0
  %1688 = vmatprep.subr.mxu0 0.0
  %1689 = vmatpush1.msra.mxu0 0.0
  %1690 = vmatprep.subr.mxu0 0.0
  %1691 = vmatpush1.msra.mxu0 0.0
  %1692 = vmatprep.subr.mxu0 0.0
  %1693 = vmatpush1.msra.mxu0 0.0
  %1694 = vmatprep.subr.mxu0 0.0
  %1695 = vmatpush1.msra.mxu0 0.0
  %1696 = vmatprep.subr.mxu0 0.0
  %1697 = vmatpush1.msra.mxu0 0.0
  %1698 = vmatprep.subr.mxu0 0.0
  %1699 = vmatpush1.msra.mxu0 0.0
  %1700 = vmatprep.mubr.f32.mxu0 0.0
  %1701 = vmatmul.mubr.f32.gmra.mrb[0].mxu0 %v1589
  %v1702 = vpop.f32.mrb[0].mxu0
  %v1703 = vadd.f32 %v1586, %v1702
  %v1704 = vpop.f32.mrb[0].mxu0
  %1705 = vmatprep.mubr.f32.mxu0 0.0
  %1706 = vmatmul.mubr.f32.gmra.mrb[0].mxu0 %v1592
  %v1707 = vpop.f32.mrb[0].mxu0
  %v1708 = vadd.f32 %v1586, %v1707
  %v1709 = vpop.f32.mrb[0].mxu0
  %1710 = vmatprep.mubr.f32.mxu0 0.0
  %1711 = vmatmul.mubr.f32.gmra.mrb[0].mxu0 %v1595
  %v1712 = vpop.f32.mrb[0].mxu0
  %v1713 = vadd.f32 %v1586, %v1712
  %v1714 = vpop.f32.mrb[0].mxu0
  %1715 = vmatprep.mubr.f32.mxu0 0.0
  %1716 = vmatmul.mubr.f32.gmra.mrb[0].mxu0 %v1598
  %v1717 = vpop.f32.mrb[0].mxu0
  %v1718 = vadd.f32 %v1586, %v1717
  %v1719 = vpop.f32.mrb[0].mxu0
  %1720 = vmatprep.mubr.f32.mxu0 0.0
  %1721 = vmatmul.mubr.f32.gmra.mrb[0].mxu0 %v1601
  %v1722 = vpop.f32.mrb[0].mxu0
  %v1723 = vadd.f32 %v1586, %v1722
  %v1724 = vpop.f32.mrb[0].mxu0
  %1725 = vmatprep.mubr.f32.mxu0 0.0
  %1726 = vmatmul.mubr.f32.gmra.mrb[0].mxu0 %v1604
  %v1727 = vpop.f32.mrb[0].mxu0
  %v1728 = vadd.f32 %v1586, %v1727
  %v1729 = vpop.f32.mrb[0].mxu0
  %1730 = vmatprep.mubr.f32.mxu0 0.0
  %1731 = vmatmul.mubr.f32.gmra.mrb[0].mxu0 %v1607
  %v1732 = vpop.f32.mrb[0].mxu0
  %v1733 = vadd.f32 %v1586, %v1732
  %v1734 = vpop.f32.mrb[0].mxu0
  %1735 = vmatprep.mubr.f32.mxu0 0.0
  %1736 = vmatmul.mubr.f32.gmra.mrb[0].mxu0 %v1610
  %v1737 = vpop.f32.mrb[0].mxu0
  %v1738 = vadd.f32 %v1586, %v1737
  %v1739 = vpop.f32.mrb[0].mxu0
  %1740 = vmatprep.mubr.f32.mxu0 0.0
  %1741 = vmatmul.mubr.f32.gmra.mrb[0].mxu0 %v1613
  %v1742 = vpop.f32.mrb[0].mxu0
  %v1743 = vadd.f32 %v1586, %v1742
  %v1744 = vpop.f32.mrb[0].mxu0
  %1745 = vmatprep.mubr.f32.mxu0 0.0
  %1746 = vmatmul.mubr.f32.gmra.mrb[0].mxu0 %v1616
  %v1747 = vpop.f32.mrb[0].mxu0
  %v1748 = vadd.f32 %v1586, %v1747
  %v1749 = vpop.f32.mrb[0].mxu0
  %1750 = vmatprep.mubr.f32.mxu0 0.0
  %1751 = vmatmul.mubr.f32.gmra.mrb[0].mxu0 %v1619
  %v1752 = vpop.f32.mrb[0].mxu0
  %v1753 = vadd.f32 %v1586, %v1752
  %v1754 = vpop.f32.mrb[0].mxu0
  %1755 = vmatprep.mubr.f32.mxu0 0.0
  %1756 = vmatmul.mubr.f32.gmra.mrb[0].mxu0 %v1622
  %v1757 = vpop.f32.mrb[0].mxu0
  %v1758 = vadd.f32 %v1586, %v1757
  %v1759 = vpop.f32.mrb[0].mxu0
  %1760 = vmatprep.mubr.f32.mxu0 0.0
  %1761 = vmatmul.mubr.f32.gmra.mrb[0].mxu0 %v1625
  %v1762 = vpop.f32.mrb[0].mxu0
  %v1763 = vadd.f32 %v1586, %v1762
  %v1764 = vpop.f32.mrb[0].mxu0
  %1765 = vmatprep.mubr.f32.mxu0 0.0
  %1766 = vmatmul.mubr.f32.gmra.mrb[0].mxu0 %v1628
  %v1767 = vpop.f32.mrb[0].mxu0
  %v1768 = vadd.f32 %v1586, %v1767
  %v1769 = vpop.f32.mrb[0].mxu0
  %1770 = vmatprep.mubr.f32.mxu0 0.0
  %1771 = vmatmul.mubr.f32.gmra.mrb[0].mxu0 %v1631
  %v1772 = vpop.f32.mrb[0].mxu0
  %v1773 = vadd.f32 %v1586, %v1772
  %v1774 = vpop.f32.mrb[0].mxu0
  %1775 = vmatprep.mubr.f32.mxu0 0.0
  %1776 = vmatmul.mubr.f32.gmra.mrb[0].mxu0 %v1634
  %v1777 = vpop.f32.mrb[0].mxu0
  %v1778 = vadd.f32 %v1586, %v1777
  %v1779 = vpop.f32.mrb[0].mxu0
  %1780 = vdwg.mxu0
  %v1781 = vsub.f32 0.0, %v1703
  %v1782 = vsub.f32 0.0, %v1708
  %v1783 = vsub.f32 0.0, %v1713
  %v1784 = vsub.f32 0.0, %v1718
  %v1785 = vsub.f32 0.0, %v1723
  %v1786 = vsub.f32 0.0, %v1728
  %v1787 = vsub.f32 0.0, %v1733
  %v1788 = vsub.f32 0.0, %v1738
  %v1789 = vsub.f32 0.0, %v1743
  %v1790 = vsub.f32 0.0, %v1748
  %v1791 = vsub.f32 0.0, %v1753
  %v1792 = vsub.f32 0.0, %v1758
  %v1793 = vsub.f32 0.0, %v1763
  %v1794 = vsub.f32 0.0, %v1768
  %v1795 = vsub.f32 0.0, %v1773
  %v1796 = vsub.f32 0.0, %v1778
  %v1797 = vmul.f32 %v1781, 1.442695
  %v1798 = vpow.pop %v1797
  %v1799 = vmul.f32 %v1782, 1.442695
  %v1800 = vpow.pop %v1799
  %v1801 = vmul.f32 %v1783, 1.442695
  %v1802 = vpow.pop %v1801
  %v1803 = vmul.f32 %v1784, 1.442695
  %v1804 = vpow.pop %v1803
  %v1805 = vmul.f32 %v1785, 1.442695
  %v1806 = vpow.pop %v1805
  %v1807 = vmul.f32 %v1786, 1.442695
  %v1808 = vpow.pop %v1807
  %v1809 = vmul.f32 %v1787, 1.442695
  %v1810 = vpow.pop %v1809
  %v1811 = vmul.f32 %v1788, 1.442695
  %v1812 = vpow.pop %v1811
  %v1813 = vmul.f32 %v1789, 1.442695
  %v1814 = vpow.pop %v1813
  %v1815 = vmul.f32 %v1790, 1.442695
  %v1816 = vpow.pop %v1815
  %v1817 = vmul.f32 %v1791, 1.442695
  %v1818 = vpow.pop %v1817
  %v1819 = vmul.f32 %v1792, 1.442695
  %v1820 = vpow.pop %v1819
  %v1821 = vmul.f32 %v1793, 1.442695
  %v1822 = vpow.pop %v1821
  %v1823 = vmul.f32 %v1794, 1.442695
  %v1824 = vpow.pop %v1823
  %v1825 = vmul.f32 %v1795, 1.442695
  %v1826 = vpow.pop %v1825
  %v1827 = vmul.f32 %v1796, 1.442695
  %v1828 = vpow.pop %v1827
  %v1829 = vadd.f32 %v1798, 1.0
  %v1830 = vadd.f32 %v1800, 1.0
  %v1831 = vadd.f32 %v1802, 1.0
  %v1832 = vadd.f32 %v1804, 1.0
  %v1833 = vadd.f32 %v1806, 1.0
  %v1834 = vadd.f32 %v1808, 1.0
  %v1835 = vadd.f32 %v1810, 1.0
  %v1836 = vadd.f32 %v1812, 1.0
  %v1837 = vadd.f32 %v1814, 1.0
  %v1838 = vadd.f32 %v1816, 1.0
  %v1839 = vadd.f32 %v1818, 1.0
  %v1840 = vadd.f32 %v1820, 1.0
  %v1841 = vadd.f32 %v1822, 1.0
  %v1842 = vadd.f32 %v1824, 1.0
  %v1843 = vadd.f32 %v1826, 1.0
  %v1844 = vadd.f32 %v1828, 1.0
  %v1845 = vrcp.pop %v1829
  %v1846 = vrcp.pop %v1830
  %v1847 = vrcp.pop %v1831
  %v1848 = vrcp.pop %v1832
  %v1849 = vrcp.pop %v1833
  %v1850 = vrcp.pop %v1834
  %v1851 = vrcp.pop %v1835
  %v1852 = vrcp.pop %v1836
  %v1853 = vrcp.pop %v1837
  %v1854 = vrcp.pop %v1838
  %v1855 = vrcp.pop %v1839
  %v1856 = vrcp.pop %v1840
  %v1857 = vrcp.pop %v1841
  %v1858 = vrcp.pop %v1842
  %v1859 = vrcp.pop %v1843
  %v1860 = vrcp.pop %v1844
  %1877 = vrot.lane.b32.xlu0 %v1845, 112
  %v1878 = vpop.permute.xlu0 %1877
  %1879 = vrot.lane.b32.xlu0 %v1846, 112
  %v1880 = vpop.permute.xlu0 %1879
  %1881 = vrot.lane.b32.xlu0 %v1847, 112
  %v1882 = vpop.permute.xlu0 %1881
  %1883 = vrot.lane.b32.xlu0 %v1848, 112
  %v1884 = vpop.permute.xlu0 %1883
  %1885 = vrot.lane.b32.xlu0 %v1849, 112
  %v1886 = vpop.permute.xlu0 %1885
  %1887 = vrot.lane.b32.xlu0 %v1850, 112
  %v1888 = vpop.permute.xlu0 %1887
  %1889 = vrot.lane.b32.xlu0 %v1851, 112
  %v1890 = vpop.permute.xlu0 %1889
  %1891 = vrot.lane.b32.xlu0 %v1852, 112
  %v1892 = vpop.permute.xlu0 %1891
  %1893 = vrot.lane.b32.xlu0 %v1853, 112
  %v1894 = vpop.permute.xlu0 %1893
  %1895 = vrot.lane.b32.xlu0 %v1854, 112
  %v1896 = vpop.permute.xlu0 %1895
  %1897 = vrot.lane.b32.xlu0 %v1855, 112
  %v1898 = vpop.permute.xlu0 %1897
  %1899 = vrot.lane.b32.xlu0 %v1856, 112
  %v1900 = vpop.permute.xlu0 %1899
  %1901 = vrot.lane.b32.xlu0 %v1857, 112
  %v1902 = vpop.permute.xlu0 %1901
  %1903 = vrot.lane.b32.xlu0 %v1858, 112
  %v1904 = vpop.permute.xlu0 %1903
  %1905 = vrot.lane.b32.xlu0 %v1859, 112
  %v1906 = vpop.permute.xlu0 %1905
  %1907 = vrot.lane.b32.xlu0 %v1860, 112
  %v1908 = vpop.permute.xlu0 %1907
  %v1925 = vadd.f32 %v1703, %v1878
  %v1926 = vadd.f32 %v1708, %v1880
  %v1927 = vadd.f32 %v1713, %v1882
  %v1928 = vadd.f32 %v1718, %v1884
  %v1929 = vadd.f32 %v1723, %v1886
  %v1930 = vadd.f32 %v1728, %v1888
  %v1931 = vadd.f32 %v1733, %v1890
  %v1932 = vadd.f32 %v1738, %v1892
  %v1933 = vadd.f32 %v1743, %v1894
  %v1934 = vadd.f32 %v1748, %v1896
  %v1935 = vadd.f32 %v1753, %v1898
  %v1936 = vadd.f32 %v1758, %v1900
  %v1937 = vadd.f32 %v1763, %v1902
  %v1938 = vadd.f32 %v1768, %v1904
  %v1939 = vadd.f32 %v1773, %v1906
  %v1940 = vadd.f32 %v1778, %v1908
  %v1941 = vmax.f32 %v1925, 0.0
  %v1942 = vmax.f32 %v1926, 0.0
  %v1943 = vmax.f32 %v1927, 0.0
  %v1944 = vmax.f32 %v1928, 0.0
  %v1945 = vmax.f32 %v1929, 0.0
  %v1946 = vmax.f32 %v1930, 0.0
  %v1947 = vmax.f32 %v1931, 0.0
  %v1948 = vmax.f32 %v1932, 0.0
  %v1949 = vmax.f32 %v1933, 0.0
  %v1950 = vmax.f32 %v1934, 0.0
  %v1951 = vmax.f32 %v1935, 0.0
  %v1952 = vmax.f32 %v1936, 0.0
  %v1953 = vmax.f32 %v1937, 0.0
  %v1954 = vmax.f32 %v1938, 0.0
  %v1955 = vmax.f32 %v1939, 0.0
  %v1956 = vmax.f32 %v1940, 0.0
  %1957 = vst.msk [vmem:[#allocation5] sm:$0xff] %vm632, %v1941
  %1959 = vrot.lane.b32.xlu0 %v1942, 16
  %v1960 = vpop.permute.xlu0 %1959
  %1962 = vst.msk [vmem:[#allocation5] sm:$0xff] %vm884, %v1960
  %1964 = vrot.lane.b32.xlu0 %v1943, 32
  %v1965 = vpop.permute.xlu0 %1964
  %1967 = vst.msk [vmem:[#allocation5] sm:$0xff] %vm907, %v1965
  %1969 = vrot.lane.b32.xlu0 %v1944, 48
  %v1970 = vpop.permute.xlu0 %1969
  %1972 = vst.msk [vmem:[#allocation5] sm:$0xff] %vm930, %v1970
  %1974 = vrot.lane.b32.xlu0 %v1945, 64
  %v1975 = vpop.permute.xlu0 %1974
  %1977 = vst.msk [vmem:[#allocation5] sm:$0xff] %vm953, %v1975
  %1979 = vrot.lane.b32.xlu0 %v1946, 80
  %v1980 = vpop.permute.xlu0 %1979
  %1982 = vst.msk [vmem:[#allocation5] sm:$0xff] %vm976, %v1980
  %1984 = vrot.lane.b32.xlu0 %v1947, 96
  %v1985 = vpop.permute.xlu0 %1984
  %1987 = vst.msk [vmem:[#allocation5] sm:$0xff] %vm999, %v1985
  %1989 = vrot.lane.b32.xlu0 %v1948, 112
  %v1990 = vpop.permute.xlu0 %1989
  %1992 = vst.msk [vmem:[#allocation5] sm:$0xff] %vm1025, %v1990
  %1993 = vst.msk [vmem:[#allocation5 + $0x8] sm:$0xff] %vm632, %v1949
  %1995 = vrot.lane.b32.xlu0 %v1950, 16
  %v1996 = vpop.permute.xlu0 %1995
  %1998 = vst.msk [vmem:[#allocation5 + $0x8] sm:$0xff] %vm884, %v1996
  %2000 = vrot.lane.b32.xlu0 %v1951, 32
  %v2001 = vpop.permute.xlu0 %2000
  %2003 = vst.msk [vmem:[#allocation5 + $0x8] sm:$0xff] %vm907, %v2001
  %2005 = vrot.lane.b32.xlu0 %v1952, 48
  %v2006 = vpop.permute.xlu0 %2005
  %2008 = vst.msk [vmem:[#allocation5 + $0x8] sm:$0xff] %vm930, %v2006
  %2010 = vrot.lane.b32.xlu0 %v1953, 64
  %v2011 = vpop.permute.xlu0 %2010
  %2013 = vst.msk [vmem:[#allocation5 + $0x8] sm:$0xff] %vm953, %v2011
  %2015 = vrot.lane.b32.xlu0 %v1954, 80
  %v2016 = vpop.permute.xlu0 %2015
  %2018 = vst.msk [vmem:[#allocation5 + $0x8] sm:$0xff] %vm976, %v2016
  %2020 = vrot.lane.b32.xlu0 %v1955, 96
  %v2021 = vpop.permute.xlu0 %2020
  %2023 = vst.msk [vmem:[#allocation5 + $0x8] sm:$0xff] %vm999, %v2021
  %2025 = vrot.lane.b32.xlu0 %v1956, 112
  %v2026 = vpop.permute.xlu0 %2025
  %2028 = vst.msk [vmem:[#allocation5 + $0x8] sm:$0xff] %vm1025, %v2026
  %v2029 = vld [vmem:[#allocation5] sm:$0xff]
  %v2030 = vld [vmem:[#allocation5 + $0x8] sm:$0xff]
  %v2031 = vadd.f32 %v2029, %v2030
  %2032 = vadd.xlane.f32.xlu0 %v2031
  %v2033 = vpop.xlane.xlu0 %2032
  %v2034 = vrcp.pop 256.0
  %v2035 = vmul.f32 %v2033, %v2034
  %v2036 = vsub.f32 %v2029, %v2035
  %v2037 = vsub.f32 %v2030, %v2035
  %v2038 = vmul.f32 %v2036, %v2036
  %v2039 = vmul.f32 %v2037, %v2037
  %v2040 = vadd.f32 %v2038, %v2039
  %2041 = vadd.xlane.f32.xlu0 %v2040
  %v2042 = vpop.xlane.xlu0 %2041
  %v2043 = vmul.f32 %v2042, %v2034
  %v2044 = vadd.f32 %v2043, 1e-05
  %v2045 = vrsqrt.pop %v2044
  %v2046 = vmul.f32 %v2036, %v2045
  %v2047 = vmul.f32 %v2037, %v2045
  %2048 = vst [vmem:[%s8] sm:$0xff] %v2046
  %s2049 = scalar_lea.vmem %s8, 8
  %2050 = vst [vmem:[%s2049] sm:$0xff] %v2047
  // Predicated region
  $region34: #{st_block_forward.1} parent=0 // pred_check
    _
  $region35: #{st_block_forward.1} parent=0 // pred_check_branch
    %2052 = sbr.rel (0) target = $region37
  $region36: #{st_block_forward.1} parent=0 // pred_region
    _
  $region37: #{st_block_forward.1} parent=0 // pred_fallthru
    _
  // Predicated region
  $region38: #{st_block_forward.1} parent=0 // pred_check
    _
  $region39: #{st_block_forward.1} parent=0 // pred_check_branch
    %2054 = sbr.rel (0) target = $region41
  $region40: #{st_block_forward.1} parent=0 // pred_region
    _
  $region41: #{st_block_forward.1} parent=0 // pred_fallthru
    _

</llo_original>
